<compile_context>
chip_gen: v7x
topology: tpu7x:2x2x1
jax: 0.10.0
libtpu: 0.0.40
codegen_flags: <defaults>
</compile_context>

<pallas_src>
import math
import warnings

import numpy as np
import jax
import jax.numpy as jnp
from jax import lax
from jax.experimental import pallas as pl
from jax.experimental.pallas import tpu as pltpu

# ----------------------------------------------------------------------------
# Tiling constants
# ----------------------------------------------------------------------------
TG = 1024       # grid / frequency points per tile (lane-major minor axis)
SUB = 8         # atoms per inner EUP sub-chunk (sublane axis)
TA_MAX = 128    # max atoms per batched MXU matmul block (inside-kernel loop)
NC = 8          # augmented coordinate rows/cols (3 coords + norm trick, pad 8)
E_PAD = 8       # element-type rows (5 real symbols, padded to sublane mult.)
R = 6           # Gaussian terms per element (em=False -> 6, like torch)
_HIGHEST = jax.lax.Precision.HIGHEST

ATOMIC_NUM_TO_ELEMENT = ["X", "C", "N", "O", "S"]


def _make_structure_factors():
    """Deterministic synthetic stand-in for ATOM_STRUCTURE_FACTORS."""
    sf = {}
    for idx, e in enumerate(ATOMIC_NUM_TO_ELEMENT[1:], start=1):
        a = [0.5 + 0.15 * r + 0.05 * idx for r in range(R)]
        b = [0.4 + 0.9 * r + 0.1 * idx for r in range(R)]
        sf[e] = (a, b)
    return sf


# TODO(synk): real adp3d uses gemmi.FloatGrid + published ATOM_STRUCTURE_FACTORS /
# ELECTRON_SCATTERING_FACTORS tables; deterministic synthetic stand-ins are used here.
ATOM_STRUCTURE_FACTORS = _make_structure_factors()


def _round_up(x, m):
    return ((x + m - 1) // m) * m


def normalize(t):
    """JAX port of adp3d normalize(): zero-mean / unit-std (ddof=0)."""
    if t.size == 0 or t.ndim == 0:
        return t
    if jnp.iscomplexobj(t):
        re = (t.real - t.real.mean()) / (t.real.std() + 1e-8)
        im = (t.imag - t.imag.mean()) / (t.imag.std() + 1e-8)
        return re + 1j * im
    return (t - t.mean()) / (t.std() + 1e-8)


# ----------------------------------------------------------------------------
# Pallas kernels
# ----------------------------------------------------------------------------
def _real_density_kernel(xaug_ref, aw_ref, bw_ref, gaug_ref, out_ref,
                         acc_ref, d2_ref):
    # xaug: (Ap, NC) full   aw/bw: (Ap, R) full   gaug: (NC, TG) tile
    # out: (1, TG)          acc: (SUB, TG) scratch   d2: (TA, TG) scratch
    ta = d2_ref.shape[0]
    n_blk = xaug_ref.shape[0] // ta
    n_sub = ta // SUB

    acc_ref[...] = jnp.zeros_like(acc_ref)

    def blk_body(b, carry):
        a0 = pl.multiple_of(b * ta, SUB)
        # One batched MXU matmul for the whole atom block:
        #   d2[a, t] = ||x_a - g_t||^2  via augmented operands
        #   xaug = [x, y, z, 1, |x|^2, 0, 0, 0]
        #   gaug = [-2gx; -2gy; -2gz; |g|^2; 1; 0; 0; 0]
        d2_ref[...] = jnp.dot(xaug_ref[pl.ds(a0, ta), :], gaug_ref[...],
                              preferred_element_type=jnp.float32,
                              precision=_HIGHEST)

        def sub_body(s, c):
            i = pl.multiple_of(s * SUB, SUB)
            ia = pl.multiple_of(a0 + i, SUB)
            # clamp: quadratic-expansion distance can cancel slightly negative
            d2 = jnp.maximum(d2_ref[pl.ds(i, SUB), :], 0.0)     # (SUB, TG)
            aw = aw_ref[pl.ds(ia, SUB), :]                      # (SUB, R)
            bw = bw_ref[pl.ds(ia, SUB), :]
            p = jnp.zeros_like(d2)
            for r in range(aw.shape[1]):                        # static unroll
                p += aw[:, r:r + 1] * jnp.exp(bw[:, r:r + 1] * d2)
            acc_ref[...] += p                                   # dense (8,TG)
            return c

        lax.fori_loop(0, n_sub, sub_body, 0, unroll=True)
        return carry

    lax.fori_loop(0, n_blk, blk_body, 0)
    # single cross-sublane (atom) reduce + single (1, TG) store per tile
    out_ref[...] = jnp.sum(acc_ref[...], axis=0, keepdims=True)


def _fourier_density_kernel(xaug_ref, onehot_ref, a_ref, b_ref, faug_ref,
                            re_ref, im_ref,
                            racc_ref, iacc_ref, form_ref, theta_ref, fa_ref):
    # xaug: (Ap, NC) full    onehot: (Ap, E_PAD) full   a/b: (E_PAD, R) full
    # faug: (NC, TG) tile; rows 0..2 = -2*pi*f, row 3 = |f|^2
    # re/im: (1, TG) outputs
    # racc/iacc: (SUB, TG)   form: (E_PAD, TG)   theta/fa: (TA, TG) scratch
    ta = theta_ref.shape[0]
    n_blk = xaug_ref.shape[0] // ta
    n_sub = ta // SUB

    racc_ref[...] = jnp.zeros_like(racc_ref)
    iacc_ref[...] = jnp.zeros_like(iacc_ref)

    # Element-type form factors: E*R exps per grid tile (not per atom).
    fn2 = faug_ref[3:4, :]                                      # (1, TG)
    a_tab = a_ref[...]
    b_tab = b_ref[...]
    form = jnp.zeros((a_tab.shape[0], fn2.shape[1]), jnp.float32)
    for r in range(a_tab.shape[1]):                             # static unroll
        form += a_tab[:, r:r + 1] * jnp.exp(-b_tab[:, r:r + 1] * fn2)
    form_ref[...] = form

    def blk_body(b, carry):
        a0 = pl.multiple_of(b * ta, SUB)
        # theta[a, t] = -2*pi * x_a . f_t   (one batched MXU matmul per block)
        theta_ref[...] = jnp.dot(xaug_ref[pl.ds(a0, ta), :], faug_ref[...],
                                 preferred_element_type=jnp.float32,
                                 precision=_HIGHEST)
        # per-atom form factor = one-hot(element) @ per-element form factor
        fa_ref[...] = jnp.dot(onehot_ref[pl.ds(a0, ta), :], form_ref[...],
                              preferred_element_type=jnp.float32,
                              precision=_HIGHEST)

        def sub_body(s, c):
            i = pl.multiple_of(s * SUB, SUB)
            th = theta_ref[pl.ds(i, SUB), :]                    # (SUB, TG)
            fa = fa_ref[pl.ds(i, SUB), :]
            racc_ref[...] += fa * jnp.cos(th)
            iacc_ref[...] += fa * jnp.sin(th)
            return c

        lax.fori_loop(0, n_sub, sub_body, 0, unroll=True)
        return carry

    lax.fori_loop(0, n_blk, blk_body, 0)
    re_ref[...] = jnp.sum(racc_ref[...], axis=0, keepdims=True)
    im_ref[...] = jnp.sum(iacc_ref[...], axis=0, keepdims=True)


def _real_density_call(gaug, xaug, aw, bw, ta_block):
    Gp = gaug.shape[1]
    Ap = xaug.shape[0]
    nr = aw.shape[1]
    out = pl.pallas_call(
        _real_density_kernel,
        out_shape=jax.ShapeDtypeStruct((1, Gp), jnp.float32),
        grid=(Gp // TG,),
        in_specs=[
            pl.BlockSpec((Ap, NC), lambda gi: (0, 0)),    # xaug (untiled)
            pl.BlockSpec((Ap, nr), lambda gi: (0, 0)),    # aw   (untiled)
            pl.BlockSpec((Ap, nr), lambda gi: (0, 0)),    # bw   (untiled)
            pl.BlockSpec((NC, TG), lambda gi: (0, gi)),   # gaug tile
        ],
        out_specs=pl.BlockSpec((1, TG), lambda gi: (0, gi)),
        scratch_shapes=[pltpu.VMEM((SUB, TG), jnp.float32),
                        pltpu.VMEM((ta_block, TG), jnp.float32)],
        compiler_params=pltpu.CompilerParams(
            dimension_semantics=("parallel",)),
    )(xaug, aw, bw, gaug)
    return out[0]


def _fourier_density_call(faug, xaug, onehot, a_tab, b_tab, ta_block):
    Fp = faug.shape[1]
    Ap = xaug.shape[0]
    nr = a_tab.shape[1]
    re, im = pl.pallas_call(
        _fourier_density_kernel,
        out_shape=(jax.ShapeDtypeStruct((1, Fp), jnp.float32),
                   jax.ShapeDtypeStruct((1, Fp), jnp.float32)),
        grid=(Fp // TG,),
        in_specs=[
            pl.BlockSpec((Ap, NC), lambda gi: (0, 0)),        # xaug (untiled)
            pl.BlockSpec((Ap, E_PAD), lambda gi: (0, 0)),     # onehot
            pl.BlockSpec((E_PAD, nr), lambda gi: (0, 0)),     # a table
            pl.BlockSpec((E_PAD, nr), lambda gi: (0, 0)),     # b table
            pl.BlockSpec((NC, TG), lambda gi: (0, gi)),       # faug tile
        ],
        out_specs=(pl.BlockSpec((1, TG), lambda gi: (0, gi)),
                   pl.BlockSpec((1, TG), lambda gi: (0, gi))),
        scratch_shapes=[pltpu.VMEM((SUB, TG), jnp.float32),
                        pltpu.VMEM((SUB, TG), jnp.float32),
                        pltpu.VMEM((E_PAD, TG), jnp.float32),
                        pltpu.VMEM((ta_block, TG), jnp.float32),
                        pltpu.VMEM((ta_block, TG), jnp.float32)],
        compiler_params=pltpu.CompilerParams(
            dimension_semantics=("parallel",)),
    )(xaug, onehot, a_tab, b_tab, faug)
    return re[0], im[0]


def _atom_padding(n_atoms):
    """Pad atoms to a multiple of SUB and pick the in-kernel matmul block."""
    ap8 = _round_up(max(n_atoms, 1), SUB)
    ta_block = min(TA_MAX, ap8)
    ap = _round_up(ap8, ta_block)
    return ap, ta_block


# ----------------------------------------------------------------------------
# DensityCalculator (JAX/Pallas port)
# ----------------------------------------------------------------------------
class DensityCalculator:
    def __init__(self, nx, ny, nz, spacing, origin, center_shift,
                 resolution=2.0, em=False):
        self.nx, self.ny, self.nz = nx, ny, nz
        self.spacing = spacing
        self.em = em
        self.pi2 = math.pi ** 2
        self._range = 5 if em else 6
        self.sf = ATOM_STRUCTURE_FACTORS
        self.element_symbols = ATOMIC_NUM_TO_ELEMENT
        self._setup_coeffs()
        self._setup_real_grid(np.asarray(origin, np.float64),
                              np.asarray(center_shift, np.float64))
        self._setup_fourier_grid()
        self.set_filter_and_mask(resolution)

    # -------------------------- setup (host / numpy) -----------------------
    def _setup_coeffs(self):
        a_t = np.zeros((E_PAD, self._range), np.float32)
        b_t = np.zeros((E_PAD, self._range), np.float32)
        aw_t = np.zeros((E_PAD, self._range), np.float32)
        bw_t = np.zeros((E_PAD, self._range), np.float32)
        for idx, e in enumerate(self.element_symbols[1:], start=1):
            a = np.asarray(self.sf[e][0][:self._range], np.float64)
            b = np.asarray(self.sf[e][1][:self._range], np.float64)
            bw = np.where(b > 1e-4, -self.pi2 / b, 0.0)
            aw = a * (-bw / math.pi) ** 1.5
            a_t[idx], b_t[idx], aw_t[idx], bw_t[idx] = a, b, aw, bw
        self.a_table = jnp.asarray(a_t)      # (E_PAD, R)
        self.b_table = jnp.asarray(b_t)
        self.aw_table = jnp.asarray(aw_t)
        self.bw_table = jnp.asarray(bw_t)

    def _setup_real_grid(self, origin, center_shift):
        o = origin - center_shift
        x = o[0] + self.spacing[0] * np.arange(self.nx)
        y = o[1] + self.spacing[1] * np.arange(self.ny)
        z = o[2] + self.spacing[2] * np.arange(self.nz)
        gx, gy, gz = np.meshgrid(x, y, z, indexing="ij")
        flat = np.stack([gx, gy, gz], axis=-1).reshape(-1, 3)      # (G, 3) f64
        self.real_grid_flat = flat                                 # for refs
        G = flat.shape[0]
        self._n_real = G
        # center coordinates -> better conditioning of |x|^2+|g|^2-2x.g
        self._grid_center = flat.mean(axis=0)
        gc = flat - self._grid_center
        Gp = _round_up(G, TG)
        gaug = np.zeros((NC, Gp), np.float32)
        gaug[0:3, :G] = -2.0 * gc.T
        gaug[3, :G] = np.sum(gc * gc, axis=1)
        gaug[4, :G] = 1.0
        self.real_gaug = jnp.asarray(gaug)                         # (NC, Gp)

    def _setup_fourier_grid(self):
        fx = np.fft.fftshift(np.fft.fftfreq(self.nx, self.spacing[0]))
        fy = np.fft.fftshift(np.fft.fftfreq(self.ny, self.spacing[1]))
        fz = np.fft.fftshift(np.fft.fftfreq(self.nz, self.spacing[2]))
        fxx, fyy, fzz = np.meshgrid(fx, fy, fz, indexing="ij")
        freq = np.stack([fxx, fyy, fzz], axis=-1)                  # f64
        self.freq_grid = freq
        self.freq_norm = np.linalg.norm(freq, axis=-1)
        flat = freq.reshape(-1, 3)
        F = flat.shape[0]
        self._n_freq = F
        Fp = _round_up(F, TG)
        faug = np.zeros((NC, Fp), np.float32)
        faug[0:3, :F] = (-2.0 * np.pi) * flat.T
        faug[3, :F] = np.sum(flat * flat, axis=1)                  # |f|^2
        self.freq_faug = jnp.asarray(faug)                         # (NC, Fp)

    def _resolution_filter(self, resolution=2.0):
        if resolution <= 0:
            raise ValueError("Resolution must be greater than 0")
        cutoff = 1.0 / resolution
        nyquist = [1.0 / (2.0 * s) for s in self.spacing]
        if any(cutoff > nq for nq in nyquist):
            warnings.warn("Cutoff radius exceeds the Nyquist frequency.")
        mask = self.freq_norm < cutoff
        filt = np.zeros_like(self.freq_norm, dtype=np.float32)
        inside = self.freq_norm <= cutoff
        filt[inside] = 0.54 + 0.46 * np.cos(np.pi * self.freq_norm[inside] / cutoff)
        return filt, mask

    def set_filter_and_mask(self, resolution=2.0):
        self.filter, self.mask = self._resolution_filter(resolution)
        self.mask_idx = np.nonzero(self.mask.reshape(-1))[0]

    # -------------------------- hot paths (Pallas) --------------------------
    def compute_density_real(self, X, elements):
        X = jnp.asarray(X, jnp.float32)
        A = X.shape[0]
        Ap, ta_block = _atom_padding(A)
        aw = self.aw_table[elements]                               # (A, R)
        bw = self.bw_table[elements]
        Xc = X - jnp.asarray(self._grid_center, jnp.float32)
        xaug = jnp.zeros((Ap, NC), jnp.float32)
        xaug = xaug.at[:A, 0:3].set(Xc)
        xaug = xaug.at[:A, 3].set(1.0)
        xaug = xaug.at[:A, 4].set(jnp.sum(Xc * Xc, axis=1))
        awp = jnp.zeros((Ap, aw.shape[1]), jnp.float32).at[:A].set(aw)
        bwp = jnp.zeros((Ap, bw.shape[1]), jnp.float32).at[:A].set(bw)
        dens = _real_density_call(self.real_gaug, xaug, awp, bwp, ta_block)
        return dens[: self._n_real].reshape(self.nx, self.ny, self.nz)

    def compute_density_fourier(self, X, elements):
        X = jnp.asarray(X, jnp.float32)
        A = X.shape[0]
        Ap, ta_block = _atom_padding(A)
        xaug = jnp.zeros((Ap, NC), jnp.float32).at[:A, 0:3].set(X)
        onehot = jnp.zeros((Ap, E_PAD), jnp.float32)
        onehot = onehot.at[:A].set(
            jax.nn.one_hot(elements, E_PAD, dtype=jnp.float32))
        re, im = _fourier_density_call(self.freq_faug, xaug, onehot,
                                       self.a_table, self.b_table, ta_block)
        f = (re[: self._n_freq].astype(jnp.complex64)
             + 1j * im[: self._n_freq].astype(jnp.complex64))
        return f.reshape(self.nx, self.ny, self.nz)

    # -------------------------- filter / forward ----------------------------
    def apply_filter_and_mask(self, f_density, shape_back=False):
        if self.filter is None:
            raise ValueError("Filter not set. Run set_filter_and_mask() first.")
        f_density = f_density * jnp.asarray(self.filter, jnp.float32)
        if shape_back:
            idx = np.nonzero(self.mask)
            mins = [int(i.min()) for i in idx]
            maxs = [int(i.max()) for i in idx]
            return f_density[mins[0]:maxs[0] + 1,
                             mins[1]:maxs[1] + 1,
                             mins[2]:maxs[2] + 1]
        return f_density.reshape(-1)[self.mask_idx]

    def forward(self, X, elements, resolution=2.0, real=False,
                to_normalize=False):
        if resolution <= 0.0:
            raise ValueError("Resolution must be greater than 0")
        self.set_filter_and_mask(resolution)
        if real:
            density = self.compute_density_real(X, elements)
            return normalize(density) if to_normalize else density
        f_density = self.compute_density_fourier(X, elements)
        f_density = self.apply_filter_and_mask(f_density)
        return normalize(f_density) if to_normalize else f_density


# ----------------------------------------------------------------------------
# float64 numpy references (independent formulation, for correctness check)
# ----------------------------------------------------------------------------
def _np_normalize(t):
    return (t - t.mean()) / (t.std() + 1e-8)


def _ref_real_np(calc, X, elements):
    X = np.asarray(X, np.float64)
    el = np.asarray(elements)
    aw = np.asarray(calc.aw_table, np.float64)[el]
    bw = np.asarray(calc.bw_table, np.float64)[el]
    g = np.asarray(calc.real_grid_flat, np.float64)                # (G, 3)
    d2 = ((g[:, None, :] - X[None, :, :]) ** 2).sum(-1)            # (G, A)
    dens = (aw[None] * np.exp(bw[None] * d2[..., None])).sum((-1, -2))
    return dens.reshape(calc.nx, calc.ny, calc.nz)


def _ref_fourier_np(calc, X, elements):
    X = np.asarray(X, np.float64)
    el = np.asarray(elements)
    a = np.asarray(calc.a_table, np.float64)[el]
    b = np.asarray(calc.b_table, np.float64)[el]
    freq = calc.freq_grid.reshape(-1, 3).astype(np.float64)
    fn2 = (calc.freq_norm.reshape(-1).astype(np.float64)) ** 2
    theta = -2.0 * np.pi * freq @ X.T                              # (F, A)
    form = (a[None] * np.exp(-b[None] * fn2[:, None, None])).sum(-1)
    f = (form * np.exp(1j * theta)).sum(-1)
    f = f.reshape(calc.nx, calc.ny, calc.nz) * calc.filter
    return f.reshape(-1)[calc.mask_idx]


if __name__ == "__main__":
    key = jax.random.PRNGKey(0)
    nx = ny = nz = 12        # G = 1728 -> padded to 2048 (exercises tail path)
    calc = DensityCalculator(nx, ny, nz,
                             spacing=(1.0, 1.0, 1.0),
                             origin=(0.0, 0.0, 0.0),
                             center_shift=(0.0, 0.0, 0.0),
                             resolution=2.0, em=False)

    n_atoms = 10             # -> padded to 16 atoms = 2 in-kernel sub-chunks
    kx, ke = jax.random.split(key)
    X = jax.random.uniform(kx, (n_atoms, 3), minval=1.0, maxval=6.0,
                           dtype=jnp.float32)
    elements = jax.random.randint(ke, (n_atoms,), 1,
                                  len(ATOMIC_NUM_TO_ELEMENT)).astype(jnp.int32)

    # real-space density (normalized) and masked Fourier coefficients
    dens_real = calc.forward(X, elements, resolution=2.0, real=True,
                             to_normalize=True)
    f_dens = calc.forward(X, elements, resolution=2.0, real=False,
                          to_normalize=False)
    jax.block_until_ready(dens_real)
    jax.block_until_ready(f_dens)

    # correctness vs float64 numpy references.  Real-space tolerance accounts
    # for the MXU quadratic-expansion distance (same numerics as torch.cdist
    # mm mode) in f32; d2 is clamped >= 0 in-kernel.
    dens_ref = _np_normalize(_ref_real_np(calc, X, elements))
    f_ref = _ref_fourier_np(calc, X, elements)
    assert np.allclose(np.asarray(dens_real), dens_ref,
                       rtol=2e-3, atol=2e-3), \
        float(np.max(np.abs(np.asarray(dens_real) - dens_ref)))
    assert np.allclose(np.asarray(f_dens), f_ref,
                       rtol=1e-3, atol=2e-3), \
        float(np.max(np.abs(np.asarray(f_dens) - f_ref)))

    print("KERNEL_OK")
</pallas_src>

<mosaic_0001>
module attributes {stable_mosaic.version = 11 : i64} {
  func.func @_real_density_kernel(%arg0: i32, %arg1: memref<16x8xf32, #tpu.memory_space<vmem>>, %arg2: memref<16x6xf32, #tpu.memory_space<vmem>>, %arg3: memref<16x6xf32, #tpu.memory_space<vmem>>, %arg4: memref<8x1024xf32, #tpu.memory_space<vmem>>, %arg5: memref<1x1024xf32, #tpu.memory_space<vmem>>, %arg6: memref<8x1024xf32, #tpu.memory_space<vmem>>, %arg7: memref<16x1024xf32, #tpu.memory_space<vmem>>) attributes {dimension_semantics = [#tpu.dimension_semantics<parallel>], iteration_bounds = array<i64: 2>, scalar_prefetch = 0 : i64, scratch_operands = 2 : i64, tpu.core_type = #tpu.core_type<tc>, window_params = [{pipeline_mode = #tpu.pipeline_mode<synchronous>, transform_indices = @transform_0, window_bounds = array<i64: 16, 8>}, {pipeline_mode = #tpu.pipeline_mode<synchronous>, transform_indices = @transform_1, window_bounds = array<i64: 16, 6>}, {pipeline_mode = #tpu.pipeline_mode<synchronous>, transform_indices = @transform_2, window_bounds = array<i64: 16, 6>}, {transform_indices = @transform_3, window_bounds = array<i64: 8, 1024>}, {transform_indices = @transform_4, window_bounds = array<i64: 1, 1024>}]} {
    %cst = arith.constant 0.000000e+00 : f32
    %0 = vector.broadcast %cst : f32 to vector<8x1024xf32>
    %c0 = arith.constant 0 : index
    %c0_0 = arith.constant 0 : index
    %1 = vector.load %arg6[%c0, %c0_0] : memref<8x1024xf32, #tpu.memory_space<vmem>>, vector<8x1024xf32>
    tpu.vector_store %arg6[%c0, %c0_0], %0 {strides = array<i32>} : memref<8x1024xf32, #tpu.memory_space<vmem>>, vector<8x1024xf32>,
    %c0_i32 = arith.constant 0 : i32
    %c16_i32 = arith.constant 16 : i32
    %2 = arith.muli %c0_i32, %c16_i32 : i32
    %3 = tpu.assume_multiple %2, 8 : i32
    %4 = arith.index_cast %3 : i32 to index
    %c0_1 = arith.constant 0 : index
    %5 = vector.load %arg1[%4, %c0_1] : memref<16x8xf32, #tpu.memory_space<vmem>>, vector<16x8xf32>
    %c0_2 = arith.constant 0 : index
    %c0_3 = arith.constant 0 : index
    %6 = vector.load %arg4[%c0_2, %c0_3] : memref<8x1024xf32, #tpu.memory_space<vmem>>, vector<8x1024xf32>
    %cst_4 = arith.constant dense<0.000000e+00> : vector<16x1024xf32>
    %7 = tpu.matmul %5, %6, %cst_4 {dimension_numbers = #tpu.dot_dimension_numbers<[1], [0], [0], [1], [0, 0, 1, 1], [], []>, precision = #tpu.contract_precision<fp32>} : vector<16x8xf32>, vector<8x1024xf32>, vector<16x1024xf32> -> vector<16x1024xf32>
    %c0_5 = arith.constant 0 : index
    %c0_6 = arith.constant 0 : index
    %8 = vector.load %arg7[%c0_5, %c0_6] : memref<16x1024xf32, #tpu.memory_space<vmem>>, vector<16x1024xf32>
    tpu.vector_store %arg7[%c0_5, %c0_6], %7 {strides = array<i32>} : memref<16x1024xf32, #tpu.memory_space<vmem>>, vector<16x1024xf32>,
    %c0_i32_7 = arith.constant 0 : i32
    %c8_i32 = arith.constant 8 : i32
    %9 = arith.muli %c0_i32_7, %c8_i32 : i32
    %10 = tpu.assume_multiple %9, 8 : i32
    %11 = arith.addi %3, %10 : i32
    %12 = tpu.assume_multiple %11, 8 : i32
    %13 = arith.index_cast %10 : i32 to index
    %c0_8 = arith.constant 0 : index
    %14 = vector.load %arg7[%13, %c0_8] : memref<16x1024xf32, #tpu.memory_space<vmem>>, vector<8x1024xf32>
    %cst_9 = arith.constant 0.000000e+00 : f32
    %15 = vector.broadcast %cst_9 : f32 to vector<8x1024xf32>
    %16 = arith.maximumf %14, %15 : vector<8x1024xf32>
    %17 = arith.index_cast %12 : i32 to index
    %c0_10 = arith.constant 0 : index
    %18 = vector.load %arg2[%17, %c0_10] : memref<16x6xf32, #tpu.memory_space<vmem>>, vector<8x6xf32>
    %19 = arith.index_cast %12 : i32 to index
    %c0_11 = arith.constant 0 : index
    %20 = vector.load %arg3[%19, %c0_11] : memref<16x6xf32, #tpu.memory_space<vmem>>, vector<8x6xf32>
    %cst_12 = arith.constant 0.000000e+00 : f32
    %21 = vector.broadcast %cst_12 : f32 to vector<8x1024xf32>
    %22 = vector.extract_strided_slice %18 {offsets = [0, 0], sizes = [8, 1], strides = [1, 1]} : vector<8x6xf32> to vector<8x1xf32>
    %23 = vector.extract_strided_slice %20 {offsets = [0, 0], sizes = [8, 1], strides = [1, 1]} : vector<8x6xf32> to vector<8x1xf32>
    %24 = vector.broadcast %23 : vector<8x1xf32> to vector<8x1024xf32>
    %25 = arith.mulf %24, %16 : vector<8x1024xf32>
    %26 = math.exp %25 : vector<8x1024xf32>
    %27 = vector.broadcast %22 : vector<8x1xf32> to vector<8x1024xf32>
    %28 = arith.mulf %27, %26 : vector<8x1024xf32>
    %29 = arith.addf %21, %28 : vector<8x1024xf32>
    %30 = vector.extract_strided_slice %18 {offsets = [0, 1], sizes = [8, 1], strides = [1, 1]} : vector<8x6xf32> to vector<8x1xf32>
    %31 = vector.extract_strided_slice %20 {offsets = [0, 1], sizes = [8, 1], strides = [1, 1]} : vector<8x6xf32> to vector<8x1xf32>
    %32 = vector.broadcast %31 : vector<8x1xf32> to vector<8x1024xf32>
    %33 = arith.mulf %32, %16 : vector<8x1024xf32>
    %34 = math.exp %33 : vector<8x1024xf32>
    %35 = vector.broadcast %30 : vector<8x1xf32> to vector<8x1024xf32>
    %36 = arith.mulf %35, %34 : vector<8x1024xf32>
    %37 = arith.addf %29, %36 : vector<8x1024xf32>
    %38 = vector.extract_strided_slice %18 {offsets = [0, 2], sizes = [8, 1], strides = [1, 1]} : vector<8x6xf32> to vector<8x1xf32>
    %39 = vector.extract_strided_slice %20 {offsets = [0, 2], sizes = [8, 1], strides = [1, 1]} : vector<8x6xf32> to vector<8x1xf32>
    %40 = vector.broadcast %39 : vector<8x1xf32> to vector<8x1024xf32>
    %41 = arith.mulf %40, %16 : vector<8x1024xf32>
    %42 = math.exp %41 : vector<8x1024xf32>
    %43 = vector.broadcast %38 : vector<8x1xf32> to vector<8x1024xf32>
    %44 = arith.mulf %43, %42 : vector<8x1024xf32>
    %45 = arith.addf %37, %44 : vector<8x1024xf32>
    %46 = vector.extract_strided_slice %18 {offsets = [0, 3], sizes = [8, 1], strides = [1, 1]} : vector<8x6xf32> to vector<8x1xf32>
    %47 = vector.extract_strided_slice %20 {offsets = [0, 3], sizes = [8, 1], strides = [1, 1]} : vector<8x6xf32> to vector<8x1xf32>
    %48 = vector.broadcast %47 : vector<8x1xf32> to vector<8x1024xf32>
    %49 = arith.mulf %48, %16 : vector<8x1024xf32>
    %50 = math.exp %49 : vector<8x1024xf32>
    %51 = vector.broadcast %46 : vector<8x1xf32> to vector<8x1024xf32>
    %52 = arith.mulf %51, %50 : vector<8x1024xf32>
    %53 = arith.addf %45, %52 : vector<8x1024xf32>
    %54 = vector.extract_strided_slice %18 {offsets = [0, 4], sizes = [8, 1], strides = [1, 1]} : vector<8x6xf32> to vector<8x1xf32>
    %55 = vector.extract_strided_slice %20 {offsets = [0, 4], sizes = [8, 1], strides = [1, 1]} : vector<8x6xf32> to vector<8x1xf32>
    %56 = vector.broadcast %55 : vector<8x1xf32> to vector<8x1024xf32>
    %57 = arith.mulf %56, %16 : vector<8x1024xf32>
    %58 = math.exp %57 : vector<8x1024xf32>
    %59 = vector.broadcast %54 : vector<8x1xf32> to vector<8x1024xf32>
    %60 = arith.mulf %59, %58 : vector<8x1024xf32>
    %61 = arith.addf %53, %60 : vector<8x1024xf32>
    %62 = vector.extract_strided_slice %18 {offsets = [0, 5], sizes = [8, 1], strides = [1, 1]} : vector<8x6xf32> to vector<8x1xf32>
    %63 = vector.extract_strided_slice %20 {offsets = [0, 5], sizes = [8, 1], strides = [1, 1]} : vector<8x6xf32> to vector<8x1xf32>
    %64 = vector.broadcast %63 : vector<8x1xf32> to vector<8x1024xf32>
    %65 = arith.mulf %64, %16 : vector<8x1024xf32>
    %66 = math.exp %65 : vector<8x1024xf32>
    %67 = vector.broadcast %62 : vector<8x1xf32> to vector<8x1024xf32>
    %68 = arith.mulf %67, %66 : vector<8x1024xf32>
    %69 = arith.addf %61, %68 : vector<8x1024xf32>
    %c0_13 = arith.constant 0 : index
    %c0_14 = arith.constant 0 : index
    %70 = vector.load %arg6[%c0_13, %c0_14] : memref<8x1024xf32, #tpu.memory_space<vmem>>, vector<8x1024xf32>
    %71 = arith.addf %70, %69 : vector<8x1024xf32>
    %c0_15 = arith.constant 0 : index
    %c0_16 = arith.constant 0 : index
    %72 = vector.load %arg6[%c0_15, %c0_16] : memref<8x1024xf32, #tpu.memory_space<vmem>>, vector<8x1024xf32>
    tpu.vector_store %arg6[%c0_15, %c0_16], %71 {strides = array<i32>} : memref<8x1024xf32, #tpu.memory_space<vmem>>, vector<8x1024xf32>,
    %c1_i32 = arith.constant 1 : i32
    %c8_i32_17 = arith.constant 8 : i32
    %73 = arith.muli %c1_i32, %c8_i32_17 : i32
    %74 = tpu.assume_multiple %73, 8 : i32
    %75 = arith.addi %3, %74 : i32
    %76 = tpu.assume_multiple %75, 8 : i32
    %77 = arith.index_cast %74 : i32 to index
    %c0_18 = arith.constant 0 : index
    %78 = vector.load %arg7[%77, %c0_18] : memref<16x1024xf32, #tpu.memory_space<vmem>>, vector<8x1024xf32>
    %cst_19 = arith.constant 0.000000e+00 : f32
    %79 = vector.broadcast %cst_19 : f32 to vector<8x1024xf32>
    %80 = arith.maximumf %78, %79 : vector<8x1024xf32>
    %81 = arith.index_cast %76 : i32 to index
    %c0_20 = arith.constant 0 : index
    %82 = vector.load %arg2[%81, %c0_20] : memref<16x6xf32, #tpu.memory_space<vmem>>, vector<8x6xf32>
    %83 = arith.index_cast %76 : i32 to index
    %c0_21 = arith.constant 0 : index
    %84 = vector.load %arg3[%83, %c0_21] : memref<16x6xf32, #tpu.memory_space<vmem>>, vector<8x6xf32>
    %cst_22 = arith.constant 0.000000e+00 : f32
    %85 = vector.broadcast %cst_22 : f32 to vector<8x1024xf32>
    %86 = vector.extract_strided_slice %82 {offsets = [0, 0], sizes = [8, 1], strides = [1, 1]} : vector<8x6xf32> to vector<8x1xf32>
    %87 = vector.extract_strided_slice %84 {offsets = [0, 0], sizes = [8, 1], strides = [1, 1]} : vector<8x6xf32> to vector<8x1xf32>
    %88 = vector.broadcast %87 : vector<8x1xf32> to vector<8x1024xf32>
    %89 = arith.mulf %88, %80 : vector<8x1024xf32>
    %90 = math.exp %89 : vector<8x1024xf32>
    %91 = vector.broadcast %86 : vector<8x1xf32> to vector<8x1024xf32>
    %92 = arith.mulf %91, %90 : vector<8x1024xf32>
    %93 = arith.addf %85, %92 : vector<8x1024xf32>
    %94 = vector.extract_strided_slice %82 {offsets = [0, 1], sizes = [8, 1], strides = [1, 1]} : vector<8x6xf32> to vector<8x1xf32>
    %95 = vector.extract_strided_slice %84 {offsets = [0, 1], sizes = [8, 1], strides = [1, 1]} : vector<8x6xf32> to vector<8x1xf32>
    %96 = vector.broadcast %95 : vector<8x1xf32> to vector<8x1024xf32>
    %97 = arith.mulf %96, %80 : vector<8x1024xf32>
    %98 = math.exp %97 : vector<8x1024xf32>
    %99 = vector.broadcast %94 : vector<8x1xf32> to vector<8x1024xf32>
    %100 = arith.mulf %99, %98 : vector<8x1024xf32>
    %101 = arith.addf %93, %100 : vector<8x1024xf32>
    %102 = vector.extract_strided_slice %82 {offsets = [0, 2], sizes = [8, 1], strides = [1, 1]} : vector<8x6xf32> to vector<8x1xf32>
    %103 = vector.extract_strided_slice %84 {offsets = [0, 2], sizes = [8, 1], strides = [1, 1]} : vector<8x6xf32> to vector<8x1xf32>
    %104 = vector.broadcast %103 : vector<8x1xf32> to vector<8x1024xf32>
    %105 = arith.mulf %104, %80 : vector<8x1024xf32>
    %106 = math.exp %105 : vector<8x1024xf32>
    %107 = vector.broadcast %102 : vector<8x1xf32> to vector<8x1024xf32>
    %108 = arith.mulf %107, %106 : vector<8x1024xf32>
    %109 = arith.addf %101, %108 : vector<8x1024xf32>
    %110 = vector.extract_strided_slice %82 {offsets = [0, 3], sizes = [8, 1], strides = [1, 1]} : vector<8x6xf32> to vector<8x1xf32>
    %111 = vector.extract_strided_slice %84 {offsets = [0, 3], sizes = [8, 1], strides = [1, 1]} : vector<8x6xf32> to vector<8x1xf32>
    %112 = vector.broadcast %111 : vector<8x1xf32> to vector<8x1024xf32>
    %113 = arith.mulf %112, %80 : vector<8x1024xf32>
    %114 = math.exp %113 : vector<8x1024xf32>
    %115 = vector.broadcast %110 : vector<8x1xf32> to vector<8x1024xf32>
    %116 = arith.mulf %115, %114 : vector<8x1024xf32>
    %117 = arith.addf %109, %116 : vector<8x1024xf32>
    %118 = vector.extract_strided_slice %82 {offsets = [0, 4], sizes = [8, 1], strides = [1, 1]} : vector<8x6xf32> to vector<8x1xf32>
    %119 = vector.extract_strided_slice %84 {offsets = [0, 4], sizes = [8, 1], strides = [1, 1]} : vector<8x6xf32> to vector<8x1xf32>
    %120 = vector.broadcast %119 : vector<8x1xf32> to vector<8x1024xf32>
    %121 = arith.mulf %120, %80 : vector<8x1024xf32>
    %122 = math.exp %121 : vector<8x1024xf32>
    %123 = vector.broadcast %118 : vector<8x1xf32> to vector<8x1024xf32>
    %124 = arith.mulf %123, %122 : vector<8x1024xf32>
    %125 = arith.addf %117, %124 : vector<8x1024xf32>
    %126 = vector.extract_strided_slice %82 {offsets = [0, 5], sizes = [8, 1], strides = [1, 1]} : vector<8x6xf32> to vector<8x1xf32>
    %127 = vector.extract_strided_slice %84 {offsets = [0, 5], sizes = [8, 1], strides = [1, 1]} : vector<8x6xf32> to vector<8x1xf32>
    %128 = vector.broadcast %127 : vector<8x1xf32> to vector<8x1024xf32>
    %129 = arith.mulf %128, %80 : vector<8x1024xf32>
    %130 = math.exp %129 : vector<8x1024xf32>
    %131 = vector.broadcast %126 : vector<8x1xf32> to vector<8x1024xf32>
    %132 = arith.mulf %131, %130 : vector<8x1024xf32>
    %133 = arith.addf %125, %132 : vector<8x1024xf32>
    %c0_23 = arith.constant 0 : index
    %c0_24 = arith.constant 0 : index
    %134 = vector.load %arg6[%c0_23, %c0_24] : memref<8x1024xf32, #tpu.memory_space<vmem>>, vector<8x1024xf32>
    %135 = arith.addf %134, %133 : vector<8x1024xf32>
    %c0_25 = arith.constant 0 : index
    %c0_26 = arith.constant 0 : index
    %136 = vector.load %arg6[%c0_25, %c0_26] : memref<8x1024xf32, #tpu.memory_space<vmem>>, vector<8x1024xf32>
    tpu.vector_store %arg6[%c0_25, %c0_26], %135 {strides = array<i32>} : memref<8x1024xf32, #tpu.memory_space<vmem>>, vector<8x1024xf32>,
    %c2_i32 = arith.constant 2 : i32
    %c1_i32_27 = arith.constant 1 : i32
    %c0_28 = arith.constant 0 : index
    %c0_29 = arith.constant 0 : index
    %137 = vector.load %arg6[%c0_28, %c0_29] : memref<8x1024xf32, #tpu.memory_space<vmem>>, vector<8x1024xf32>
    %cst_30 = arith.constant dense<0.000000e+00> : vector<1024xf32>
    %138 = vector.multi_reduction <add>, %137, %cst_30 [0] : vector<8x1024xf32> to vector<1024xf32>
    %139 = vector.shape_cast %138 : vector<1024xf32> to vector<1x1024xf32>
    %c0_31 = arith.constant 0 : index
    %c0_32 = arith.constant 0 : index
    %140 = vector.load %arg5[%c0_31, %c0_32] : memref<1x1024xf32, #tpu.memory_space<vmem>>, vector<1x1024xf32>
    tpu.vector_store %arg5[%c0_31, %c0_32], %139 {strides = array<i32>} : memref<1x1024xf32, #tpu.memory_space<vmem>>, vector<1x1024xf32>,
    return
  }
  func.func @transform_0(%arg0: i32) -> (i32, i32) {
    %c0_i32 = arith.constant 0 : i32
    %c0_i32_0 = arith.constant 0 : i32
    %c0_i32_1 = arith.constant 0 : i32
    return %c0_i32, %c0_i32_0 : i32, i32
  }
  func.func @transform_1(%arg0: i32) -> (i32, i32) {
    %c0_i32 = arith.constant 0 : i32
    %c0_i32_0 = arith.constant 0 : i32
    %c0_i32_1 = arith.constant 0 : i32
    return %c0_i32, %c0_i32_0 : i32, i32
  }
  func.func @transform_2(%arg0: i32) -> (i32, i32) {
    %c0_i32 = arith.constant 0 : i32
    %c0_i32_0 = arith.constant 0 : i32
    %c0_i32_1 = arith.constant 0 : i32
    return %c0_i32, %c0_i32_0 : i32, i32
  }
  func.func @transform_3(%arg0: i32) -> (i32, i32) {
    %c0_i32 = arith.constant 0 : i32
    %c0_i32_0 = arith.constant 0 : i32
    return %c0_i32, %arg0 : i32, i32
  }
  func.func @transform_4(%arg0: i32) -> (i32, i32) {
    %c0_i32 = arith.constant 0 : i32
    %c0_i32_0 = arith.constant 0 : i32
    return %c0_i32, %arg0 : i32, i32
  }
}

</mosaic_0001>

<llo_original>
// kernel: tpu_custom_call.1
$region0: #{tpu_custom_call.1}
  #allocation0 [shape = 'u32[]', space=smem, size = 0x4, offset = 0x4, fixed_abs, tag = 'smem constant byte address 0x4 - core index']
  #allocation1 [shape = 'u32[144,128]{1,0:T(1,128)}', space=vmem, size = 0x12000, scoped, tag = 'internal scratch']
  #allocation2 [shape = 'f32[8,1024]{1,0:T(8,128)}', space=vmem, size = 0x8000, scoped, tag = 'scratch operand']
  #allocation3 [shape = 'f32[16,1024]{1,0:T(8,128)}', space=vmem, size = 0x10000, scoped, tag = 'scratch operand']
  %s0 = inlined_call_operand.vmem [shape: f32[16,8], index: 0, kind: input, shape index: {}]
  %s1 = inlined_call_operand.vmem [shape: f32[16,6], index: 1, kind: input, shape index: {}]
  %s2 = inlined_call_operand.vmem [shape: f32[16,6], index: 2, kind: input, shape index: {}]
  %s3 = inlined_call_operand.hbm [shape: f32[8,2048], index: 3, kind: input, shape index: {}]
  %s4 = inlined_call_operand.hbm [shape: f32[1,2048], index: 4, kind: output, shape index: {}]
  %s5 = sld [smem:[#allocation0]]
  $region53: #{tpu_custom_call.1} parent=0
    _
  %s7 = ssub.s32 1, %s5
  %s8 = scalar_select 0, %s7, %s5
  $region1: #{tpu_custom_call.1} parent=0
    #allocation4 [shape = 'u8[65536]{0}', space=vmem, size = 0x10000, scoped, tag = 'input window, operand 3']
    #allocation5 [shape = 's32[2]{0}', space=sflag, size = 0x8, scoped, tag = 'scoped memory for tpu_custom_call.1']
    #allocation6 [shape = 's32[2]{0}', space=sflag, size = 0x8, scoped, tag = 'scoped memory for tpu_custom_call.1']
    #allocation7 [shape = 'u8[8192]{0}', space=vmem, size = 0x2000, scoped, tag = 'output window, operand 0']
    %9 = vsyncpa [#allocation5], 0
    %s10 = scalar_lea.sflag [#allocation5], 1
    %11 = vsyncpa %s10, 0
    %12 = vsyncpa [#allocation6], 0
    %s13 = scalar_lea.sflag [#allocation6], 1
    %14 = vsyncpa %s13, 0
    loop: start=0, step=1, limit=4
    $region2: #{tpu_custom_call.1} parent=1 // loop_pre_header
      _
    $region3: #{tpu_custom_call.1} parent=1 // loop_header
      %s16 = sphi 0, %s20
      %p17 = scmp.ge.s32.totalorder %s16, 4
      %s24 = sphi 0, %s24
      %s26 = sphi 0, %s24
      %s27 = sphi 0, %s26
      %s41 = sphi 0, %s27
      %s45 = sphi 0, %s45
      %s47 = sphi 0, %s45
      %s48 = sphi 0, %s47
      %s62 = sphi 0, %s48
      %s66 = sphi 0, %s66
      %s68 = sphi 0, %s66
      %s69 = sphi 0, %s68
      %s83 = sphi 0, %s69
      %s89 = sphi 0, %s91
      %s92 = sphi 0, %s89
      %s93 = sphi 0, %s92
      %s109 = sphi 0, %s93
      %s115 = sphi 0, %s117
      %s118 = sphi 0, %s115
      %s119 = sphi 0, %s118
      %s135 = sphi 0, %s119
    $region4: #{tpu_custom_call.1} parent=1 // loop_header_branch
      %19 = sbr.rel (%p17) target = $region8
    $region5: #{tpu_custom_call.1} parent=1 // loop_body
      %s21 = ssub.s32 %s16, 1
      %s22 = ssub.s32 %s16, 2
      %s23 = sadd.s32 %s16, 1
      %s25 = sadd.s32 %s24, 1
      %p28 = scmp.eq.s32.totalorder %s16, 1
      %p29 = scmp.ne.s32.totalorder %s24, %s26
      %p30 = scmp.eq.s32.totalorder %s16, 0
      %p31 = por %p29, %p30
      %p32 = scmp.ne.s32.totalorder %s24, %s26
      %p33 = scmp.eq.s32.totalorder %s21, 1
      %p34 = por %p32, %p33
      %p35 = scmp.ne.s32.totalorder %s26, %s27
      %p36 = scmp.eq.s32.totalorder %s21, 0
      %p37 = por %p35, %p36
      %p38 = scmp.ne.s32.totalorder %s26, %s27
      %p39 = scmp.eq.s32.totalorder %s22, 1
      %p40 = por %p38, %p39
      %p42 = scmp.ne.s32.totalorder %s27, %s41
      %p43 = scmp.eq.s32.totalorder %s22, 0
      %p44 = por %p42, %p43
      %s46 = sadd.s32 %s45, 1
      %p49 = scmp.eq.s32.totalorder %s16, 1
      %p50 = scmp.ne.s32.totalorder %s45, %s47
      %p51 = scmp.eq.s32.totalorder %s16, 0
      %p52 = por %p50, %p51
      %p53 = scmp.ne.s32.totalorder %s45, %s47
      %p54 = scmp.eq.s32.totalorder %s21, 1
      %p55 = por %p53, %p54
      %p56 = scmp.ne.s32.totalorder %s47, %s48
      %p57 = scmp.eq.s32.totalorder %s21, 0
      %p58 = por %p56, %p57
      %p59 = scmp.ne.s32.totalorder %s47, %s48
      %p60 = scmp.eq.s32.totalorder %s22, 1
      %p61 = por %p59, %p60
      %p63 = scmp.ne.s32.totalorder %s48, %s62
      %p64 = scmp.eq.s32.totalorder %s22, 0
      %p65 = por %p63, %p64
      %s67 = sadd.s32 %s66, 1
      %p70 = scmp.eq.s32.totalorder %s16, 1
      %p71 = scmp.ne.s32.totalorder %s66, %s68
      %p72 = scmp.eq.s32.totalorder %s16, 0
      %p73 = por %p71, %p72
      %p74 = scmp.ne.s32.totalorder %s66, %s68
      %p75 = scmp.eq.s32.totalorder %s21, 1
      %p76 = por %p74, %p75
      %p77 = scmp.ne.s32.totalorder %s68, %s69
      %p78 = scmp.eq.s32.totalorder %s21, 0
      %p79 = por %p77, %p78
      %p80 = scmp.ne.s32.totalorder %s68, %s69
      %p81 = scmp.eq.s32.totalorder %s22, 1
      %p82 = por %p80, %p81
      %p84 = scmp.ne.s32.totalorder %s69, %s83
      %p85 = scmp.eq.s32.totalorder %s22, 0
      %p86 = por %p84, %p85
      %s87 = ssub.s32 %s16, %s23
      %p88 = scmp.eq.s32.totalorder %s87, 0
      %s90 = sadd.s32 %s89, 1
      %s91 = scalar_select %p88, %s89, %s90
      %p94 = pneg %p88
      %p95 = scmp.eq.s32.totalorder %s16, 1
      %p96 = por %p94, %p95
      %p97 = scmp.ne.s32.totalorder %s89, %s92
      %p98 = scmp.eq.s32.totalorder %s16, 0
      %p99 = por %p97, %p98
      %p100 = scmp.ne.s32.totalorder %s89, %s92
      %p101 = scmp.eq.s32.totalorder %s21, 1
      %p102 = por %p100, %p101
      %p103 = scmp.ne.s32.totalorder %s92, %s93
      %p104 = scmp.eq.s32.totalorder %s21, 0
      %p105 = por %p103, %p104
      %p106 = scmp.ne.s32.totalorder %s92, %s93
      %p107 = scmp.eq.s32.totalorder %s22, 1
      %p108 = por %p106, %p107
      %p110 = scmp.ne.s32.totalorder %s93, %s109
      %p111 = scmp.eq.s32.totalorder %s22, 0
      %p112 = por %p110, %p111
      %s113 = ssub.s32 %s16, %s23
      %p114 = scmp.eq.s32.totalorder %s113, 0
      %s116 = sadd.s32 %s115, 1
      %s117 = scalar_select %p114, %s115, %s116
      %p120 = pneg %p114
      %p121 = scmp.eq.s32.totalorder %s16, 1
      %p122 = por %p120, %p121
      %p123 = scmp.ne.s32.totalorder %s115, %s118
      %p124 = scmp.eq.s32.totalorder %s16, 0
      %p125 = por %p123, %p124
      %p126 = scmp.ne.s32.totalorder %s115, %s118
      %p127 = scmp.eq.s32.totalorder %s21, 1
      %p128 = por %p126, %p127
      %p129 = scmp.ne.s32.totalorder %s118, %s119
      %p130 = scmp.eq.s32.totalorder %s21, 0
      %p131 = por %p129, %p130
      %p132 = scmp.ne.s32.totalorder %s118, %s119
      %p133 = scmp.eq.s32.totalorder %s22, 1
      %p134 = por %p132, %p133
      %p136 = scmp.ne.s32.totalorder %s119, %s135
      %p137 = scmp.eq.s32.totalorder %s22, 0
      %p138 = por %p136, %p137
      %p139 = scmp.le.s32.totalorder 1, %s16
      %p140 = scmp.lt.s32.totalorder %s16, 3
      %p141 = pnand %p139, %p140
      %p142 = pneg %p141
      // Predicated region
      $region9: #{tpu_custom_call.1} parent=5 // pred_check
        _
      $region10: #{tpu_custom_call.1} parent=5 // pred_check_branch
        %144 = sbr.rel (%p141) target = $region12
      $region11: #{tpu_custom_call.1} parent=5 // pred_region
        %s145 = ssub.s32 %s16, 1
        // Predicated region
        $region13: #{tpu_custom_call.1} parent=11 // pred_check
          %p146 = pneg %p37
        $region14: #{tpu_custom_call.1} parent=11 // pred_check_branch
          %148 = sbr.rel (%p146) target = $region16
        $region15: #{tpu_custom_call.1} parent=11 // pred_region
          _
        $region16: #{tpu_custom_call.1} parent=11 // pred_fallthru
          _
        // Predicated region
        $region17: #{tpu_custom_call.1} parent=11 // pred_check
          %p149 = pneg %p58
        $region18: #{tpu_custom_call.1} parent=11 // pred_check_branch
          %151 = sbr.rel (%p149) target = $region20
        $region19: #{tpu_custom_call.1} parent=11 // pred_region
          _
        $region20: #{tpu_custom_call.1} parent=11 // pred_fallthru
          _
        // Predicated region
        $region21: #{tpu_custom_call.1} parent=11 // pred_check
          %p152 = pneg %p79
        $region22: #{tpu_custom_call.1} parent=11 // pred_check_branch
          %154 = sbr.rel (%p152) target = $region24
        $region23: #{tpu_custom_call.1} parent=11 // pred_region
          _
        $region24: #{tpu_custom_call.1} parent=11 // pred_fallthru
          _
      $region12: #{tpu_custom_call.1} parent=5 // pred_fallthru
        _
      %p155 = scmp.lt.s32.totalorder %s16, 2
      // Predicated region
      $region25: #{tpu_custom_call.1} parent=5 // pred_check
        %p156 = pneg %p155
      $region26: #{tpu_custom_call.1} parent=5 // pred_check_branch
        %158 = sbr.rel (%p156) target = $region28
      $region27: #{tpu_custom_call.1} parent=5 // pred_region
        // Predicated region
        $region29: #{tpu_custom_call.1} parent=27 // pred_check
          %p159 = pneg %p99
        $region30: #{tpu_custom_call.1} parent=27 // pred_check_branch
          %161 = sbr.rel (%p159) target = $region32
        $region31: #{tpu_custom_call.1} parent=27 // pred_region
          %s162 = sand.u32 %s89, 1
          %s163 = scalar_lea.sflag [#allocation5], %s162
          %s164 = sand.u32 %s89, 1
          %s165 = smul.addr %s164, 64
          %s166 = scalar_lea.vmem [#allocation4], %s165
          %s167 = smul.u32 8, %s16
          %s169 = ssub.s32 1024, 1024
          %170 = vsyncadd %s163, %s169
          %s171 = smul.addr %s167, 128
          %s172 = scalar_lea.hbm %s3, %s171
          %s174 = sshll.u32 %s166, 4
          %s175 = int_to_ptr.vmem [resolvable:$true] %s174
          %177 = dma.hbm_to_vmem [thread:$0]  %s172, 1024, %s175, %s163
        $region32: #{tpu_custom_call.1} parent=27 // pred_fallthru
          _
      $region28: #{tpu_custom_call.1} parent=5 // pred_fallthru
        _
      %p178 = scmp.le.s32.totalorder 1, %s16
      %p179 = scmp.lt.s32.totalorder %s16, 3
      %p180 = pnand %p178, %p179
      %p181 = pneg %p180
      // Predicated region
      $region33: #{tpu_custom_call.1} parent=5 // pred_check
        _
      $region34: #{tpu_custom_call.1} parent=5 // pred_check_branch
        %183 = sbr.rel (%p180) target = $region36
      $region35: #{tpu_custom_call.1} parent=5 // pred_region
        %s184 = ssub.s32 %s16, 1
        %s185 = sand.u32 %s92, 1
        %s186 = scalar_lea.sflag [#allocation5], %s185
        %s187 = sand.u32 %s92, 1
        %s188 = smul.addr %s187, 64
        %s189 = scalar_lea.vmem [#allocation4], %s188
        // Predicated region
        $region37: #{tpu_custom_call.1} parent=35 // pred_check
          %p190 = pneg %p105
        $region38: #{tpu_custom_call.1} parent=35 // pred_check_branch
          %192 = sbr.rel (%p190) target = $region40
        $region39: #{tpu_custom_call.1} parent=35 // pred_region
          %193 = dma.done %s186, 1024
        $region40: #{tpu_custom_call.1} parent=35 // pred_fallthru
          _
        %p194 = pneg %p37
        %p195 = pneg %p34
        %p196 = pneg %p58
        %p197 = pneg %p55
        %p198 = pneg %p79
        %p199 = pneg %p76
        %s200 = sand.u32 %s92, 1
        %s201 = scalar_lea.sflag [#allocation5], %s200
        %s202 = sand.u32 %s92, 1
        %s203 = smul.addr %s202, 64
        %s204 = scalar_lea.vmem [#allocation4], %s203
        %p205 = pneg %p105
        %p206 = pneg %p102
        %p207 = pneg %p131
        %p208 = pneg %p128
        %s209 = sand.u32 %s118, 1
        %s210 = scalar_lea.sflag [#allocation6], %s209
        %s211 = sand.u32 %s118, 1
        %s212 = smul.addr %s211, 8
        %s213 = scalar_lea.vmem [#allocation7], %s212
        %s214 = smul.u32 8, %s21
        %s215 = smul.u32 8, %s21
        %216 = vst [vmem:[#allocation2] sm:$0xff] 0.0
        %217 = vst [vmem:[#allocation2 + $0x8] sm:$0xff] 0.0
        %218 = vst [vmem:[#allocation2 + $0x10] sm:$0xff] 0.0
        %219 = vst [vmem:[#allocation2 + $0x18] sm:$0xff] 0.0
        %220 = vst [vmem:[#allocation2 + $0x20] sm:$0xff] 0.0
        %221 = vst [vmem:[#allocation2 + $0x28] sm:$0xff] 0.0
        %222 = vst [vmem:[#allocation2 + $0x30] sm:$0xff] 0.0
        %223 = vst [vmem:[#allocation2 + $0x38] sm:$0xff] 0.0
        %v224 = vld [vmem:[%s0] sm:$0xff]
        %v225 = vld [vmem:[%s0 + $0x8] sm:$0xff]
        %v226 = vld [vmem:[%s189] sm:$0xff]
        %v227 = vld [vmem:[%s189 + $0x8] sm:$0xff]
        %v228 = vld [vmem:[%s189 + $0x10] sm:$0xff]
        %v229 = vld [vmem:[%s189 + $0x18] sm:$0xff]
        %v230 = vld [vmem:[%s189 + $0x20] sm:$0xff]
        %v231 = vld [vmem:[%s189 + $0x28] sm:$0xff]
        %v232 = vld [vmem:[%s189 + $0x30] sm:$0xff]
        %v233 = vld [vmem:[%s189 + $0x38] sm:$0xff]
        %vm234 = vcmask 64512
        %v236 = vsel %vm234, %v224, 0
        %v239 = vsel %vm234, %v225, 0
        %v241 = vand.u32 %v227, 4294901760
        %242 = vmatprep.subr.mxu0 %v241
        %v243 = vand.u32 %v226, 4294901760
        %244 = vmatpush1.msra.mxu0 %v243
        %245 = vmatprep.subr.mxu0 0.0
        %246 = vmatpush1.msra.mxu0 0.0
        %247 = vmatprep.subr.mxu0 0.0
        %248 = vmatpush1.msra.mxu0 0.0
        %249 = vmatprep.subr.mxu0 0.0
        %250 = vmatpush1.msra.mxu0 0.0
        %251 = vmatprep.subr.mxu0 0.0
        %252 = vmatpush1.msra.mxu0 0.0
        %253 = vmatprep.subr.mxu0 0.0
        %254 = vmatpush1.msra.mxu0 0.0
        %255 = vmatprep.subr.mxu0 0.0
        %256 = vmatpush1.msra.mxu0 0.0
        %257 = vmatprep.subr.mxu0 0.0
        %258 = vmatpush1.msra.mxu0 0.0
        %259 = vmatprep.subr.mxu0 0.0
        %260 = vmatpush1.msra.mxu0 0.0
        %261 = vmatprep.subr.mxu0 0.0
        %262 = vmatpush1.msra.mxu0 0.0
        %263 = vmatprep.subr.mxu0 0.0
        %264 = vmatpush1.msra.mxu0 0.0
        %265 = vmatprep.subr.mxu0 0.0
        %266 = vmatpush1.msra.mxu0 0.0
        %267 = vmatprep.subr.mxu0 0.0
        %268 = vmatpush1.msra.mxu0 0.0
        %269 = vmatprep.subr.mxu0 0.0
        %270 = vmatpush1.msra.mxu0 0.0
        %271 = vmatprep.subr.mxu0 0.0
        %272 = vmatpush1.msra.mxu0 0.0
        %273 = vmatprep.subr.mxu0 0.0
        %274 = vmatpush1.msra.mxu0 0.0
        %275 = vmatprep.subr.mxu0 0.0
        %276 = vmatpush1.msra.mxu0 0.0
        %277 = vmatprep.subr.mxu0 0.0
        %278 = vmatpush1.msra.mxu0 0.0
        %279 = vmatprep.subr.mxu0 0.0
        %280 = vmatpush1.msra.mxu0 0.0
        %281 = vmatprep.subr.mxu0 0.0
        %282 = vmatpush1.msra.mxu0 0.0
        %283 = vmatprep.subr.mxu0 0.0
        %284 = vmatpush1.msra.mxu0 0.0
        %285 = vmatprep.subr.mxu0 0.0
        %286 = vmatpush1.msra.mxu0 0.0
        %287 = vmatprep.subr.mxu0 0.0
        %288 = vmatpush1.msra.mxu0 0.0
        %289 = vmatprep.subr.mxu0 0.0
        %290 = vmatpush1.msra.mxu0 0.0
        %291 = vmatprep.subr.mxu0 0.0
        %292 = vmatpush1.msra.mxu0 0.0
        %293 = vmatprep.subr.mxu0 0.0
        %294 = vmatpush1.msra.mxu0 0.0
        %295 = vmatprep.subr.mxu0 0.0
        %296 = vmatpush1.msra.mxu0 0.0
        %297 = vmatprep.subr.mxu0 0.0
        %298 = vmatpush1.msra.mxu0 0.0
        %299 = vmatprep.subr.mxu0 0.0
        %300 = vmatpush1.msra.mxu0 0.0
        %301 = vmatprep.subr.mxu0 0.0
        %302 = vmatpush1.msra.mxu0 0.0
        %303 = vmatprep.subr.mxu0 0.0
        %304 = vmatpush1.msra.mxu0 0.0
        %305 = vmatprep.subr.mxu0 0.0
        %306 = vmatpush1.msra.mxu0 0.0
        %307 = vmatprep.mubr.f32.mxu0 0.0
        %v308 = vand.u32 %v236, 4294901760
        %v309 = vsub.f32 %v236, %v308
        %v310 = vand.u32 %v309, 4294901760
        %v311 = vsub.f32 %v309, %v310
        %v312 = vand.u32 %v311, 4294901760
        %313 = vmatmul.mubr.f32.gmra.mrb[0].mxu0 %v312
        %v314 = vpop.f32.mrb[0].mxu0
        %v315 = vadd.f32 0.0, %v314
        %v316 = vpop.f32.mrb[0].mxu0
        %v317 = vadd.f32 0.0, %v316
        %318 = vmatprep.mubr.f32.mxu0 0.0
        %v319 = vand.u32 %v239, 4294901760
        %v320 = vsub.f32 %v239, %v319
        %v321 = vand.u32 %v320, 4294901760
        %v322 = vsub.f32 %v320, %v321
        %v323 = vand.u32 %v322, 4294901760
        %324 = vmatmul.mubr.f32.gmra.mrb[0].mxu0 %v323
        %v325 = vpop.f32.mrb[0].mxu0
        %v326 = vadd.f32 0.0, %v325
        %v327 = vpop.f32.mrb[0].mxu0
        %v328 = vadd.f32 0.0, %v327
        %329 = vdwg.mxu0
        %v330 = vand.u32 %v227, 4294901760
        %v331 = vsub.f32 %v227, %v330
        %v332 = vand.u32 %v331, 4294901760
        %v333 = vsub.f32 %v331, %v332
        %v334 = vand.u32 %v333, 4294901760
        %335 = vmatprep.subr.mxu0 %v334
        %v336 = vand.u32 %v226, 4294901760
        %v337 = vsub.f32 %v226, %v336
        %v338 = vand.u32 %v337, 4294901760
        %v339 = vsub.f32 %v337, %v338
        %v340 = vand.u32 %v339, 4294901760
        %341 = vmatpush1.msra.mxu0 %v340
        %342 = vmatprep.subr.mxu0 0.0
        %343 = vmatpush1.msra.mxu0 0.0
        %344 = vmatprep.subr.mxu0 0.0
        %345 = vmatpush1.msra.mxu0 0.0
        %346 = vmatprep.subr.mxu0 0.0
        %347 = vmatpush1.msra.mxu0 0.0
        %348 = vmatprep.subr.mxu0 0.0
        %349 = vmatpush1.msra.mxu0 0.0
        %350 = vmatprep.subr.mxu0 0.0
        %351 = vmatpush1.msra.mxu0 0.0
        %352 = vmatprep.subr.mxu0 0.0
        %353 = vmatpush1.msra.mxu0 0.0
        %354 = vmatprep.subr.mxu0 0.0
        %355 = vmatpush1.msra.mxu0 0.0
        %356 = vmatprep.subr.mxu0 0.0
        %357 = vmatpush1.msra.mxu0 0.0
        %358 = vmatprep.subr.mxu0 0.0
        %359 = vmatpush1.msra.mxu0 0.0
        %360 = vmatprep.subr.mxu0 0.0
        %361 = vmatpush1.msra.mxu0 0.0
        %362 = vmatprep.subr.mxu0 0.0
        %363 = vmatpush1.msra.mxu0 0.0
        %364 = vmatprep.subr.mxu0 0.0
        %365 = vmatpush1.msra.mxu0 0.0
        %366 = vmatprep.subr.mxu0 0.0
        %367 = vmatpush1.msra.mxu0 0.0
        %368 = vmatprep.subr.mxu0 0.0
        %369 = vmatpush1.msra.mxu0 0.0
        %370 = vmatprep.subr.mxu0 0.0
        %371 = vmatpush1.msra.mxu0 0.0
        %372 = vmatprep.subr.mxu0 0.0
        %373 = vmatpush1.msra.mxu0 0.0
        %374 = vmatprep.subr.mxu0 0.0
        %375 = vmatpush1.msra.mxu0 0.0
        %376 = vmatprep.subr.mxu0 0.0
        %377 = vmatpush1.msra.mxu0 0.0
        %378 = vmatprep.subr.mxu0 0.0
        %379 = vmatpush1.msra.mxu0 0.0
        %380 = vmatprep.subr.mxu0 0.0
        %381 = vmatpush1.msra.mxu0 0.0
        %382 = vmatprep.subr.mxu0 0.0
        %383 = vmatpush1.msra.mxu0 0.0
        %384 = vmatprep.subr.mxu0 0.0
        %385 = vmatpush1.msra.mxu0 0.0
        %386 = vmatprep.subr.mxu0 0.0
        %387 = vmatpush1.msra.mxu0 0.0
        %388 = vmatprep.subr.mxu0 0.0
        %389 = vmatpush1.msra.mxu0 0.0
        %390 = vmatprep.subr.mxu0 0.0
        %391 = vmatpush1.msra.mxu0 0.0
        %392 = vmatprep.subr.mxu0 0.0
        %393 = vmatpush1.msra.mxu0 0.0
        %394 = vmatprep.subr.mxu0 0.0
        %395 = vmatpush1.msra.mxu0 0.0
        %396 = vmatprep.subr.mxu0 0.0
        %397 = vmatpush1.msra.mxu0 0.0
        %398 = vmatprep.subr.mxu0 0.0
        %399 = vmatpush1.msra.mxu0 0.0
        %400 = vmatprep.subr.mxu0 0.0
        %401 = vmatpush1.msra.mxu0 0.0
        %402 = vmatprep.subr.mxu0 0.0
        %403 = vmatpush1.msra.mxu0 0.0
        %404 = vmatprep.mubr.f32.mxu0 0.0
        %v405 = vand.u32 %v236, 4294901760
        %406 = vmatmul.mubr.f32.gmra.mrb[0].mxu0 %v405
        %v407 = vpop.f32.mrb[0].mxu0
        %v408 = vadd.f32 %v315, %v407
        %v409 = vpop.f32.mrb[0].mxu0
        %v410 = vadd.f32 %v317, %v409
        %411 = vmatprep.mubr.f32.mxu0 0.0
        %v412 = vand.u32 %v239, 4294901760
        %413 = vmatmul.mubr.f32.gmra.mrb[0].mxu0 %v412
        %v414 = vpop.f32.mrb[0].mxu0
        %v415 = vadd.f32 %v326, %v414
        %v416 = vpop.f32.mrb[0].mxu0
        %v417 = vadd.f32 %v328, %v416
        %418 = vdwg.mxu0
        %v419 = vand.u32 %v227, 4294901760
        %v420 = vsub.f32 %v227, %v419
        %421 = vmatprep.subr.mxu0 %v420
        %v422 = vand.u32 %v226, 4294901760
        %v423 = vsub.f32 %v226, %v422
        %424 = vmatpush1.msra.mxu0 %v423
        %425 = vmatprep.subr.mxu0 0.0
        %426 = vmatpush1.msra.mxu0 0.0
        %427 = vmatprep.subr.mxu0 0.0
        %428 = vmatpush1.msra.mxu0 0.0
        %429 = vmatprep.subr.mxu0 0.0
        %430 = vmatpush1.msra.mxu0 0.0
        %431 = vmatprep.subr.mxu0 0.0
        %432 = vmatpush1.msra.mxu0 0.0
        %433 = vmatprep.subr.mxu0 0.0
        %434 = vmatpush1.msra.mxu0 0.0
        %435 = vmatprep.subr.mxu0 0.0
        %436 = vmatpush1.msra.mxu0 0.0
        %437 = vmatprep.subr.mxu0 0.0
        %438 = vmatpush1.msra.mxu0 0.0
        %439 = vmatprep.subr.mxu0 0.0
        %440 = vmatpush1.msra.mxu0 0.0
        %441 = vmatprep.subr.mxu0 0.0
        %442 = vmatpush1.msra.mxu0 0.0
        %443 = vmatprep.subr.mxu0 0.0
        %444 = vmatpush1.msra.mxu0 0.0
        %445 = vmatprep.subr.mxu0 0.0
        %446 = vmatpush1.msra.mxu0 0.0
        %447 = vmatprep.subr.mxu0 0.0
        %448 = vmatpush1.msra.mxu0 0.0
        %449 = vmatprep.subr.mxu0 0.0
        %450 = vmatpush1.msra.mxu0 0.0
        %451 = vmatprep.subr.mxu0 0.0
        %452 = vmatpush1.msra.mxu0 0.0
        %453 = vmatprep.subr.mxu0 0.0
        %454 = vmatpush1.msra.mxu0 0.0
        %455 = vmatprep.subr.mxu0 0.0
        %456 = vmatpush1.msra.mxu0 0.0
        %457 = vmatprep.subr.mxu0 0.0
        %458 = vmatpush1.msra.mxu0 0.0
        %459 = vmatprep.subr.mxu0 0.0
        %460 = vmatpush1.msra.mxu0 0.0
        %461 = vmatprep.subr.mxu0 0.0
        %462 = vmatpush1.msra.mxu0 0.0
        %463 = vmatprep.subr.mxu0 0.0
        %464 = vmatpush1.msra.mxu0 0.0
        %465 = vmatprep.subr.mxu0 0.0
        %466 = vmatpush1.msra.mxu0 0.0
        %467 = vmatprep.subr.mxu0 0.0
        %468 = vmatpush1.msra.mxu0 0.0
        %469 = vmatprep.subr.mxu0 0.0
        %470 = vmatpush1.msra.mxu0 0.0
        %471 = vmatprep.subr.mxu0 0.0
        %472 = vmatpush1.msra.mxu0 0.0
        %473 = vmatprep.subr.mxu0 0.0
        %474 = vmatpush1.msra.mxu0 0.0
        %475 = vmatprep.subr.mxu0 0.0
        %476 = vmatpush1.msra.mxu0 0.0
        %477 = vmatprep.subr.mxu0 0.0
        %478 = vmatpush1.msra.mxu0 0.0
        %479 = vmatprep.subr.mxu0 0.0
        %480 = vmatpush1.msra.mxu0 0.0
        %481 = vmatprep.subr.mxu0 0.0
        %482 = vmatpush1.msra.mxu0 0.0
        %483 = vmatprep.subr.mxu0 0.0
        %484 = vmatpush1.msra.mxu0 0.0
        %485 = vmatprep.subr.mxu0 0.0
        %486 = vmatpush1.msra.mxu0 0.0
        %487 = vmatprep.mubr.f32.mxu0 0.0
        %v488 = vand.u32 %v236, 4294901760
        %v489 = vsub.f32 %v236, %v488
        %490 = vmatmul.mubr.f32.gmra.mrb[0].mxu0 %v489
        %v491 = vpop.f32.mrb[0].mxu0
        %v492 = vadd.f32 %v408, %v491
        %v493 = vpop.f32.mrb[0].mxu0
        %v494 = vadd.f32 %v410, %v493
        %495 = vmatprep.mubr.f32.mxu0 0.0
        %v496 = vand.u32 %v239, 4294901760
        %v497 = vsub.f32 %v239, %v496
        %498 = vmatmul.mubr.f32.gmra.mrb[0].mxu0 %v497
        %v499 = vpop.f32.mrb[0].mxu0
        %v500 = vadd.f32 %v415, %v499
        %v501 = vpop.f32.mrb[0].mxu0
        %v502 = vadd.f32 %v417, %v501
        %503 = vdwg.mxu0
        %v504 = vand.u32 %v227, 4294901760
        %505 = vmatprep.subr.mxu0 %v504
        %v506 = vand.u32 %v226, 4294901760
        %507 = vmatpush1.msra.mxu0 %v506
        %508 = vmatprep.subr.mxu0 0.0
        %509 = vmatpush1.msra.mxu0 0.0
        %510 = vmatprep.subr.mxu0 0.0
        %511 = vmatpush1.msra.mxu0 0.0
        %512 = vmatprep.subr.mxu0 0.0
        %513 = vmatpush1.msra.mxu0 0.0
        %514 = vmatprep.subr.mxu0 0.0
        %515 = vmatpush1.msra.mxu0 0.0
        %516 = vmatprep.subr.mxu0 0.0
        %517 = vmatpush1.msra.mxu0 0.0
        %518 = vmatprep.subr.mxu0 0.0
        %519 = vmatpush1.msra.mxu0 0.0
        %520 = vmatprep.subr.mxu0 0.0
        %521 = vmatpush1.msra.mxu0 0.0
        %522 = vmatprep.subr.mxu0 0.0
        %523 = vmatpush1.msra.mxu0 0.0
        %524 = vmatprep.subr.mxu0 0.0
        %525 = vmatpush1.msra.mxu0 0.0
        %526 = vmatprep.subr.mxu0 0.0
        %527 = vmatpush1.msra.mxu0 0.0
        %528 = vmatprep.subr.mxu0 0.0
        %529 = vmatpush1.msra.mxu0 0.0
        %530 = vmatprep.subr.mxu0 0.0
        %531 = vmatpush1.msra.mxu0 0.0
        %532 = vmatprep.subr.mxu0 0.0
        %533 = vmatpush1.msra.mxu0 0.0
        %534 = vmatprep.subr.mxu0 0.0
        %535 = vmatpush1.msra.mxu0 0.0
        %536 = vmatprep.subr.mxu0 0.0
        %537 = vmatpush1.msra.mxu0 0.0
        %538 = vmatprep.subr.mxu0 0.0
        %539 = vmatpush1.msra.mxu0 0.0
        %540 = vmatprep.subr.mxu0 0.0
        %541 = vmatpush1.msra.mxu0 0.0
        %542 = vmatprep.subr.mxu0 0.0
        %543 = vmatpush1.msra.mxu0 0.0
        %544 = vmatprep.subr.mxu0 0.0
        %545 = vmatpush1.msra.mxu0 0.0
        %546 = vmatprep.subr.mxu0 0.0
        %547 = vmatpush1.msra.mxu0 0.0
        %548 = vmatprep.subr.mxu0 0.0
        %549 = vmatpush1.msra.mxu0 0.0
        %550 = vmatprep.subr.mxu0 0.0
        %551 = vmatpush1.msra.mxu0 0.0
        %552 = vmatprep.subr.mxu0 0.0
        %553 = vmatpush1.msra.mxu0 0.0
        %554 = vmatprep.subr.mxu0 0.0
        %555 = vmatpush1.msra.mxu0 0.0
        %556 = vmatprep.subr.mxu0 0.0
        %557 = vmatpush1.msra.mxu0 0.0
        %558 = vmatprep.subr.mxu0 0.0
        %559 = vmatpush1.msra.mxu0 0.0
        %560 = vmatprep.subr.mxu0 0.0
        %561 = vmatpush1.msra.mxu0 0.0
        %562 = vmatprep.subr.mxu0 0.0
        %563 = vmatpush1.msra.mxu0 0.0
        %564 = vmatprep.subr.mxu0 0.0
        %565 = vmatpush1.msra.mxu0 0.0
        %566 = vmatprep.subr.mxu0 0.0
        %567 = vmatpush1.msra.mxu0 0.0
        %568 = vmatprep.subr.mxu0 0.0
        %569 = vmatpush1.msra.mxu0 0.0
        %570 = vmatprep.mubr.f32.mxu0 0.0
        %v571 = vand.u32 %v236, 4294901760
        %v572 = vsub.f32 %v236, %v571
        %v573 = vand.u32 %v572, 4294901760
        %574 = vmatmul.mubr.f32.gmra.mrb[0].mxu0 %v573
        %v575 = vpop.f32.mrb[0].mxu0
        %v576 = vadd.f32 %v492, %v575
        %v577 = vpop.f32.mrb[0].mxu0
        %v578 = vadd.f32 %v494, %v577
        %579 = vmatprep.mubr.f32.mxu0 0.0
        %v580 = vand.u32 %v239, 4294901760
        %v581 = vsub.f32 %v239, %v580
        %v582 = vand.u32 %v581, 4294901760
        %583 = vmatmul.mubr.f32.gmra.mrb[0].mxu0 %v582
        %v584 = vpop.f32.mrb[0].mxu0
        %v585 = vadd.f32 %v500, %v584
        %v586 = vpop.f32.mrb[0].mxu0
        %v587 = vadd.f32 %v502, %v586
        %588 = vdwg.mxu0
        %v589 = vand.u32 %v227, 4294901760
        %v590 = vsub.f32 %v227, %v589
        %v591 = vand.u32 %v590, 4294901760
        %592 = vmatprep.subr.mxu0 %v591
        %v593 = vand.u32 %v226, 4294901760
        %v594 = vsub.f32 %v226, %v593
        %v595 = vand.u32 %v594, 4294901760
        %596 = vmatpush1.msra.mxu0 %v595
        %597 = vmatprep.subr.mxu0 0.0
        %598 = vmatpush1.msra.mxu0 0.0
        %599 = vmatprep.subr.mxu0 0.0
        %600 = vmatpush1.msra.mxu0 0.0
        %601 = vmatprep.subr.mxu0 0.0
        %602 = vmatpush1.msra.mxu0 0.0
        %603 = vmatprep.subr.mxu0 0.0
        %604 = vmatpush1.msra.mxu0 0.0
        %605 = vmatprep.subr.mxu0 0.0
        %606 = vmatpush1.msra.mxu0 0.0
        %607 = vmatprep.subr.mxu0 0.0
        %608 = vmatpush1.msra.mxu0 0.0
        %609 = vmatprep.subr.mxu0 0.0
        %610 = vmatpush1.msra.mxu0 0.0
        %611 = vmatprep.subr.mxu0 0.0
        %612 = vmatpush1.msra.mxu0 0.0
        %613 = vmatprep.subr.mxu0 0.0
        %614 = vmatpush1.msra.mxu0 0.0
        %615 = vmatprep.subr.mxu0 0.0
        %616 = vmatpush1.msra.mxu0 0.0
        %617 = vmatprep.subr.mxu0 0.0
        %618 = vmatpush1.msra.mxu0 0.0
        %619 = vmatprep.subr.mxu0 0.0
        %620 = vmatpush1.msra.mxu0 0.0
        %621 = vmatprep.subr.mxu0 0.0
        %622 = vmatpush1.msra.mxu0 0.0
        %623 = vmatprep.subr.mxu0 0.0
        %624 = vmatpush1.msra.mxu0 0.0
        %625 = vmatprep.subr.mxu0 0.0
        %626 = vmatpush1.msra.mxu0 0.0
        %627 = vmatprep.subr.mxu0 0.0
        %628 = vmatpush1.msra.mxu0 0.0
        %629 = vmatprep.subr.mxu0 0.0
        %630 = vmatpush1.msra.mxu0 0.0
        %631 = vmatprep.subr.mxu0 0.0
        %632 = vmatpush1.msra.mxu0 0.0
        %633 = vmatprep.subr.mxu0 0.0
        %634 = vmatpush1.msra.mxu0 0.0
        %635 = vmatprep.subr.mxu0 0.0
        %636 = vmatpush1.msra.mxu0 0.0
        %637 = vmatprep.subr.mxu0 0.0
        %638 = vmatpush1.msra.mxu0 0.0
        %639 = vmatprep.subr.mxu0 0.0
        %640 = vmatpush1.msra.mxu0 0.0
        %641 = vmatprep.subr.mxu0 0.0
        %642 = vmatpush1.msra.mxu0 0.0
        %643 = vmatprep.subr.mxu0 0.0
        %644 = vmatpush1.msra.mxu0 0.0
        %645 = vmatprep.subr.mxu0 0.0
        %646 = vmatpush1.msra.mxu0 0.0
        %647 = vmatprep.subr.mxu0 0.0
        %648 = vmatpush1.msra.mxu0 0.0
        %649 = vmatprep.subr.mxu0 0.0
        %650 = vmatpush1.msra.mxu0 0.0
        %651 = vmatprep.subr.mxu0 0.0
        %652 = vmatpush1.msra.mxu0 0.0
        %653 = vmatprep.subr.mxu0 0.0
        %654 = vmatpush1.msra.mxu0 0.0
        %655 = vmatprep.subr.mxu0 0.0
        %656 = vmatpush1.msra.mxu0 0.0
        %657 = vmatprep.subr.mxu0 0.0
        %658 = vmatpush1.msra.mxu0 0.0
        %659 = vmatprep.mubr.f32.mxu0 0.0
        %v660 = vand.u32 %v236, 4294901760
        %661 = vmatmul.mubr.f32.gmra.mrb[0].mxu0 %v660
        %v662 = vpop.f32.mrb[0].mxu0
        %v663 = vadd.f32 %v576, %v662
        %v664 = vpop.f32.mrb[0].mxu0
        %v665 = vadd.f32 %v578, %v664
        %666 = vmatprep.mubr.f32.mxu0 0.0
        %v667 = vand.u32 %v239, 4294901760
        %668 = vmatmul.mubr.f32.gmra.mrb[0].mxu0 %v667
        %v669 = vpop.f32.mrb[0].mxu0
        %v670 = vadd.f32 %v585, %v669
        %v671 = vpop.f32.mrb[0].mxu0
        %v672 = vadd.f32 %v587, %v671
        %673 = vdwg.mxu0
        %v674 = vand.u32 %v227, 4294901760
        %675 = vmatprep.subr.mxu0 %v674
        %v676 = vand.u32 %v226, 4294901760
        %677 = vmatpush1.msra.mxu0 %v676
        %678 = vmatprep.subr.mxu0 0.0
        %679 = vmatpush1.msra.mxu0 0.0
        %680 = vmatprep.subr.mxu0 0.0
        %681 = vmatpush1.msra.mxu0 0.0
        %682 = vmatprep.subr.mxu0 0.0
        %683 = vmatpush1.msra.mxu0 0.0
        %684 = vmatprep.subr.mxu0 0.0
        %685 = vmatpush1.msra.mxu0 0.0
        %686 = vmatprep.subr.mxu0 0.0
        %687 = vmatpush1.msra.mxu0 0.0
        %688 = vmatprep.subr.mxu0 0.0
        %689 = vmatpush1.msra.mxu0 0.0
        %690 = vmatprep.subr.mxu0 0.0
        %691 = vmatpush1.msra.mxu0 0.0
        %692 = vmatprep.subr.mxu0 0.0
        %693 = vmatpush1.msra.mxu0 0.0
        %694 = vmatprep.subr.mxu0 0.0
        %695 = vmatpush1.msra.mxu0 0.0
        %696 = vmatprep.subr.mxu0 0.0
        %697 = vmatpush1.msra.mxu0 0.0
        %698 = vmatprep.subr.mxu0 0.0
        %699 = vmatpush1.msra.mxu0 0.0
        %700 = vmatprep.subr.mxu0 0.0
        %701 = vmatpush1.msra.mxu0 0.0
        %702 = vmatprep.subr.mxu0 0.0
        %703 = vmatpush1.msra.mxu0 0.0
        %704 = vmatprep.subr.mxu0 0.0
        %705 = vmatpush1.msra.mxu0 0.0
        %706 = vmatprep.subr.mxu0 0.0
        %707 = vmatpush1.msra.mxu0 0.0
        %708 = vmatprep.subr.mxu0 0.0
        %709 = vmatpush1.msra.mxu0 0.0
        %710 = vmatprep.subr.mxu0 0.0
        %711 = vmatpush1.msra.mxu0 0.0
        %712 = vmatprep.subr.mxu0 0.0
        %713 = vmatpush1.msra.mxu0 0.0
        %714 = vmatprep.subr.mxu0 0.0
        %715 = vmatpush1.msra.mxu0 0.0
        %716 = vmatprep.subr.mxu0 0.0
        %717 = vmatpush1.msra.mxu0 0.0
        %718 = vmatprep.subr.mxu0 0.0
        %719 = vmatpush1.msra.mxu0 0.0
        %720 = vmatprep.subr.mxu0 0.0
        %721 = vmatpush1.msra.mxu0 0.0
        %722 = vmatprep.subr.mxu0 0.0
        %723 = vmatpush1.msra.mxu0 0.0
        %724 = vmatprep.subr.mxu0 0.0
        %725 = vmatpush1.msra.mxu0 0.0
        %726 = vmatprep.subr.mxu0 0.0
        %727 = vmatpush1.msra.mxu0 0.0
        %728 = vmatprep.subr.mxu0 0.0
        %729 = vmatpush1.msra.mxu0 0.0
        %730 = vmatprep.subr.mxu0 0.0
        %731 = vmatpush1.msra.mxu0 0.0
        %732 = vmatprep.subr.mxu0 0.0
        %733 = vmatpush1.msra.mxu0 0.0
        %734 = vmatprep.subr.mxu0 0.0
        %735 = vmatpush1.msra.mxu0 0.0
        %736 = vmatprep.subr.mxu0 0.0
        %737 = vmatpush1.msra.mxu0 0.0
        %738 = vmatprep.subr.mxu0 0.0
        %739 = vmatpush1.msra.mxu0 0.0
        %740 = vmatprep.mubr.f32.mxu0 0.0
        %v741 = vand.u32 %v236, 4294901760
        %742 = vmatmul.mubr.f32.gmra.mrb[0].mxu0 %v741
        %v743 = vpop.f32.mrb[0].mxu0
        %v744 = vadd.f32 %v663, %v743
        %v745 = vpop.f32.mrb[0].mxu0
        %v746 = vadd.f32 %v665, %v745
        %747 = vmatprep.mubr.f32.mxu0 0.0
        %v748 = vand.u32 %v239, 4294901760
        %749 = vmatmul.mubr.f32.gmra.mrb[0].mxu0 %v748
        %v750 = vpop.f32.mrb[0].mxu0
        %v751 = vadd.f32 %v670, %v750
        %v752 = vpop.f32.mrb[0].mxu0
        %v753 = vadd.f32 %v672, %v752
        %754 = vdwg.mxu0
        %v755 = vand.u32 %v229, 4294901760
        %756 = vmatprep.subr.mxu0 %v755
        %v757 = vand.u32 %v228, 4294901760
        %758 = vmatpush1.msra.mxu0 %v757
        %759 = vmatprep.subr.mxu0 0.0
        %760 = vmatpush1.msra.mxu0 0.0
        %761 = vmatprep.subr.mxu0 0.0
        %762 = vmatpush1.msra.mxu0 0.0
        %763 = vmatprep.subr.mxu0 0.0
        %764 = vmatpush1.msra.mxu0 0.0
        %765 = vmatprep.subr.mxu0 0.0
        %766 = vmatpush1.msra.mxu0 0.0
        %767 = vmatprep.subr.mxu0 0.0
        %768 = vmatpush1.msra.mxu0 0.0
        %769 = vmatprep.subr.mxu0 0.0
        %770 = vmatpush1.msra.mxu0 0.0
        %771 = vmatprep.subr.mxu0 0.0
        %772 = vmatpush1.msra.mxu0 0.0
        %773 = vmatprep.subr.mxu0 0.0
        %774 = vmatpush1.msra.mxu0 0.0
        %775 = vmatprep.subr.mxu0 0.0
        %776 = vmatpush1.msra.mxu0 0.0
        %777 = vmatprep.subr.mxu0 0.0
        %778 = vmatpush1.msra.mxu0 0.0
        %779 = vmatprep.subr.mxu0 0.0
        %780 = vmatpush1.msra.mxu0 0.0
        %781 = vmatprep.subr.mxu0 0.0
        %782 = vmatpush1.msra.mxu0 0.0
        %783 = vmatprep.subr.mxu0 0.0
        %784 = vmatpush1.msra.mxu0 0.0
        %785 = vmatprep.subr.mxu0 0.0
        %786 = vmatpush1.msra.mxu0 0.0
        %787 = vmatprep.subr.mxu0 0.0
        %788 = vmatpush1.msra.mxu0 0.0
        %789 = vmatprep.subr.mxu0 0.0
        %790 = vmatpush1.msra.mxu0 0.0
        %791 = vmatprep.subr.mxu0 0.0
        %792 = vmatpush1.msra.mxu0 0.0
        %793 = vmatprep.subr.mxu0 0.0
        %794 = vmatpush1.msra.mxu0 0.0
        %795 = vmatprep.subr.mxu0 0.0
        %796 = vmatpush1.msra.mxu0 0.0
        %797 = vmatprep.subr.mxu0 0.0
        %798 = vmatpush1.msra.mxu0 0.0
        %799 = vmatprep.subr.mxu0 0.0
        %800 = vmatpush1.msra.mxu0 0.0
        %801 = vmatprep.subr.mxu0 0.0
        %802 = vmatpush1.msra.mxu0 0.0
        %803 = vmatprep.subr.mxu0 0.0
        %804 = vmatpush1.msra.mxu0 0.0
        %805 = vmatprep.subr.mxu0 0.0
        %806 = vmatpush1.msra.mxu0 0.0
        %807 = vmatprep.subr.mxu0 0.0
        %808 = vmatpush1.msra.mxu0 0.0
        %809 = vmatprep.subr.mxu0 0.0
        %810 = vmatpush1.msra.mxu0 0.0
        %811 = vmatprep.subr.mxu0 0.0
        %812 = vmatpush1.msra.mxu0 0.0
        %813 = vmatprep.subr.mxu0 0.0
        %814 = vmatpush1.msra.mxu0 0.0
        %815 = vmatprep.subr.mxu0 0.0
        %816 = vmatpush1.msra.mxu0 0.0
        %817 = vmatprep.subr.mxu0 0.0
        %818 = vmatpush1.msra.mxu0 0.0
        %819 = vmatprep.subr.mxu0 0.0
        %820 = vmatpush1.msra.mxu0 0.0
        %821 = vmatprep.mubr.f32.mxu0 0.0
        %v822 = vand.u32 %v236, 4294901760
        %v823 = vsub.f32 %v236, %v822
        %v824 = vand.u32 %v823, 4294901760
        %v825 = vsub.f32 %v823, %v824
        %v826 = vand.u32 %v825, 4294901760
        %827 = vmatmul.mubr.f32.gmra.mrb[0].mxu0 %v826
        %v828 = vpop.f32.mrb[0].mxu0
        %v829 = vadd.f32 0.0, %v828
        %v830 = vpop.f32.mrb[0].mxu0
        %v831 = vadd.f32 0.0, %v830
        %832 = vmatprep.mubr.f32.mxu0 0.0
        %v833 = vand.u32 %v239, 4294901760
        %v834 = vsub.f32 %v239, %v833
        %v835 = vand.u32 %v834, 4294901760
        %v836 = vsub.f32 %v834, %v835
        %v837 = vand.u32 %v836, 4294901760
        %838 = vmatmul.mubr.f32.gmra.mrb[0].mxu0 %v837
        %v839 = vpop.f32.mrb[0].mxu0
        %v840 = vadd.f32 0.0, %v839
        %v841 = vpop.f32.mrb[0].mxu0
        %v842 = vadd.f32 0.0, %v841
        %843 = vdwg.mxu0
        %v844 = vand.u32 %v229, 4294901760
        %v845 = vsub.f32 %v229, %v844
        %v846 = vand.u32 %v845, 4294901760
        %v847 = vsub.f32 %v845, %v846
        %v848 = vand.u32 %v847, 4294901760
        %849 = vmatprep.subr.mxu0 %v848
        %v850 = vand.u32 %v228, 4294901760
        %v851 = vsub.f32 %v228, %v850
        %v852 = vand.u32 %v851, 4294901760
        %v853 = vsub.f32 %v851, %v852
        %v854 = vand.u32 %v853, 4294901760
        %855 = vmatpush1.msra.mxu0 %v854
        %856 = vmatprep.subr.mxu0 0.0
        %857 = vmatpush1.msra.mxu0 0.0
        %858 = vmatprep.subr.mxu0 0.0
        %859 = vmatpush1.msra.mxu0 0.0
        %860 = vmatprep.subr.mxu0 0.0
        %861 = vmatpush1.msra.mxu0 0.0
        %862 = vmatprep.subr.mxu0 0.0
        %863 = vmatpush1.msra.mxu0 0.0
        %864 = vmatprep.subr.mxu0 0.0
        %865 = vmatpush1.msra.mxu0 0.0
        %866 = vmatprep.subr.mxu0 0.0
        %867 = vmatpush1.msra.mxu0 0.0
        %868 = vmatprep.subr.mxu0 0.0
        %869 = vmatpush1.msra.mxu0 0.0
        %870 = vmatprep.subr.mxu0 0.0
        %871 = vmatpush1.msra.mxu0 0.0
        %872 = vmatprep.subr.mxu0 0.0
        %873 = vmatpush1.msra.mxu0 0.0
        %874 = vmatprep.subr.mxu0 0.0
        %875 = vmatpush1.msra.mxu0 0.0
        %876 = vmatprep.subr.mxu0 0.0
        %877 = vmatpush1.msra.mxu0 0.0
        %878 = vmatprep.subr.mxu0 0.0
        %879 = vmatpush1.msra.mxu0 0.0
        %880 = vmatprep.subr.mxu0 0.0
        %881 = vmatpush1.msra.mxu0 0.0
        %882 = vmatprep.subr.mxu0 0.0
        %883 = vmatpush1.msra.mxu0 0.0
        %884 = vmatprep.subr.mxu0 0.0
        %885 = vmatpush1.msra.mxu0 0.0
        %886 = vmatprep.subr.mxu0 0.0
        %887 = vmatpush1.msra.mxu0 0.0
        %888 = vmatprep.subr.mxu0 0.0
        %889 = vmatpush1.msra.mxu0 0.0
        %890 = vmatprep.subr.mxu0 0.0
        %891 = vmatpush1.msra.mxu0 0.0
        %892 = vmatprep.subr.mxu0 0.0
        %893 = vmatpush1.msra.mxu0 0.0
        %894 = vmatprep.subr.mxu0 0.0
        %895 = vmatpush1.msra.mxu0 0.0
        %896 = vmatprep.subr.mxu0 0.0
        %897 = vmatpush1.msra.mxu0 0.0
        %898 = vmatprep.subr.mxu0 0.0
        %899 = vmatpush1.msra.mxu0 0.0
        %900 = vmatprep.subr.mxu0 0.0
        %901 = vmatpush1.msra.mxu0 0.0
        %902 = vmatprep.subr.mxu0 0.0
        %903 = vmatpush1.msra.mxu0 0.0
        %904 = vmatprep.subr.mxu0 0.0
        %905 = vmatpush1.msra.mxu0 0.0
        %906 = vmatprep.subr.mxu0 0.0
        %907 = vmatpush1.msra.mxu0 0.0
        %908 = vmatprep.subr.mxu0 0.0
        %909 = vmatpush1.msra.mxu0 0.0
        %910 = vmatprep.subr.mxu0 0.0
        %911 = vmatpush1.msra.mxu0 0.0
        %912 = vmatprep.subr.mxu0 0.0
        %913 = vmatpush1.msra.mxu0 0.0
        %914 = vmatprep.subr.mxu0 0.0
        %915 = vmatpush1.msra.mxu0 0.0
        %916 = vmatprep.subr.mxu0 0.0
        %917 = vmatpush1.msra.mxu0 0.0
        %918 = vmatprep.mubr.f32.mxu0 0.0
        %v919 = vand.u32 %v236, 4294901760
        %920 = vmatmul.mubr.f32.gmra.mrb[0].mxu0 %v919
        %v921 = vpop.f32.mrb[0].mxu0
        %v922 = vadd.f32 %v829, %v921
        %v923 = vpop.f32.mrb[0].mxu0
        %v924 = vadd.f32 %v831, %v923
        %925 = vmatprep.mubr.f32.mxu0 0.0
        %v926 = vand.u32 %v239, 4294901760
        %927 = vmatmul.mubr.f32.gmra.mrb[0].mxu0 %v926
        %v928 = vpop.f32.mrb[0].mxu0
        %v929 = vadd.f32 %v840, %v928
        %v930 = vpop.f32.mrb[0].mxu0
        %v931 = vadd.f32 %v842, %v930
        %932 = vdwg.mxu0
        %v933 = vand.u32 %v229, 4294901760
        %v934 = vsub.f32 %v229, %v933
        %935 = vmatprep.subr.mxu0 %v934
        %v936 = vand.u32 %v228, 4294901760
        %v937 = vsub.f32 %v228, %v936
        %938 = vmatpush1.msra.mxu0 %v937
        %939 = vmatprep.subr.mxu0 0.0
        %940 = vmatpush1.msra.mxu0 0.0
        %941 = vmatprep.subr.mxu0 0.0
        %942 = vmatpush1.msra.mxu0 0.0
        %943 = vmatprep.subr.mxu0 0.0
        %944 = vmatpush1.msra.mxu0 0.0
        %945 = vmatprep.subr.mxu0 0.0
        %946 = vmatpush1.msra.mxu0 0.0
        %947 = vmatprep.subr.mxu0 0.0
        %948 = vmatpush1.msra.mxu0 0.0
        %949 = vmatprep.subr.mxu0 0.0
        %950 = vmatpush1.msra.mxu0 0.0
        %951 = vmatprep.subr.mxu0 0.0
        %952 = vmatpush1.msra.mxu0 0.0
        %953 = vmatprep.subr.mxu0 0.0
        %954 = vmatpush1.msra.mxu0 0.0
        %955 = vmatprep.subr.mxu0 0.0
        %956 = vmatpush1.msra.mxu0 0.0
        %957 = vmatprep.subr.mxu0 0.0
        %958 = vmatpush1.msra.mxu0 0.0
        %959 = vmatprep.subr.mxu0 0.0
        %960 = vmatpush1.msra.mxu0 0.0
        %961 = vmatprep.subr.mxu0 0.0
        %962 = vmatpush1.msra.mxu0 0.0
        %963 = vmatprep.subr.mxu0 0.0
        %964 = vmatpush1.msra.mxu0 0.0
        %965 = vmatprep.subr.mxu0 0.0
        %966 = vmatpush1.msra.mxu0 0.0
        %967 = vmatprep.subr.mxu0 0.0
        %968 = vmatpush1.msra.mxu0 0.0
        %969 = vmatprep.subr.mxu0 0.0
        %970 = vmatpush1.msra.mxu0 0.0
        %971 = vmatprep.subr.mxu0 0.0
        %972 = vmatpush1.msra.mxu0 0.0
        %973 = vmatprep.subr.mxu0 0.0
        %974 = vmatpush1.msra.mxu0 0.0
        %975 = vmatprep.subr.mxu0 0.0
        %976 = vmatpush1.msra.mxu0 0.0
        %977 = vmatprep.subr.mxu0 0.0
        %978 = vmatpush1.msra.mxu0 0.0
        %979 = vmatprep.subr.mxu0 0.0
        %980 = vmatpush1.msra.mxu0 0.0
        %981 = vmatprep.subr.mxu0 0.0
        %982 = vmatpush1.msra.mxu0 0.0
        %983 = vmatprep.subr.mxu0 0.0
        %984 = vmatpush1.msra.mxu0 0.0
        %985 = vmatprep.subr.mxu0 0.0
        %986 = vmatpush1.msra.mxu0 0.0
        %987 = vmatprep.subr.mxu0 0.0
        %988 = vmatpush1.msra.mxu0 0.0
        %989 = vmatprep.subr.mxu0 0.0
        %990 = vmatpush1.msra.mxu0 0.0
        %991 = vmatprep.subr.mxu0 0.0
        %992 = vmatpush1.msra.mxu0 0.0
        %993 = vmatprep.subr.mxu0 0.0
        %994 = vmatpush1.msra.mxu0 0.0
        %995 = vmatprep.subr.mxu0 0.0
        %996 = vmatpush1.msra.mxu0 0.0
        %997 = vmatprep.subr.mxu0 0.0
        %998 = vmatpush1.msra.mxu0 0.0
        %999 = vmatprep.subr.mxu0 0.0
        %1000 = vmatpush1.msra.mxu0 0.0
        %1001 = vmatprep.mubr.f32.mxu0 0.0
        %v1002 = vand.u32 %v236, 4294901760
        %v1003 = vsub.f32 %v236, %v1002
        %1004 = vmatmul.mubr.f32.gmra.mrb[0].mxu0 %v1003
        %v1005 = vpop.f32.mrb[0].mxu0
        %v1006 = vadd.f32 %v922, %v1005
        %v1007 = vpop.f32.mrb[0].mxu0
        %v1008 = vadd.f32 %v924, %v1007
        %1009 = vmatprep.mubr.f32.mxu0 0.0
        %v1010 = vand.u32 %v239, 4294901760
        %v1011 = vsub.f32 %v239, %v1010
        %1012 = vmatmul.mubr.f32.gmra.mrb[0].mxu0 %v1011
        %v1013 = vpop.f32.mrb[0].mxu0
        %v1014 = vadd.f32 %v929, %v1013
        %v1015 = vpop.f32.mrb[0].mxu0
        %v1016 = vadd.f32 %v931, %v1015
        %1017 = vdwg.mxu0
        %v1018 = vand.u32 %v229, 4294901760
        %1019 = vmatprep.subr.mxu0 %v1018
        %v1020 = vand.u32 %v228, 4294901760
        %1021 = vmatpush1.msra.mxu0 %v1020
        %1022 = vmatprep.subr.mxu0 0.0
        %1023 = vmatpush1.msra.mxu0 0.0
        %1024 = vmatprep.subr.mxu0 0.0
        %1025 = vmatpush1.msra.mxu0 0.0
        %1026 = vmatprep.subr.mxu0 0.0
        %1027 = vmatpush1.msra.mxu0 0.0
        %1028 = vmatprep.subr.mxu0 0.0
        %1029 = vmatpush1.msra.mxu0 0.0
        %1030 = vmatprep.subr.mxu0 0.0
        %1031 = vmatpush1.msra.mxu0 0.0
        %1032 = vmatprep.subr.mxu0 0.0
        %1033 = vmatpush1.msra.mxu0 0.0
        %1034 = vmatprep.subr.mxu0 0.0
        %1035 = vmatpush1.msra.mxu0 0.0
        %1036 = vmatprep.subr.mxu0 0.0
        %1037 = vmatpush1.msra.mxu0 0.0
        %1038 = vmatprep.subr.mxu0 0.0
        %1039 = vmatpush1.msra.mxu0 0.0
        %1040 = vmatprep.subr.mxu0 0.0
        %1041 = vmatpush1.msra.mxu0 0.0
        %1042 = vmatprep.subr.mxu0 0.0
        %1043 = vmatpush1.msra.mxu0 0.0
        %1044 = vmatprep.subr.mxu0 0.0
        %1045 = vmatpush1.msra.mxu0 0.0
        %1046 = vmatprep.subr.mxu0 0.0
        %1047 = vmatpush1.msra.mxu0 0.0
        %1048 = vmatprep.subr.mxu0 0.0
        %1049 = vmatpush1.msra.mxu0 0.0
        %1050 = vmatprep.subr.mxu0 0.0
        %1051 = vmatpush1.msra.mxu0 0.0
        %1052 = vmatprep.subr.mxu0 0.0
        %1053 = vmatpush1.msra.mxu0 0.0
        %1054 = vmatprep.subr.mxu0 0.0
        %1055 = vmatpush1.msra.mxu0 0.0
        %1056 = vmatprep.subr.mxu0 0.0
        %1057 = vmatpush1.msra.mxu0 0.0
        %1058 = vmatprep.subr.mxu0 0.0
        %1059 = vmatpush1.msra.mxu0 0.0
        %1060 = vmatprep.subr.mxu0 0.0
        %1061 = vmatpush1.msra.mxu0 0.0
        %1062 = vmatprep.subr.mxu0 0.0
        %1063 = vmatpush1.msra.mxu0 0.0
        %1064 = vmatprep.subr.mxu0 0.0
        %1065 = vmatpush1.msra.mxu0 0.0
        %1066 = vmatprep.subr.mxu0 0.0
        %1067 = vmatpush1.msra.mxu0 0.0
        %1068 = vmatprep.subr.mxu0 0.0
        %1069 = vmatpush1.msra.mxu0 0.0
        %1070 = vmatprep.subr.mxu0 0.0
        %1071 = vmatpush1.msra.mxu0 0.0
        %1072 = vmatprep.subr.mxu0 0.0
        %1073 = vmatpush1.msra.mxu0 0.0
        %1074 = vmatprep.subr.mxu0 0.0
        %1075 = vmatpush1.msra.mxu0 0.0
        %1076 = vmatprep.subr.mxu0 0.0
        %1077 = vmatpush1.msra.mxu0 0.0
        %1078 = vmatprep.subr.mxu0 0.0
        %1079 = vmatpush1.msra.mxu0 0.0
        %1080 = vmatprep.subr.mxu0 0.0
        %1081 = vmatpush1.msra.mxu0 0.0
        %1082 = vmatprep.subr.mxu0 0.0
        %1083 = vmatpush1.msra.mxu0 0.0
        %1084 = vmatprep.mubr.f32.mxu0 0.0
        %v1085 = vand.u32 %v236, 4294901760
        %v1086 = vsub.f32 %v236, %v1085
        %v1087 = vand.u32 %v1086, 4294901760
        %1088 = vmatmul.mubr.f32.gmra.mrb[0].mxu0 %v1087
        %v1089 = vpop.f32.mrb[0].mxu0
        %v1090 = vadd.f32 %v1006, %v1089
        %v1091 = vpop.f32.mrb[0].mxu0
        %v1092 = vadd.f32 %v1008, %v1091
        %1093 = vmatprep.mubr.f32.mxu0 0.0
        %v1094 = vand.u32 %v239, 4294901760
        %v1095 = vsub.f32 %v239, %v1094
        %v1096 = vand.u32 %v1095, 4294901760
        %1097 = vmatmul.mubr.f32.gmra.mrb[0].mxu0 %v1096
        %v1098 = vpop.f32.mrb[0].mxu0
        %v1099 = vadd.f32 %v1014, %v1098
        %v1100 = vpop.f32.mrb[0].mxu0
        %v1101 = vadd.f32 %v1016, %v1100
        %1102 = vdwg.mxu0
        %v1103 = vand.u32 %v229, 4294901760
        %v1104 = vsub.f32 %v229, %v1103
        %v1105 = vand.u32 %v1104, 4294901760
        %1106 = vmatprep.subr.mxu0 %v1105
        %v1107 = vand.u32 %v228, 4294901760
        %v1108 = vsub.f32 %v228, %v1107
        %v1109 = vand.u32 %v1108, 4294901760
        %1110 = vmatpush1.msra.mxu0 %v1109
        %1111 = vmatprep.subr.mxu0 0.0
        %1112 = vmatpush1.msra.mxu0 0.0
        %1113 = vmatprep.subr.mxu0 0.0
        %1114 = vmatpush1.msra.mxu0 0.0
        %1115 = vmatprep.subr.mxu0 0.0
        %1116 = vmatpush1.msra.mxu0 0.0
        %1117 = vmatprep.subr.mxu0 0.0
        %1118 = vmatpush1.msra.mxu0 0.0
        %1119 = vmatprep.subr.mxu0 0.0
        %1120 = vmatpush1.msra.mxu0 0.0
        %1121 = vmatprep.subr.mxu0 0.0
        %1122 = vmatpush1.msra.mxu0 0.0
        %1123 = vmatprep.subr.mxu0 0.0
        %1124 = vmatpush1.msra.mxu0 0.0
        %1125 = vmatprep.subr.mxu0 0.0
        %1126 = vmatpush1.msra.mxu0 0.0
        %1127 = vmatprep.subr.mxu0 0.0
        %1128 = vmatpush1.msra.mxu0 0.0
        %1129 = vmatprep.subr.mxu0 0.0
        %1130 = vmatpush1.msra.mxu0 0.0
        %1131 = vmatprep.subr.mxu0 0.0
        %1132 = vmatpush1.msra.mxu0 0.0
        %1133 = vmatprep.subr.mxu0 0.0
        %1134 = vmatpush1.msra.mxu0 0.0
        %1135 = vmatprep.subr.mxu0 0.0
        %1136 = vmatpush1.msra.mxu0 0.0
        %1137 = vmatprep.subr.mxu0 0.0
        %1138 = vmatpush1.msra.mxu0 0.0
        %1139 = vmatprep.subr.mxu0 0.0
        %1140 = vmatpush1.msra.mxu0 0.0
        %1141 = vmatprep.subr.mxu0 0.0
        %1142 = vmatpush1.msra.mxu0 0.0
        %1143 = vmatprep.subr.mxu0 0.0
        %1144 = vmatpush1.msra.mxu0 0.0
        %1145 = vmatprep.subr.mxu0 0.0
        %1146 = vmatpush1.msra.mxu0 0.0
        %1147 = vmatprep.subr.mxu0 0.0
        %1148 = vmatpush1.msra.mxu0 0.0
        %1149 = vmatprep.subr.mxu0 0.0
        %1150 = vmatpush1.msra.mxu0 0.0
        %1151 = vmatprep.subr.mxu0 0.0
        %1152 = vmatpush1.msra.mxu0 0.0
        %1153 = vmatprep.subr.mxu0 0.0
        %1154 = vmatpush1.msra.mxu0 0.0
        %1155 = vmatprep.subr.mxu0 0.0
        %1156 = vmatpush1.msra.mxu0 0.0
        %1157 = vmatprep.subr.mxu0 0.0
        %1158 = vmatpush1.msra.mxu0 0.0
        %1159 = vmatprep.subr.mxu0 0.0
        %1160 = vmatpush1.msra.mxu0 0.0
        %1161 = vmatprep.subr.mxu0 0.0
        %1162 = vmatpush1.msra.mxu0 0.0
        %1163 = vmatprep.subr.mxu0 0.0
        %1164 = vmatpush1.msra.mxu0 0.0
        %1165 = vmatprep.subr.mxu0 0.0
        %1166 = vmatpush1.msra.mxu0 0.0
        %1167 = vmatprep.subr.mxu0 0.0
        %1168 = vmatpush1.msra.mxu0 0.0
        %1169 = vmatprep.subr.mxu0 0.0
        %1170 = vmatpush1.msra.mxu0 0.0
        %1171 = vmatprep.subr.mxu0 0.0
        %1172 = vmatpush1.msra.mxu0 0.0
        %1173 = vmatprep.mubr.f32.mxu0 0.0
        %v1174 = vand.u32 %v236, 4294901760
        %1175 = vmatmul.mubr.f32.gmra.mrb[0].mxu0 %v1174
        %v1176 = vpop.f32.mrb[0].mxu0
        %v1177 = vadd.f32 %v1090, %v1176
        %v1178 = vpop.f32.mrb[0].mxu0
        %v1179 = vadd.f32 %v1092, %v1178
        %1180 = vmatprep.mubr.f32.mxu0 0.0
        %v1181 = vand.u32 %v239, 4294901760
        %1182 = vmatmul.mubr.f32.gmra.mrb[0].mxu0 %v1181
        %v1183 = vpop.f32.mrb[0].mxu0
        %v1184 = vadd.f32 %v1099, %v1183
        %v1185 = vpop.f32.mrb[0].mxu0
        %v1186 = vadd.f32 %v1101, %v1185
        %1187 = vdwg.mxu0
        %v1188 = vand.u32 %v229, 4294901760
        %1189 = vmatprep.subr.mxu0 %v1188
        %v1190 = vand.u32 %v228, 4294901760
        %1191 = vmatpush1.msra.mxu0 %v1190
        %1192 = vmatprep.subr.mxu0 0.0
        %1193 = vmatpush1.msra.mxu0 0.0
        %1194 = vmatprep.subr.mxu0 0.0
        %1195 = vmatpush1.msra.mxu0 0.0
        %1196 = vmatprep.subr.mxu0 0.0
        %1197 = vmatpush1.msra.mxu0 0.0
        %1198 = vmatprep.subr.mxu0 0.0
        %1199 = vmatpush1.msra.mxu0 0.0
        %1200 = vmatprep.subr.mxu0 0.0
        %1201 = vmatpush1.msra.mxu0 0.0
        %1202 = vmatprep.subr.mxu0 0.0
        %1203 = vmatpush1.msra.mxu0 0.0
        %1204 = vmatprep.subr.mxu0 0.0
        %1205 = vmatpush1.msra.mxu0 0.0
        %1206 = vmatprep.subr.mxu0 0.0
        %1207 = vmatpush1.msra.mxu0 0.0
        %1208 = vmatprep.subr.mxu0 0.0
        %1209 = vmatpush1.msra.mxu0 0.0
        %1210 = vmatprep.subr.mxu0 0.0
        %1211 = vmatpush1.msra.mxu0 0.0
        %1212 = vmatprep.subr.mxu0 0.0
        %1213 = vmatpush1.msra.mxu0 0.0
        %1214 = vmatprep.subr.mxu0 0.0
        %1215 = vmatpush1.msra.mxu0 0.0
        %1216 = vmatprep.subr.mxu0 0.0
        %1217 = vmatpush1.msra.mxu0 0.0
        %1218 = vmatprep.subr.mxu0 0.0
        %1219 = vmatpush1.msra.mxu0 0.0
        %1220 = vmatprep.subr.mxu0 0.0
        %1221 = vmatpush1.msra.mxu0 0.0
        %1222 = vmatprep.subr.mxu0 0.0
        %1223 = vmatpush1.msra.mxu0 0.0
        %1224 = vmatprep.subr.mxu0 0.0
        %1225 = vmatpush1.msra.mxu0 0.0
        %1226 = vmatprep.subr.mxu0 0.0
        %1227 = vmatpush1.msra.mxu0 0.0
        %1228 = vmatprep.subr.mxu0 0.0
        %1229 = vmatpush1.msra.mxu0 0.0
        %1230 = vmatprep.subr.mxu0 0.0
        %1231 = vmatpush1.msra.mxu0 0.0
        %1232 = vmatprep.subr.mxu0 0.0
        %1233 = vmatpush1.msra.mxu0 0.0
        %1234 = vmatprep.subr.mxu0 0.0
        %1235 = vmatpush1.msra.mxu0 0.0
        %1236 = vmatprep.subr.mxu0 0.0
        %1237 = vmatpush1.msra.mxu0 0.0
        %1238 = vmatprep.subr.mxu0 0.0
        %1239 = vmatpush1.msra.mxu0 0.0
        %1240 = vmatprep.subr.mxu0 0.0
        %1241 = vmatpush1.msra.mxu0 0.0
        %1242 = vmatprep.subr.mxu0 0.0
        %1243 = vmatpush1.msra.mxu0 0.0
        %1244 = vmatprep.subr.mxu0 0.0
        %1245 = vmatpush1.msra.mxu0 0.0
        %1246 = vmatprep.subr.mxu0 0.0
        %1247 = vmatpush1.msra.mxu0 0.0
        %1248 = vmatprep.subr.mxu0 0.0
        %1249 = vmatpush1.msra.mxu0 0.0
        %1250 = vmatprep.subr.mxu0 0.0
        %1251 = vmatpush1.msra.mxu0 0.0
        %1252 = vmatprep.subr.mxu0 0.0
        %1253 = vmatpush1.msra.mxu0 0.0
        %1254 = vmatprep.mubr.f32.mxu0 0.0
        %v1255 = vand.u32 %v236, 4294901760
        %1256 = vmatmul.mubr.f32.gmra.mrb[0].mxu0 %v1255
        %v1257 = vpop.f32.mrb[0].mxu0
        %v1258 = vadd.f32 %v1177, %v1257
        %v1259 = vpop.f32.mrb[0].mxu0
        %v1260 = vadd.f32 %v1179, %v1259
        %1261 = vmatprep.mubr.f32.mxu0 0.0
        %v1262 = vand.u32 %v239, 4294901760
        %1263 = vmatmul.mubr.f32.gmra.mrb[0].mxu0 %v1262
        %v1264 = vpop.f32.mrb[0].mxu0
        %v1265 = vadd.f32 %v1184, %v1264
        %v1266 = vpop.f32.mrb[0].mxu0
        %v1267 = vadd.f32 %v1186, %v1266
        %1268 = vdwg.mxu0
        %v1269 = vand.u32 %v231, 4294901760
        %1270 = vmatprep.subr.mxu0 %v1269
        %v1271 = vand.u32 %v230, 4294901760
        %1272 = vmatpush1.msra.mxu0 %v1271
        %1273 = vmatprep.subr.mxu0 0.0
        %1274 = vmatpush1.msra.mxu0 0.0
        %1275 = vmatprep.subr.mxu0 0.0
        %1276 = vmatpush1.msra.mxu0 0.0
        %1277 = vmatprep.subr.mxu0 0.0
        %1278 = vmatpush1.msra.mxu0 0.0
        %1279 = vmatprep.subr.mxu0 0.0
        %1280 = vmatpush1.msra.mxu0 0.0
        %1281 = vmatprep.subr.mxu0 0.0
        %1282 = vmatpush1.msra.mxu0 0.0
        %1283 = vmatprep.subr.mxu0 0.0
        %1284 = vmatpush1.msra.mxu0 0.0
        %1285 = vmatprep.subr.mxu0 0.0
        %1286 = vmatpush1.msra.mxu0 0.0
        %1287 = vmatprep.subr.mxu0 0.0
        %1288 = vmatpush1.msra.mxu0 0.0
        %1289 = vmatprep.subr.mxu0 0.0
        %1290 = vmatpush1.msra.mxu0 0.0
        %1291 = vmatprep.subr.mxu0 0.0
        %1292 = vmatpush1.msra.mxu0 0.0
        %1293 = vmatprep.subr.mxu0 0.0
        %1294 = vmatpush1.msra.mxu0 0.0
        %1295 = vmatprep.subr.mxu0 0.0
        %1296 = vmatpush1.msra.mxu0 0.0
        %1297 = vmatprep.subr.mxu0 0.0
        %1298 = vmatpush1.msra.mxu0 0.0
        %1299 = vmatprep.subr.mxu0 0.0
        %1300 = vmatpush1.msra.mxu0 0.0
        %1301 = vmatprep.subr.mxu0 0.0
        %1302 = vmatpush1.msra.mxu0 0.0
        %1303 = vmatprep.subr.mxu0 0.0
        %1304 = vmatpush1.msra.mxu0 0.0
        %1305 = vmatprep.subr.mxu0 0.0
        %1306 = vmatpush1.msra.mxu0 0.0
        %1307 = vmatprep.subr.mxu0 0.0
        %1308 = vmatpush1.msra.mxu0 0.0
        %1309 = vmatprep.subr.mxu0 0.0
        %1310 = vmatpush1.msra.mxu0 0.0
        %1311 = vmatprep.subr.mxu0 0.0
        %1312 = vmatpush1.msra.mxu0 0.0
        %1313 = vmatprep.subr.mxu0 0.0
        %1314 = vmatpush1.msra.mxu0 0.0
        %1315 = vmatprep.subr.mxu0 0.0
        %1316 = vmatpush1.msra.mxu0 0.0
        %1317 = vmatprep.subr.mxu0 0.0
        %1318 = vmatpush1.msra.mxu0 0.0
        %1319 = vmatprep.subr.mxu0 0.0
        %1320 = vmatpush1.msra.mxu0 0.0
        %1321 = vmatprep.subr.mxu0 0.0
        %1322 = vmatpush1.msra.mxu0 0.0
        %1323 = vmatprep.subr.mxu0 0.0
        %1324 = vmatpush1.msra.mxu0 0.0
        %1325 = vmatprep.subr.mxu0 0.0
        %1326 = vmatpush1.msra.mxu0 0.0
        %1327 = vmatprep.subr.mxu0 0.0
        %1328 = vmatpush1.msra.mxu0 0.0
        %1329 = vmatprep.subr.mxu0 0.0
        %1330 = vmatpush1.msra.mxu0 0.0
        %1331 = vmatprep.subr.mxu0 0.0
        %1332 = vmatpush1.msra.mxu0 0.0
        %1333 = vmatprep.subr.mxu0 0.0
        %1334 = vmatpush1.msra.mxu0 0.0
        %1335 = vmatprep.mubr.f32.mxu0 0.0
        %v1336 = vand.u32 %v236, 4294901760
        %v1337 = vsub.f32 %v236, %v1336
        %v1338 = vand.u32 %v1337, 4294901760
        %v1339 = vsub.f32 %v1337, %v1338
        %v1340 = vand.u32 %v1339, 4294901760
        %1341 = vmatmul.mubr.f32.gmra.mrb[0].mxu0 %v1340
        %v1342 = vpop.f32.mrb[0].mxu0
        %v1343 = vadd.f32 0.0, %v1342
        %v1344 = vpop.f32.mrb[0].mxu0
        %v1345 = vadd.f32 0.0, %v1344
        %1346 = vmatprep.mubr.f32.mxu0 0.0
        %v1347 = vand.u32 %v239, 4294901760
        %v1348 = vsub.f32 %v239, %v1347
        %v1349 = vand.u32 %v1348, 4294901760
        %v1350 = vsub.f32 %v1348, %v1349
        %v1351 = vand.u32 %v1350, 4294901760
        %1352 = vmatmul.mubr.f32.gmra.mrb[0].mxu0 %v1351
        %v1353 = vpop.f32.mrb[0].mxu0
        %v1354 = vadd.f32 0.0, %v1353
        %v1355 = vpop.f32.mrb[0].mxu0
        %v1356 = vadd.f32 0.0, %v1355
        %1357 = vdwg.mxu0
        %v1358 = vand.u32 %v231, 4294901760
        %v1359 = vsub.f32 %v231, %v1358
        %v1360 = vand.u32 %v1359, 4294901760
        %v1361 = vsub.f32 %v1359, %v1360
        %v1362 = vand.u32 %v1361, 4294901760
        %1363 = vmatprep.subr.mxu0 %v1362
        %v1364 = vand.u32 %v230, 4294901760
        %v1365 = vsub.f32 %v230, %v1364
        %v1366 = vand.u32 %v1365, 4294901760
        %v1367 = vsub.f32 %v1365, %v1366
        %v1368 = vand.u32 %v1367, 4294901760
        %1369 = vmatpush1.msra.mxu0 %v1368
        %1370 = vmatprep.subr.mxu0 0.0
        %1371 = vmatpush1.msra.mxu0 0.0
        %1372 = vmatprep.subr.mxu0 0.0
        %1373 = vmatpush1.msra.mxu0 0.0
        %1374 = vmatprep.subr.mxu0 0.0
        %1375 = vmatpush1.msra.mxu0 0.0
        %1376 = vmatprep.subr.mxu0 0.0
        %1377 = vmatpush1.msra.mxu0 0.0
        %1378 = vmatprep.subr.mxu0 0.0
        %1379 = vmatpush1.msra.mxu0 0.0
        %1380 = vmatprep.subr.mxu0 0.0
        %1381 = vmatpush1.msra.mxu0 0.0
        %1382 = vmatprep.subr.mxu0 0.0
        %1383 = vmatpush1.msra.mxu0 0.0
        %1384 = vmatprep.subr.mxu0 0.0
        %1385 = vmatpush1.msra.mxu0 0.0
        %1386 = vmatprep.subr.mxu0 0.0
        %1387 = vmatpush1.msra.mxu0 0.0
        %1388 = vmatprep.subr.mxu0 0.0
        %1389 = vmatpush1.msra.mxu0 0.0
        %1390 = vmatprep.subr.mxu0 0.0
        %1391 = vmatpush1.msra.mxu0 0.0
        %1392 = vmatprep.subr.mxu0 0.0
        %1393 = vmatpush1.msra.mxu0 0.0
        %1394 = vmatprep.subr.mxu0 0.0
        %1395 = vmatpush1.msra.mxu0 0.0
        %1396 = vmatprep.subr.mxu0 0.0
        %1397 = vmatpush1.msra.mxu0 0.0
        %1398 = vmatprep.subr.mxu0 0.0
        %1399 = vmatpush1.msra.mxu0 0.0
        %1400 = vmatprep.subr.mxu0 0.0
        %1401 = vmatpush1.msra.mxu0 0.0
        %1402 = vmatprep.subr.mxu0 0.0
        %1403 = vmatpush1.msra.mxu0 0.0
        %1404 = vmatprep.subr.mxu0 0.0
        %1405 = vmatpush1.msra.mxu0 0.0
        %1406 = vmatprep.subr.mxu0 0.0
        %1407 = vmatpush1.msra.mxu0 0.0
        %1408 = vmatprep.subr.mxu0 0.0
        %1409 = vmatpush1.msra.mxu0 0.0
        %1410 = vmatprep.subr.mxu0 0.0
        %1411 = vmatpush1.msra.mxu0 0.0
        %1412 = vmatprep.subr.mxu0 0.0
        %1413 = vmatpush1.msra.mxu0 0.0
        %1414 = vmatprep.subr.mxu0 0.0
        %1415 = vmatpush1.msra.mxu0 0.0
        %1416 = vmatprep.subr.mxu0 0.0
        %1417 = vmatpush1.msra.mxu0 0.0
        %1418 = vmatprep.subr.mxu0 0.0
        %1419 = vmatpush1.msra.mxu0 0.0
        %1420 = vmatprep.subr.mxu0 0.0
        %1421 = vmatpush1.msra.mxu0 0.0
        %1422 = vmatprep.subr.mxu0 0.0
        %1423 = vmatpush1.msra.mxu0 0.0
        %1424 = vmatprep.subr.mxu0 0.0
        %1425 = vmatpush1.msra.mxu0 0.0
        %1426 = vmatprep.subr.mxu0 0.0
        %1427 = vmatpush1.msra.mxu0 0.0
        %1428 = vmatprep.subr.mxu0 0.0
        %1429 = vmatpush1.msra.mxu0 0.0
        %1430 = vmatprep.subr.mxu0 0.0
        %1431 = vmatpush1.msra.mxu0 0.0
        %1432 = vmatprep.mubr.f32.mxu0 0.0
        %v1433 = vand.u32 %v236, 4294901760
        %1434 = vmatmul.mubr.f32.gmra.mrb[0].mxu0 %v1433
        %v1435 = vpop.f32.mrb[0].mxu0
        %v1436 = vadd.f32 %v1343, %v1435
        %v1437 = vpop.f32.mrb[0].mxu0
        %v1438 = vadd.f32 %v1345, %v1437
        %1439 = vmatprep.mubr.f32.mxu0 0.0
        %v1440 = vand.u32 %v239, 4294901760
        %1441 = vmatmul.mubr.f32.gmra.mrb[0].mxu0 %v1440
        %v1442 = vpop.f32.mrb[0].mxu0
        %v1443 = vadd.f32 %v1354, %v1442
        %v1444 = vpop.f32.mrb[0].mxu0
        %v1445 = vadd.f32 %v1356, %v1444
        %1446 = vdwg.mxu0
        %v1447 = vand.u32 %v231, 4294901760
        %v1448 = vsub.f32 %v231, %v1447
        %1449 = vmatprep.subr.mxu0 %v1448
        %v1450 = vand.u32 %v230, 4294901760
        %v1451 = vsub.f32 %v230, %v1450
        %1452 = vmatpush1.msra.mxu0 %v1451
        %1453 = vmatprep.subr.mxu0 0.0
        %1454 = vmatpush1.msra.mxu0 0.0
        %1455 = vmatprep.subr.mxu0 0.0
        %1456 = vmatpush1.msra.mxu0 0.0
        %1457 = vmatprep.subr.mxu0 0.0
        %1458 = vmatpush1.msra.mxu0 0.0
        %1459 = vmatprep.subr.mxu0 0.0
        %1460 = vmatpush1.msra.mxu0 0.0
        %1461 = vmatprep.subr.mxu0 0.0
        %1462 = vmatpush1.msra.mxu0 0.0
        %1463 = vmatprep.subr.mxu0 0.0
        %1464 = vmatpush1.msra.mxu0 0.0
        %1465 = vmatprep.subr.mxu0 0.0
        %1466 = vmatpush1.msra.mxu0 0.0
        %1467 = vmatprep.subr.mxu0 0.0
        %1468 = vmatpush1.msra.mxu0 0.0
        %1469 = vmatprep.subr.mxu0 0.0
        %1470 = vmatpush1.msra.mxu0 0.0
        %1471 = vmatprep.subr.mxu0 0.0
        %1472 = vmatpush1.msra.mxu0 0.0
        %1473 = vmatprep.subr.mxu0 0.0
        %1474 = vmatpush1.msra.mxu0 0.0
        %1475 = vmatprep.subr.mxu0 0.0
        %1476 = vmatpush1.msra.mxu0 0.0
        %1477 = vmatprep.subr.mxu0 0.0
        %1478 = vmatpush1.msra.mxu0 0.0
        %1479 = vmatprep.subr.mxu0 0.0
        %1480 = vmatpush1.msra.mxu0 0.0
        %1481 = vmatprep.subr.mxu0 0.0
        %1482 = vmatpush1.msra.mxu0 0.0
        %1483 = vmatprep.subr.mxu0 0.0
        %1484 = vmatpush1.msra.mxu0 0.0
        %1485 = vmatprep.subr.mxu0 0.0
        %1486 = vmatpush1.msra.mxu0 0.0
        %1487 = vmatprep.subr.mxu0 0.0
        %1488 = vmatpush1.msra.mxu0 0.0
        %1489 = vmatprep.subr.mxu0 0.0
        %1490 = vmatpush1.msra.mxu0 0.0
        %1491 = vmatprep.subr.mxu0 0.0
        %1492 = vmatpush1.msra.mxu0 0.0
        %1493 = vmatprep.subr.mxu0 0.0
        %1494 = vmatpush1.msra.mxu0 0.0
        %1495 = vmatprep.subr.mxu0 0.0
        %1496 = vmatpush1.msra.mxu0 0.0
        %1497 = vmatprep.subr.mxu0 0.0
        %1498 = vmatpush1.msra.mxu0 0.0
        %1499 = vmatprep.subr.mxu0 0.0
        %1500 = vmatpush1.msra.mxu0 0.0
        %1501 = vmatprep.subr.mxu0 0.0
        %1502 = vmatpush1.msra.mxu0 0.0
        %1503 = vmatprep.subr.mxu0 0.0
        %1504 = vmatpush1.msra.mxu0 0.0
        %1505 = vmatprep.subr.mxu0 0.0
        %1506 = vmatpush1.msra.mxu0 0.0
        %1507 = vmatprep.subr.mxu0 0.0
        %1508 = vmatpush1.msra.mxu0 0.0
        %1509 = vmatprep.subr.mxu0 0.0
        %1510 = vmatpush1.msra.mxu0 0.0
        %1511 = vmatprep.subr.mxu0 0.0
        %1512 = vmatpush1.msra.mxu0 0.0
        %1513 = vmatprep.subr.mxu0 0.0
        %1514 = vmatpush1.msra.mxu0 0.0
        %1515 = vmatprep.mubr.f32.mxu0 0.0
        %v1516 = vand.u32 %v236, 4294901760
        %v1517 = vsub.f32 %v236, %v1516
        %1518 = vmatmul.mubr.f32.gmra.mrb[0].mxu0 %v1517
        %v1519 = vpop.f32.mrb[0].mxu0
        %v1520 = vadd.f32 %v1436, %v1519
        %v1521 = vpop.f32.mrb[0].mxu0
        %v1522 = vadd.f32 %v1438, %v1521
        %1523 = vmatprep.mubr.f32.mxu0 0.0
        %v1524 = vand.u32 %v239, 4294901760
        %v1525 = vsub.f32 %v239, %v1524
        %1526 = vmatmul.mubr.f32.gmra.mrb[0].mxu0 %v1525
        %v1527 = vpop.f32.mrb[0].mxu0
        %v1528 = vadd.f32 %v1443, %v1527
        %v1529 = vpop.f32.mrb[0].mxu0
        %v1530 = vadd.f32 %v1445, %v1529
        %1531 = vdwg.mxu0
        %v1532 = vand.u32 %v231, 4294901760
        %1533 = vmatprep.subr.mxu0 %v1532
        %v1534 = vand.u32 %v230, 4294901760
        %1535 = vmatpush1.msra.mxu0 %v1534
        %1536 = vmatprep.subr.mxu0 0.0
        %1537 = vmatpush1.msra.mxu0 0.0
        %1538 = vmatprep.subr.mxu0 0.0
        %1539 = vmatpush1.msra.mxu0 0.0
        %1540 = vmatprep.subr.mxu0 0.0
        %1541 = vmatpush1.msra.mxu0 0.0
        %1542 = vmatprep.subr.mxu0 0.0
        %1543 = vmatpush1.msra.mxu0 0.0
        %1544 = vmatprep.subr.mxu0 0.0
        %1545 = vmatpush1.msra.mxu0 0.0
        %1546 = vmatprep.subr.mxu0 0.0
        %1547 = vmatpush1.msra.mxu0 0.0
        %1548 = vmatprep.subr.mxu0 0.0
        %1549 = vmatpush1.msra.mxu0 0.0
        %1550 = vmatprep.subr.mxu0 0.0
        %1551 = vmatpush1.msra.mxu0 0.0
        %1552 = vmatprep.subr.mxu0 0.0
        %1553 = vmatpush1.msra.mxu0 0.0
        %1554 = vmatprep.subr.mxu0 0.0
        %1555 = vmatpush1.msra.mxu0 0.0
        %1556 = vmatprep.subr.mxu0 0.0
        %1557 = vmatpush1.msra.mxu0 0.0
        %1558 = vmatprep.subr.mxu0 0.0
        %1559 = vmatpush1.msra.mxu0 0.0
        %1560 = vmatprep.subr.mxu0 0.0
        %1561 = vmatpush1.msra.mxu0 0.0
        %1562 = vmatprep.subr.mxu0 0.0
        %1563 = vmatpush1.msra.mxu0 0.0
        %1564 = vmatprep.subr.mxu0 0.0
        %1565 = vmatpush1.msra.mxu0 0.0
        %1566 = vmatprep.subr.mxu0 0.0
        %1567 = vmatpush1.msra.mxu0 0.0
        %1568 = vmatprep.subr.mxu0 0.0
        %1569 = vmatpush1.msra.mxu0 0.0
        %1570 = vmatprep.subr.mxu0 0.0
        %1571 = vmatpush1.msra.mxu0 0.0
        %1572 = vmatprep.subr.mxu0 0.0
        %1573 = vmatpush1.msra.mxu0 0.0
        %1574 = vmatprep.subr.mxu0 0.0
        %1575 = vmatpush1.msra.mxu0 0.0
        %1576 = vmatprep.subr.mxu0 0.0
        %1577 = vmatpush1.msra.mxu0 0.0
        %1578 = vmatprep.subr.mxu0 0.0
        %1579 = vmatpush1.msra.mxu0 0.0
        %1580 = vmatprep.subr.mxu0 0.0
        %1581 = vmatpush1.msra.mxu0 0.0
        %1582 = vmatprep.subr.mxu0 0.0
        %1583 = vmatpush1.msra.mxu0 0.0
        %1584 = vmatprep.subr.mxu0 0.0
        %1585 = vmatpush1.msra.mxu0 0.0
        %1586 = vmatprep.subr.mxu0 0.0
        %1587 = vmatpush1.msra.mxu0 0.0
        %1588 = vmatprep.subr.mxu0 0.0
        %1589 = vmatpush1.msra.mxu0 0.0
        %1590 = vmatprep.subr.mxu0 0.0
        %1591 = vmatpush1.msra.mxu0 0.0
        %1592 = vmatprep.subr.mxu0 0.0
        %1593 = vmatpush1.msra.mxu0 0.0
        %1594 = vmatprep.subr.mxu0 0.0
        %1595 = vmatpush1.msra.mxu0 0.0
        %1596 = vmatprep.subr.mxu0 0.0
        %1597 = vmatpush1.msra.mxu0 0.0
        %1598 = vmatprep.mubr.f32.mxu0 0.0
        %v1599 = vand.u32 %v236, 4294901760
        %v1600 = vsub.f32 %v236, %v1599
        %v1601 = vand.u32 %v1600, 4294901760
        %1602 = vmatmul.mubr.f32.gmra.mrb[0].mxu0 %v1601
        %v1603 = vpop.f32.mrb[0].mxu0
        %v1604 = vadd.f32 %v1520, %v1603
        %v1605 = vpop.f32.mrb[0].mxu0
        %v1606 = vadd.f32 %v1522, %v1605
        %1607 = vmatprep.mubr.f32.mxu0 0.0
        %v1608 = vand.u32 %v239, 4294901760
        %v1609 = vsub.f32 %v239, %v1608
        %v1610 = vand.u32 %v1609, 4294901760
        %1611 = vmatmul.mubr.f32.gmra.mrb[0].mxu0 %v1610
        %v1612 = vpop.f32.mrb[0].mxu0
        %v1613 = vadd.f32 %v1528, %v1612
        %v1614 = vpop.f32.mrb[0].mxu0
        %v1615 = vadd.f32 %v1530, %v1614
        %1616 = vdwg.mxu0
        %v1617 = vand.u32 %v231, 4294901760
        %v1618 = vsub.f32 %v231, %v1617
        %v1619 = vand.u32 %v1618, 4294901760
        %1620 = vmatprep.subr.mxu0 %v1619
        %v1621 = vand.u32 %v230, 4294901760
        %v1622 = vsub.f32 %v230, %v1621
        %v1623 = vand.u32 %v1622, 4294901760
        %1624 = vmatpush1.msra.mxu0 %v1623
        %1625 = vmatprep.subr.mxu0 0.0
        %1626 = vmatpush1.msra.mxu0 0.0
        %1627 = vmatprep.subr.mxu0 0.0
        %1628 = vmatpush1.msra.mxu0 0.0
        %1629 = vmatprep.subr.mxu0 0.0
        %1630 = vmatpush1.msra.mxu0 0.0
        %1631 = vmatprep.subr.mxu0 0.0
        %1632 = vmatpush1.msra.mxu0 0.0
        %1633 = vmatprep.subr.mxu0 0.0
        %1634 = vmatpush1.msra.mxu0 0.0
        %1635 = vmatprep.subr.mxu0 0.0
        %1636 = vmatpush1.msra.mxu0 0.0
        %1637 = vmatprep.subr.mxu0 0.0
        %1638 = vmatpush1.msra.mxu0 0.0
        %1639 = vmatprep.subr.mxu0 0.0
        %1640 = vmatpush1.msra.mxu0 0.0
        %1641 = vmatprep.subr.mxu0 0.0
        %1642 = vmatpush1.msra.mxu0 0.0
        %1643 = vmatprep.subr.mxu0 0.0
        %1644 = vmatpush1.msra.mxu0 0.0
        %1645 = vmatprep.subr.mxu0 0.0
        %1646 = vmatpush1.msra.mxu0 0.0
        %1647 = vmatprep.subr.mxu0 0.0
        %1648 = vmatpush1.msra.mxu0 0.0
        %1649 = vmatprep.subr.mxu0 0.0
        %1650 = vmatpush1.msra.mxu0 0.0
        %1651 = vmatprep.subr.mxu0 0.0
        %1652 = vmatpush1.msra.mxu0 0.0
        %1653 = vmatprep.subr.mxu0 0.0
        %1654 = vmatpush1.msra.mxu0 0.0
        %1655 = vmatprep.subr.mxu0 0.0
        %1656 = vmatpush1.msra.mxu0 0.0
        %1657 = vmatprep.subr.mxu0 0.0
        %1658 = vmatpush1.msra.mxu0 0.0
        %1659 = vmatprep.subr.mxu0 0.0
        %1660 = vmatpush1.msra.mxu0 0.0
        %1661 = vmatprep.subr.mxu0 0.0
        %1662 = vmatpush1.msra.mxu0 0.0
        %1663 = vmatprep.subr.mxu0 0.0
        %1664 = vmatpush1.msra.mxu0 0.0
        %1665 = vmatprep.subr.mxu0 0.0
        %1666 = vmatpush1.msra.mxu0 0.0
        %1667 = vmatprep.subr.mxu0 0.0
        %1668 = vmatpush1.msra.mxu0 0.0
        %1669 = vmatprep.subr.mxu0 0.0
        %1670 = vmatpush1.msra.mxu0 0.0
        %1671 = vmatprep.subr.mxu0 0.0
        %1672 = vmatpush1.msra.mxu0 0.0
        %1673 = vmatprep.subr.mxu0 0.0
        %1674 = vmatpush1.msra.mxu0 0.0
        %1675 = vmatprep.subr.mxu0 0.0
        %1676 = vmatpush1.msra.mxu0 0.0
        %1677 = vmatprep.subr.mxu0 0.0
        %1678 = vmatpush1.msra.mxu0 0.0
        %1679 = vmatprep.subr.mxu0 0.0
        %1680 = vmatpush1.msra.mxu0 0.0
        %1681 = vmatprep.subr.mxu0 0.0
        %1682 = vmatpush1.msra.mxu0 0.0
        %1683 = vmatprep.subr.mxu0 0.0
        %1684 = vmatpush1.msra.mxu0 0.0
        %1685 = vmatprep.subr.mxu0 0.0
        %1686 = vmatpush1.msra.mxu0 0.0
        %1687 = vmatprep.mubr.f32.mxu0 0.0
        %v1688 = vand.u32 %v236, 4294901760
        %1689 = vmatmul.mubr.f32.gmra.mrb[0].mxu0 %v1688
        %v1690 = vpop.f32.mrb[0].mxu0
        %v1691 = vadd.f32 %v1604, %v1690
        %v1692 = vpop.f32.mrb[0].mxu0
        %v1693 = vadd.f32 %v1606, %v1692
        %1694 = vmatprep.mubr.f32.mxu0 0.0
        %v1695 = vand.u32 %v239, 4294901760
        %1696 = vmatmul.mubr.f32.gmra.mrb[0].mxu0 %v1695
        %v1697 = vpop.f32.mrb[0].mxu0
        %v1698 = vadd.f32 %v1613, %v1697
        %v1699 = vpop.f32.mrb[0].mxu0
        %v1700 = vadd.f32 %v1615, %v1699
        %1701 = vdwg.mxu0
        %v1702 = vand.u32 %v231, 4294901760
        %1703 = vmatprep.subr.mxu0 %v1702
        %v1704 = vand.u32 %v230, 4294901760
        %1705 = vmatpush1.msra.mxu0 %v1704
        %1706 = vmatprep.subr.mxu0 0.0
        %1707 = vmatpush1.msra.mxu0 0.0
        %1708 = vmatprep.subr.mxu0 0.0
        %1709 = vmatpush1.msra.mxu0 0.0
        %1710 = vmatprep.subr.mxu0 0.0
        %1711 = vmatpush1.msra.mxu0 0.0
        %1712 = vmatprep.subr.mxu0 0.0
        %1713 = vmatpush1.msra.mxu0 0.0
        %1714 = vmatprep.subr.mxu0 0.0
        %1715 = vmatpush1.msra.mxu0 0.0
        %1716 = vmatprep.subr.mxu0 0.0
        %1717 = vmatpush1.msra.mxu0 0.0
        %1718 = vmatprep.subr.mxu0 0.0
        %1719 = vmatpush1.msra.mxu0 0.0
        %1720 = vmatprep.subr.mxu0 0.0
        %1721 = vmatpush1.msra.mxu0 0.0
        %1722 = vmatprep.subr.mxu0 0.0
        %1723 = vmatpush1.msra.mxu0 0.0
        %1724 = vmatprep.subr.mxu0 0.0
        %1725 = vmatpush1.msra.mxu0 0.0
        %1726 = vmatprep.subr.mxu0 0.0
        %1727 = vmatpush1.msra.mxu0 0.0
        %1728 = vmatprep.subr.mxu0 0.0
        %1729 = vmatpush1.msra.mxu0 0.0
        %1730 = vmatprep.subr.mxu0 0.0
        %1731 = vmatpush1.msra.mxu0 0.0
        %1732 = vmatprep.subr.mxu0 0.0
        %1733 = vmatpush1.msra.mxu0 0.0
        %1734 = vmatprep.subr.mxu0 0.0
        %1735 = vmatpush1.msra.mxu0 0.0
        %1736 = vmatprep.subr.mxu0 0.0
        %1737 = vmatpush1.msra.mxu0 0.0
        %1738 = vmatprep.subr.mxu0 0.0
        %1739 = vmatpush1.msra.mxu0 0.0
        %1740 = vmatprep.subr.mxu0 0.0
        %1741 = vmatpush1.msra.mxu0 0.0
        %1742 = vmatprep.subr.mxu0 0.0
        %1743 = vmatpush1.msra.mxu0 0.0
        %1744 = vmatprep.subr.mxu0 0.0
        %1745 = vmatpush1.msra.mxu0 0.0
        %1746 = vmatprep.subr.mxu0 0.0
        %1747 = vmatpush1.msra.mxu0 0.0
        %1748 = vmatprep.subr.mxu0 0.0
        %1749 = vmatpush1.msra.mxu0 0.0
        %1750 = vmatprep.subr.mxu0 0.0
        %1751 = vmatpush1.msra.mxu0 0.0
        %1752 = vmatprep.subr.mxu0 0.0
        %1753 = vmatpush1.msra.mxu0 0.0
        %1754 = vmatprep.subr.mxu0 0.0
        %1755 = vmatpush1.msra.mxu0 0.0
        %1756 = vmatprep.subr.mxu0 0.0
        %1757 = vmatpush1.msra.mxu0 0.0
        %1758 = vmatprep.subr.mxu0 0.0
        %1759 = vmatpush1.msra.mxu0 0.0
        %1760 = vmatprep.subr.mxu0 0.0
        %1761 = vmatpush1.msra.mxu0 0.0
        %1762 = vmatprep.subr.mxu0 0.0
        %1763 = vmatpush1.msra.mxu0 0.0
        %1764 = vmatprep.subr.mxu0 0.0
        %1765 = vmatpush1.msra.mxu0 0.0
        %1766 = vmatprep.subr.mxu0 0.0
        %1767 = vmatpush1.msra.mxu0 0.0
        %1768 = vmatprep.mubr.f32.mxu0 0.0
        %v1769 = vand.u32 %v236, 4294901760
        %1770 = vmatmul.mubr.f32.gmra.mrb[0].mxu0 %v1769
        %v1771 = vpop.f32.mrb[0].mxu0
        %v1772 = vadd.f32 %v1691, %v1771
        %v1773 = vpop.f32.mrb[0].mxu0
        %v1774 = vadd.f32 %v1693, %v1773
        %1775 = vmatprep.mubr.f32.mxu0 0.0
        %v1776 = vand.u32 %v239, 4294901760
        %1777 = vmatmul.mubr.f32.gmra.mrb[0].mxu0 %v1776
        %v1778 = vpop.f32.mrb[0].mxu0
        %v1779 = vadd.f32 %v1698, %v1778
        %v1780 = vpop.f32.mrb[0].mxu0
        %v1781 = vadd.f32 %v1700, %v1780
        %1782 = vdwg.mxu0
        %v1783 = vand.u32 %v233, 4294901760
        %1784 = vmatprep.subr.mxu0 %v1783
        %v1785 = vand.u32 %v232, 4294901760
        %1786 = vmatpush1.msra.mxu0 %v1785
        %1787 = vmatprep.subr.mxu0 0.0
        %1788 = vmatpush1.msra.mxu0 0.0
        %1789 = vmatprep.subr.mxu0 0.0
        %1790 = vmatpush1.msra.mxu0 0.0
        %1791 = vmatprep.subr.mxu0 0.0
        %1792 = vmatpush1.msra.mxu0 0.0
        %1793 = vmatprep.subr.mxu0 0.0
        %1794 = vmatpush1.msra.mxu0 0.0
        %1795 = vmatprep.subr.mxu0 0.0
        %1796 = vmatpush1.msra.mxu0 0.0
        %1797 = vmatprep.subr.mxu0 0.0
        %1798 = vmatpush1.msra.mxu0 0.0
        %1799 = vmatprep.subr.mxu0 0.0
        %1800 = vmatpush1.msra.mxu0 0.0
        %1801 = vmatprep.subr.mxu0 0.0
        %1802 = vmatpush1.msra.mxu0 0.0
        %1803 = vmatprep.subr.mxu0 0.0
        %1804 = vmatpush1.msra.mxu0 0.0
        %1805 = vmatprep.subr.mxu0 0.0
        %1806 = vmatpush1.msra.mxu0 0.0
        %1807 = vmatprep.subr.mxu0 0.0
        %1808 = vmatpush1.msra.mxu0 0.0
        %1809 = vmatprep.subr.mxu0 0.0
        %1810 = vmatpush1.msra.mxu0 0.0
        %1811 = vmatprep.subr.mxu0 0.0
        %1812 = vmatpush1.msra.mxu0 0.0
        %1813 = vmatprep.subr.mxu0 0.0
        %1814 = vmatpush1.msra.mxu0 0.0
        %1815 = vmatprep.subr.mxu0 0.0
        %1816 = vmatpush1.msra.mxu0 0.0
        %1817 = vmatprep.subr.mxu0 0.0
        %1818 = vmatpush1.msra.mxu0 0.0
        %1819 = vmatprep.subr.mxu0 0.0
        %1820 = vmatpush1.msra.mxu0 0.0
        %1821 = vmatprep.subr.mxu0 0.0
        %1822 = vmatpush1.msra.mxu0 0.0
        %1823 = vmatprep.subr.mxu0 0.0
        %1824 = vmatpush1.msra.mxu0 0.0
        %1825 = vmatprep.subr.mxu0 0.0
        %1826 = vmatpush1.msra.mxu0 0.0
        %1827 = vmatprep.subr.mxu0 0.0
        %1828 = vmatpush1.msra.mxu0 0.0
        %1829 = vmatprep.subr.mxu0 0.0
        %1830 = vmatpush1.msra.mxu0 0.0
        %1831 = vmatprep.subr.mxu0 0.0
        %1832 = vmatpush1.msra.mxu0 0.0
        %1833 = vmatprep.subr.mxu0 0.0
        %1834 = vmatpush1.msra.mxu0 0.0
        %1835 = vmatprep.subr.mxu0 0.0
        %1836 = vmatpush1.msra.mxu0 0.0
        %1837 = vmatprep.subr.mxu0 0.0
        %1838 = vmatpush1.msra.mxu0 0.0
        %1839 = vmatprep.subr.mxu0 0.0
        %1840 = vmatpush1.msra.mxu0 0.0
        %1841 = vmatprep.subr.mxu0 0.0
        %1842 = vmatpush1.msra.mxu0 0.0
        %1843 = vmatprep.subr.mxu0 0.0
        %1844 = vmatpush1.msra.mxu0 0.0
        %1845 = vmatprep.subr.mxu0 0.0
        %1846 = vmatpush1.msra.mxu0 0.0
        %1847 = vmatprep.subr.mxu0 0.0
        %1848 = vmatpush1.msra.mxu0 0.0
        %1849 = vmatprep.mubr.f32.mxu0 0.0
        %v1850 = vand.u32 %v236, 4294901760
        %v1851 = vsub.f32 %v236, %v1850
        %v1852 = vand.u32 %v1851, 4294901760
        %v1853 = vsub.f32 %v1851, %v1852
        %v1854 = vand.u32 %v1853, 4294901760
        %1855 = vmatmul.mubr.f32.gmra.mrb[0].mxu0 %v1854
        %v1856 = vpop.f32.mrb[0].mxu0
        %v1857 = vadd.f32 0.0, %v1856
        %v1858 = vpop.f32.mrb[0].mxu0
        %v1859 = vadd.f32 0.0, %v1858
        %1860 = vmatprep.mubr.f32.mxu0 0.0
        %v1861 = vand.u32 %v239, 4294901760
        %v1862 = vsub.f32 %v239, %v1861
        %v1863 = vand.u32 %v1862, 4294901760
        %v1864 = vsub.f32 %v1862, %v1863
        %v1865 = vand.u32 %v1864, 4294901760
        %1866 = vmatmul.mubr.f32.gmra.mrb[0].mxu0 %v1865
        %v1867 = vpop.f32.mrb[0].mxu0
        %v1868 = vadd.f32 0.0, %v1867
        %v1869 = vpop.f32.mrb[0].mxu0
        %v1870 = vadd.f32 0.0, %v1869
        %1871 = vdwg.mxu0
        %v1872 = vand.u32 %v233, 4294901760
        %v1873 = vsub.f32 %v233, %v1872
        %v1874 = vand.u32 %v1873, 4294901760
        %v1875 = vsub.f32 %v1873, %v1874
        %v1876 = vand.u32 %v1875, 4294901760
        %1877 = vmatprep.subr.mxu0 %v1876
        %v1878 = vand.u32 %v232, 4294901760
        %v1879 = vsub.f32 %v232, %v1878
        %v1880 = vand.u32 %v1879, 4294901760
        %v1881 = vsub.f32 %v1879, %v1880
        %v1882 = vand.u32 %v1881, 4294901760
        %1883 = vmatpush1.msra.mxu0 %v1882
        %1884 = vmatprep.subr.mxu0 0.0
        %1885 = vmatpush1.msra.mxu0 0.0
        %1886 = vmatprep.subr.mxu0 0.0
        %1887 = vmatpush1.msra.mxu0 0.0
        %1888 = vmatprep.subr.mxu0 0.0
        %1889 = vmatpush1.msra.mxu0 0.0
        %1890 = vmatprep.subr.mxu0 0.0
        %1891 = vmatpush1.msra.mxu0 0.0
        %1892 = vmatprep.subr.mxu0 0.0
        %1893 = vmatpush1.msra.mxu0 0.0
        %1894 = vmatprep.subr.mxu0 0.0
        %1895 = vmatpush1.msra.mxu0 0.0
        %1896 = vmatprep.subr.mxu0 0.0
        %1897 = vmatpush1.msra.mxu0 0.0
        %1898 = vmatprep.subr.mxu0 0.0
        %1899 = vmatpush1.msra.mxu0 0.0
        %1900 = vmatprep.subr.mxu0 0.0
        %1901 = vmatpush1.msra.mxu0 0.0
        %1902 = vmatprep.subr.mxu0 0.0
        %1903 = vmatpush1.msra.mxu0 0.0
        %1904 = vmatprep.subr.mxu0 0.0
        %1905 = vmatpush1.msra.mxu0 0.0
        %1906 = vmatprep.subr.mxu0 0.0
        %1907 = vmatpush1.msra.mxu0 0.0
        %1908 = vmatprep.subr.mxu0 0.0
        %1909 = vmatpush1.msra.mxu0 0.0
        %1910 = vmatprep.subr.mxu0 0.0
        %1911 = vmatpush1.msra.mxu0 0.0
        %1912 = vmatprep.subr.mxu0 0.0
        %1913 = vmatpush1.msra.mxu0 0.0
        %1914 = vmatprep.subr.mxu0 0.0
        %1915 = vmatpush1.msra.mxu0 0.0
        %1916 = vmatprep.subr.mxu0 0.0
        %1917 = vmatpush1.msra.mxu0 0.0
        %1918 = vmatprep.subr.mxu0 0.0
        %1919 = vmatpush1.msra.mxu0 0.0
        %1920 = vmatprep.subr.mxu0 0.0
        %1921 = vmatpush1.msra.mxu0 0.0
        %1922 = vmatprep.subr.mxu0 0.0
        %1923 = vmatpush1.msra.mxu0 0.0
        %1924 = vmatprep.subr.mxu0 0.0
        %1925 = vmatpush1.msra.mxu0 0.0
        %1926 = vmatprep.subr.mxu0 0.0
        %1927 = vmatpush1.msra.mxu0 0.0
        %1928 = vmatprep.subr.mxu0 0.0
        %1929 = vmatpush1.msra.mxu0 0.0
        %1930 = vmatprep.subr.mxu0 0.0
        %1931 = vmatpush1.msra.mxu0 0.0
        %1932 = vmatprep.subr.mxu0 0.0
        %1933 = vmatpush1.msra.mxu0 0.0
        %1934 = vmatprep.subr.mxu0 0.0
        %1935 = vmatpush1.msra.mxu0 0.0
        %1936 = vmatprep.subr.mxu0 0.0
        %1937 = vmatpush1.msra.mxu0 0.0
        %1938 = vmatprep.subr.mxu0 0.0
        %1939 = vmatpush1.msra.mxu0 0.0
        %1940 = vmatprep.subr.mxu0 0.0
        %1941 = vmatpush1.msra.mxu0 0.0
        %1942 = vmatprep.subr.mxu0 0.0
        %1943 = vmatpush1.msra.mxu0 0.0
        %1944 = vmatprep.subr.mxu0 0.0
        %1945 = vmatpush1.msra.mxu0 0.0
        %1946 = vmatprep.mubr.f32.mxu0 0.0
        %v1947 = vand.u32 %v236, 4294901760
        %1948 = vmatmul.mubr.f32.gmra.mrb[0].mxu0 %v1947
        %v1949 = vpop.f32.mrb[0].mxu0
        %v1950 = vadd.f32 %v1857, %v1949
        %v1951 = vpop.f32.mrb[0].mxu0
        %v1952 = vadd.f32 %v1859, %v1951
        %1953 = vmatprep.mubr.f32.mxu0 0.0
        %v1954 = vand.u32 %v239, 4294901760
        %1955 = vmatmul.mubr.f32.gmra.mrb[0].mxu0 %v1954
        %v1956 = vpop.f32.mrb[0].mxu0
        %v1957 = vadd.f32 %v1868, %v1956
        %v1958 = vpop.f32.mrb[0].mxu0
        %v1959 = vadd.f32 %v1870, %v1958
        %1960 = vdwg.mxu0
        %v1961 = vand.u32 %v233, 4294901760
        %v1962 = vsub.f32 %v233, %v1961
        %1963 = vmatprep.subr.mxu0 %v1962
        %v1964 = vand.u32 %v232, 4294901760
        %v1965 = vsub.f32 %v232, %v1964
        %1966 = vmatpush1.msra.mxu0 %v1965
        %1967 = vmatprep.subr.mxu0 0.0
        %1968 = vmatpush1.msra.mxu0 0.0
        %1969 = vmatprep.subr.mxu0 0.0
        %1970 = vmatpush1.msra.mxu0 0.0
        %1971 = vmatprep.subr.mxu0 0.0
        %1972 = vmatpush1.msra.mxu0 0.0
        %1973 = vmatprep.subr.mxu0 0.0
        %1974 = vmatpush1.msra.mxu0 0.0
        %1975 = vmatprep.subr.mxu0 0.0
        %1976 = vmatpush1.msra.mxu0 0.0
        %1977 = vmatprep.subr.mxu0 0.0
        %1978 = vmatpush1.msra.mxu0 0.0
        %1979 = vmatprep.subr.mxu0 0.0
        %1980 = vmatpush1.msra.mxu0 0.0
        %1981 = vmatprep.subr.mxu0 0.0
        %1982 = vmatpush1.msra.mxu0 0.0
        %1983 = vmatprep.subr.mxu0 0.0
        %1984 = vmatpush1.msra.mxu0 0.0
        %1985 = vmatprep.subr.mxu0 0.0
        %1986 = vmatpush1.msra.mxu0 0.0
        %1987 = vmatprep.subr.mxu0 0.0
        %1988 = vmatpush1.msra.mxu0 0.0
        %1989 = vmatprep.subr.mxu0 0.0
        %1990 = vmatpush1.msra.mxu0 0.0
        %1991 = vmatprep.subr.mxu0 0.0
        %1992 = vmatpush1.msra.mxu0 0.0
        %1993 = vmatprep.subr.mxu0 0.0
        %1994 = vmatpush1.msra.mxu0 0.0
        %1995 = vmatprep.subr.mxu0 0.0
        %1996 = vmatpush1.msra.mxu0 0.0
        %1997 = vmatprep.subr.mxu0 0.0
        %1998 = vmatpush1.msra.mxu0 0.0
        %1999 = vmatprep.subr.mxu0 0.0
        %2000 = vmatpush1.msra.mxu0 0.0
        %2001 = vmatprep.subr.mxu0 0.0
        %2002 = vmatpush1.msra.mxu0 0.0
        %2003 = vmatprep.subr.mxu0 0.0
        %2004 = vmatpush1.msra.mxu0 0.0
        %2005 = vmatprep.subr.mxu0 0.0
        %2006 = vmatpush1.msra.mxu0 0.0
        %2007 = vmatprep.subr.mxu0 0.0
        %2008 = vmatpush1.msra.mxu0 0.0
        %2009 = vmatprep.subr.mxu0 0.0
        %2010 = vmatpush1.msra.mxu0 0.0
        %2011 = vmatprep.subr.mxu0 0.0
        %2012 = vmatpush1.msra.mxu0 0.0
        %2013 = vmatprep.subr.mxu0 0.0
        %2014 = vmatpush1.msra.mxu0 0.0
        %2015 = vmatprep.subr.mxu0 0.0
        %2016 = vmatpush1.msra.mxu0 0.0
        %2017 = vmatprep.subr.mxu0 0.0
        %2018 = vmatpush1.msra.mxu0 0.0
        %2019 = vmatprep.subr.mxu0 0.0
        %2020 = vmatpush1.msra.mxu0 0.0
        %2021 = vmatprep.subr.mxu0 0.0
        %2022 = vmatpush1.msra.mxu0 0.0
        %2023 = vmatprep.subr.mxu0 0.0
        %2024 = vmatpush1.msra.mxu0 0.0
        %2025 = vmatprep.subr.mxu0 0.0
        %2026 = vmatpush1.msra.mxu0 0.0
        %2027 = vmatprep.subr.mxu0 0.0
        %2028 = vmatpush1.msra.mxu0 0.0
        %2029 = vmatprep.mubr.f32.mxu0 0.0
        %v2030 = vand.u32 %v236, 4294901760
        %v2031 = vsub.f32 %v236, %v2030
        %2032 = vmatmul.mubr.f32.gmra.mrb[0].mxu0 %v2031
        %v2033 = vpop.f32.mrb[0].mxu0
        %v2034 = vadd.f32 %v1950, %v2033
        %v2035 = vpop.f32.mrb[0].mxu0
        %v2036 = vadd.f32 %v1952, %v2035
        %2037 = vmatprep.mubr.f32.mxu0 0.0
        %v2038 = vand.u32 %v239, 4294901760
        %v2039 = vsub.f32 %v239, %v2038
        %2040 = vmatmul.mubr.f32.gmra.mrb[0].mxu0 %v2039
        %v2041 = vpop.f32.mrb[0].mxu0
        %v2042 = vadd.f32 %v1957, %v2041
        %v2043 = vpop.f32.mrb[0].mxu0
        %v2044 = vadd.f32 %v1959, %v2043
        %2045 = vdwg.mxu0
        %v2046 = vand.u32 %v233, 4294901760
        %2047 = vmatprep.subr.mxu0 %v2046
        %v2048 = vand.u32 %v232, 4294901760
        %2049 = vmatpush1.msra.mxu0 %v2048
        %2050 = vmatprep.subr.mxu0 0.0
        %2051 = vmatpush1.msra.mxu0 0.0
        %2052 = vmatprep.subr.mxu0 0.0
        %2053 = vmatpush1.msra.mxu0 0.0
        %2054 = vmatprep.subr.mxu0 0.0
        %2055 = vmatpush1.msra.mxu0 0.0
        %2056 = vmatprep.subr.mxu0 0.0
        %2057 = vmatpush1.msra.mxu0 0.0
        %2058 = vmatprep.subr.mxu0 0.0
        %2059 = vmatpush1.msra.mxu0 0.0
        %2060 = vmatprep.subr.mxu0 0.0
        %2061 = vmatpush1.msra.mxu0 0.0
        %2062 = vmatprep.subr.mxu0 0.0
        %2063 = vmatpush1.msra.mxu0 0.0
        %2064 = vmatprep.subr.mxu0 0.0
        %2065 = vmatpush1.msra.mxu0 0.0
        %2066 = vmatprep.subr.mxu0 0.0
        %2067 = vmatpush1.msra.mxu0 0.0
        %2068 = vmatprep.subr.mxu0 0.0
        %2069 = vmatpush1.msra.mxu0 0.0
        %2070 = vmatprep.subr.mxu0 0.0
        %2071 = vmatpush1.msra.mxu0 0.0
        %2072 = vmatprep.subr.mxu0 0.0
        %2073 = vmatpush1.msra.mxu0 0.0
        %2074 = vmatprep.subr.mxu0 0.0
        %2075 = vmatpush1.msra.mxu0 0.0
        %2076 = vmatprep.subr.mxu0 0.0
        %2077 = vmatpush1.msra.mxu0 0.0
        %2078 = vmatprep.subr.mxu0 0.0
        %2079 = vmatpush1.msra.mxu0 0.0
        %2080 = vmatprep.subr.mxu0 0.0
        %2081 = vmatpush1.msra.mxu0 0.0
        %2082 = vmatprep.subr.mxu0 0.0
        %2083 = vmatpush1.msra.mxu0 0.0
        %2084 = vmatprep.subr.mxu0 0.0
        %2085 = vmatpush1.msra.mxu0 0.0
        %2086 = vmatprep.subr.mxu0 0.0
        %2087 = vmatpush1.msra.mxu0 0.0
        %2088 = vmatprep.subr.mxu0 0.0
        %2089 = vmatpush1.msra.mxu0 0.0
        %2090 = vmatprep.subr.mxu0 0.0
        %2091 = vmatpush1.msra.mxu0 0.0
        %2092 = vmatprep.subr.mxu0 0.0
        %2093 = vmatpush1.msra.mxu0 0.0
        %2094 = vmatprep.subr.mxu0 0.0
        %2095 = vmatpush1.msra.mxu0 0.0
        %2096 = vmatprep.subr.mxu0 0.0
        %2097 = vmatpush1.msra.mxu0 0.0
        %2098 = vmatprep.subr.mxu0 0.0
        %2099 = vmatpush1.msra.mxu0 0.0
        %2100 = vmatprep.subr.mxu0 0.0
        %2101 = vmatpush1.msra.mxu0 0.0
        %2102 = vmatprep.subr.mxu0 0.0
        %2103 = vmatpush1.msra.mxu0 0.0
        %2104 = vmatprep.subr.mxu0 0.0
        %2105 = vmatpush1.msra.mxu0 0.0
        %2106 = vmatprep.subr.mxu0 0.0
        %2107 = vmatpush1.msra.mxu0 0.0
        %2108 = vmatprep.subr.mxu0 0.0
        %2109 = vmatpush1.msra.mxu0 0.0
        %2110 = vmatprep.subr.mxu0 0.0
        %2111 = vmatpush1.msra.mxu0 0.0
        %2112 = vmatprep.mubr.f32.mxu0 0.0
        %v2113 = vand.u32 %v236, 4294901760
        %v2114 = vsub.f32 %v236, %v2113
        %v2115 = vand.u32 %v2114, 4294901760
        %2116 = vmatmul.mubr.f32.gmra.mrb[0].mxu0 %v2115
        %v2117 = vpop.f32.mrb[0].mxu0
        %v2118 = vadd.f32 %v2034, %v2117
        %v2119 = vpop.f32.mrb[0].mxu0
        %v2120 = vadd.f32 %v2036, %v2119
        %2121 = vmatprep.mubr.f32.mxu0 0.0
        %v2122 = vand.u32 %v239, 4294901760
        %v2123 = vsub.f32 %v239, %v2122
        %v2124 = vand.u32 %v2123, 4294901760
        %2125 = vmatmul.mubr.f32.gmra.mrb[0].mxu0 %v2124
        %v2126 = vpop.f32.mrb[0].mxu0
        %v2127 = vadd.f32 %v2042, %v2126
        %v2128 = vpop.f32.mrb[0].mxu0
        %v2129 = vadd.f32 %v2044, %v2128
        %2130 = vdwg.mxu0
        %v2131 = vand.u32 %v233, 4294901760
        %v2132 = vsub.f32 %v233, %v2131
        %v2133 = vand.u32 %v2132, 4294901760
        %2134 = vmatprep.subr.mxu0 %v2133
        %v2135 = vand.u32 %v232, 4294901760
        %v2136 = vsub.f32 %v232, %v2135
        %v2137 = vand.u32 %v2136, 4294901760
        %2138 = vmatpush1.msra.mxu0 %v2137
        %2139 = vmatprep.subr.mxu0 0.0
        %2140 = vmatpush1.msra.mxu0 0.0
        %2141 = vmatprep.subr.mxu0 0.0
        %2142 = vmatpush1.msra.mxu0 0.0
        %2143 = vmatprep.subr.mxu0 0.0
        %2144 = vmatpush1.msra.mxu0 0.0
        %2145 = vmatprep.subr.mxu0 0.0
        %2146 = vmatpush1.msra.mxu0 0.0
        %2147 = vmatprep.subr.mxu0 0.0
        %2148 = vmatpush1.msra.mxu0 0.0
        %2149 = vmatprep.subr.mxu0 0.0
        %2150 = vmatpush1.msra.mxu0 0.0
        %2151 = vmatprep.subr.mxu0 0.0
        %2152 = vmatpush1.msra.mxu0 0.0
        %2153 = vmatprep.subr.mxu0 0.0
        %2154 = vmatpush1.msra.mxu0 0.0
        %2155 = vmatprep.subr.mxu0 0.0
        %2156 = vmatpush1.msra.mxu0 0.0
        %2157 = vmatprep.subr.mxu0 0.0
        %2158 = vmatpush1.msra.mxu0 0.0
        %2159 = vmatprep.subr.mxu0 0.0
        %2160 = vmatpush1.msra.mxu0 0.0
        %2161 = vmatprep.subr.mxu0 0.0
        %2162 = vmatpush1.msra.mxu0 0.0
        %2163 = vmatprep.subr.mxu0 0.0
        %2164 = vmatpush1.msra.mxu0 0.0
        %2165 = vmatprep.subr.mxu0 0.0
        %2166 = vmatpush1.msra.mxu0 0.0
        %2167 = vmatprep.subr.mxu0 0.0
        %2168 = vmatpush1.msra.mxu0 0.0
        %2169 = vmatprep.subr.mxu0 0.0
        %2170 = vmatpush1.msra.mxu0 0.0
        %2171 = vmatprep.subr.mxu0 0.0
        %2172 = vmatpush1.msra.mxu0 0.0
        %2173 = vmatprep.subr.mxu0 0.0
        %2174 = vmatpush1.msra.mxu0 0.0
        %2175 = vmatprep.subr.mxu0 0.0
        %2176 = vmatpush1.msra.mxu0 0.0
        %2177 = vmatprep.subr.mxu0 0.0
        %2178 = vmatpush1.msra.mxu0 0.0
        %2179 = vmatprep.subr.mxu0 0.0
        %2180 = vmatpush1.msra.mxu0 0.0
        %2181 = vmatprep.subr.mxu0 0.0
        %2182 = vmatpush1.msra.mxu0 0.0
        %2183 = vmatprep.subr.mxu0 0.0
        %2184 = vmatpush1.msra.mxu0 0.0
        %2185 = vmatprep.subr.mxu0 0.0
        %2186 = vmatpush1.msra.mxu0 0.0
        %2187 = vmatprep.subr.mxu0 0.0
        %2188 = vmatpush1.msra.mxu0 0.0
        %2189 = vmatprep.subr.mxu0 0.0
        %2190 = vmatpush1.msra.mxu0 0.0
        %2191 = vmatprep.subr.mxu0 0.0
        %2192 = vmatpush1.msra.mxu0 0.0
        %2193 = vmatprep.subr.mxu0 0.0
        %2194 = vmatpush1.msra.mxu0 0.0
        %2195 = vmatprep.subr.mxu0 0.0
        %2196 = vmatpush1.msra.mxu0 0.0
        %2197 = vmatprep.subr.mxu0 0.0
        %2198 = vmatpush1.msra.mxu0 0.0
        %2199 = vmatprep.subr.mxu0 0.0
        %2200 = vmatpush1.msra.mxu0 0.0
        %2201 = vmatprep.mubr.f32.mxu0 0.0
        %v2202 = vand.u32 %v236, 4294901760
        %2203 = vmatmul.mubr.f32.gmra.mrb[0].mxu0 %v2202
        %v2204 = vpop.f32.mrb[0].mxu0
        %v2205 = vadd.f32 %v2118, %v2204
        %v2206 = vpop.f32.mrb[0].mxu0
        %v2207 = vadd.f32 %v2120, %v2206
        %2208 = vmatprep.mubr.f32.mxu0 0.0
        %v2209 = vand.u32 %v239, 4294901760
        %2210 = vmatmul.mubr.f32.gmra.mrb[0].mxu0 %v2209
        %v2211 = vpop.f32.mrb[0].mxu0
        %v2212 = vadd.f32 %v2127, %v2211
        %v2213 = vpop.f32.mrb[0].mxu0
        %v2214 = vadd.f32 %v2129, %v2213
        %2215 = vdwg.mxu0
        %v2216 = vand.u32 %v233, 4294901760
        %2217 = vmatprep.subr.mxu0 %v2216
        %v2218 = vand.u32 %v232, 4294901760
        %2219 = vmatpush1.msra.mxu0 %v2218
        %2220 = vmatprep.subr.mxu0 0.0
        %2221 = vmatpush1.msra.mxu0 0.0
        %2222 = vmatprep.subr.mxu0 0.0
        %2223 = vmatpush1.msra.mxu0 0.0
        %2224 = vmatprep.subr.mxu0 0.0
        %2225 = vmatpush1.msra.mxu0 0.0
        %2226 = vmatprep.subr.mxu0 0.0
        %2227 = vmatpush1.msra.mxu0 0.0
        %2228 = vmatprep.subr.mxu0 0.0
        %2229 = vmatpush1.msra.mxu0 0.0
        %2230 = vmatprep.subr.mxu0 0.0
        %2231 = vmatpush1.msra.mxu0 0.0
        %2232 = vmatprep.subr.mxu0 0.0
        %2233 = vmatpush1.msra.mxu0 0.0
        %2234 = vmatprep.subr.mxu0 0.0
        %2235 = vmatpush1.msra.mxu0 0.0
        %2236 = vmatprep.subr.mxu0 0.0
        %2237 = vmatpush1.msra.mxu0 0.0
        %2238 = vmatprep.subr.mxu0 0.0
        %2239 = vmatpush1.msra.mxu0 0.0
        %2240 = vmatprep.subr.mxu0 0.0
        %2241 = vmatpush1.msra.mxu0 0.0
        %2242 = vmatprep.subr.mxu0 0.0
        %2243 = vmatpush1.msra.mxu0 0.0
        %2244 = vmatprep.subr.mxu0 0.0
        %2245 = vmatpush1.msra.mxu0 0.0
        %2246 = vmatprep.subr.mxu0 0.0
        %2247 = vmatpush1.msra.mxu0 0.0
        %2248 = vmatprep.subr.mxu0 0.0
        %2249 = vmatpush1.msra.mxu0 0.0
        %2250 = vmatprep.subr.mxu0 0.0
        %2251 = vmatpush1.msra.mxu0 0.0
        %2252 = vmatprep.subr.mxu0 0.0
        %2253 = vmatpush1.msra.mxu0 0.0
        %2254 = vmatprep.subr.mxu0 0.0
        %2255 = vmatpush1.msra.mxu0 0.0
        %2256 = vmatprep.subr.mxu0 0.0
        %2257 = vmatpush1.msra.mxu0 0.0
        %2258 = vmatprep.subr.mxu0 0.0
        %2259 = vmatpush1.msra.mxu0 0.0
        %2260 = vmatprep.subr.mxu0 0.0
        %2261 = vmatpush1.msra.mxu0 0.0
        %2262 = vmatprep.subr.mxu0 0.0
        %2263 = vmatpush1.msra.mxu0 0.0
        %2264 = vmatprep.subr.mxu0 0.0
        %2265 = vmatpush1.msra.mxu0 0.0
        %2266 = vmatprep.subr.mxu0 0.0
        %2267 = vmatpush1.msra.mxu0 0.0
        %2268 = vmatprep.subr.mxu0 0.0
        %2269 = vmatpush1.msra.mxu0 0.0
        %2270 = vmatprep.subr.mxu0 0.0
        %2271 = vmatpush1.msra.mxu0 0.0
        %2272 = vmatprep.subr.mxu0 0.0
        %2273 = vmatpush1.msra.mxu0 0.0
        %2274 = vmatprep.subr.mxu0 0.0
        %2275 = vmatpush1.msra.mxu0 0.0
        %2276 = vmatprep.subr.mxu0 0.0
        %2277 = vmatpush1.msra.mxu0 0.0
        %2278 = vmatprep.subr.mxu0 0.0
        %2279 = vmatpush1.msra.mxu0 0.0
        %2280 = vmatprep.subr.mxu0 0.0
        %2281 = vmatpush1.msra.mxu0 0.0
        %2282 = vmatprep.mubr.f32.mxu0 0.0
        %v2283 = vand.u32 %v236, 4294901760
        %2284 = vmatmul.mubr.f32.gmra.mrb[0].mxu0 %v2283
        %v2285 = vpop.f32.mrb[0].mxu0
        %v2286 = vadd.f32 %v2205, %v2285
        %v2287 = vpop.f32.mrb[0].mxu0
        %v2288 = vadd.f32 %v2207, %v2287
        %2289 = vmatprep.mubr.f32.mxu0 0.0
        %v2290 = vand.u32 %v239, 4294901760
        %2291 = vmatmul.mubr.f32.gmra.mrb[0].mxu0 %v2290
        %v2292 = vpop.f32.mrb[0].mxu0
        %v2293 = vadd.f32 %v2212, %v2292
        %v2294 = vpop.f32.mrb[0].mxu0
        %v2295 = vadd.f32 %v2214, %v2294
        %2296 = vdwg.mxu0
        %2297 = vst [vmem:[#allocation3] sm:$0xff] %v744
        %2298 = vst [vmem:[#allocation3 + $0x8] sm:$0xff] %v746
        %2299 = vst [vmem:[#allocation3 + $0x10] sm:$0xff] %v1258
        %2300 = vst [vmem:[#allocation3 + $0x18] sm:$0xff] %v1260
        %2301 = vst [vmem:[#allocation3 + $0x20] sm:$0xff] %v1772
        %2302 = vst [vmem:[#allocation3 + $0x28] sm:$0xff] %v1774
        %2303 = vst [vmem:[#allocation3 + $0x30] sm:$0xff] %v2286
        %2304 = vst [vmem:[#allocation3 + $0x38] sm:$0xff] %v2288
        %2305 = vst [vmem:[#allocation3 + $0x40] sm:$0xff] %v751
        %2306 = vst [vmem:[#allocation3 + $0x48] sm:$0xff] %v753
        %2307 = vst [vmem:[#allocation3 + $0x50] sm:$0xff] %v1265
        %2308 = vst [vmem:[#allocation3 + $0x58] sm:$0xff] %v1267
        %2309 = vst [vmem:[#allocation3 + $0x60] sm:$0xff] %v1779
        %2310 = vst [vmem:[#allocation3 + $0x68] sm:$0xff] %v1781
        %2311 = vst [vmem:[#allocation3 + $0x70] sm:$0xff] %v2293
        %2312 = vst [vmem:[#allocation3 + $0x78] sm:$0xff] %v2295
        %s2313 = sadd.s32 0, 0
        %s2314 = smul.u32 0, 8
        %s2315 = smul.addr %s2314, 8
        %s2316 = scalar_lea.vmem [#allocation3], %s2315
        %v2317 = vld [vmem:[%s2316] sm:$0xff]
        %v2318 = vld [vmem:[%s2316 + $0x8] sm:$0xff]
        %v2319 = vld [vmem:[%s2316 + $0x10] sm:$0xff]
        %v2320 = vld [vmem:[%s2316 + $0x18] sm:$0xff]
        %v2321 = vld [vmem:[%s2316 + $0x20] sm:$0xff]
        %v2322 = vld [vmem:[%s2316 + $0x28] sm:$0xff]
        %v2323 = vld [vmem:[%s2316 + $0x30] sm:$0xff]
        %v2324 = vld [vmem:[%s2316 + $0x38] sm:$0xff]
        %v2325 = vmax.f32 %v2317, 0.0
        %v2326 = vmax.f32 %v2318, 0.0
        %v2327 = vmax.f32 %v2319, 0.0
        %v2328 = vmax.f32 %v2320, 0.0
        %v2329 = vmax.f32 %v2321, 0.0
        %v2330 = vmax.f32 %v2322, 0.0
        %v2331 = vmax.f32 %v2323, 0.0
        %v2332 = vmax.f32 %v2324, 0.0
        %s2333 = scalar_lea.vmem %s1, %s2313
        %v2334 = vld [vmem:[%s2333] sm:$0xff]
        %s2335 = scalar_lea.vmem %s2, %s2313
        %v2336 = vld [vmem:[%s2335] sm:$0xff]
        %2338 = vset.pattern.permute.xlu0 0
        %2339 = vperm.xlu0 %2338, %v2336
        %v2340 = vpop.permute.xlu0 %2339
        %v2342 = vmul.f32 %v2340, %v2325
        %v2343 = vmul.f32 %v2340, %v2326
        %v2344 = vmul.f32 %v2340, %v2327
        %v2345 = vmul.f32 %v2340, %v2328
        %v2346 = vmul.f32 %v2340, %v2329
        %v2347 = vmul.f32 %v2340, %v2330
        %v2348 = vmul.f32 %v2340, %v2331
        %v2349 = vmul.f32 %v2340, %v2332
        %v2350 = vmul.f32 %v2342, 1.442695
        %v2351 = vpow.pop %v2350
        %v2352 = vmul.f32 %v2343, 1.442695
        %v2353 = vpow.pop %v2352
        %v2354 = vmul.f32 %v2344, 1.442695
        %v2355 = vpow.pop %v2354
        %v2356 = vmul.f32 %v2345, 1.442695
        %v2357 = vpow.pop %v2356
        %v2358 = vmul.f32 %v2346, 1.442695
        %v2359 = vpow.pop %v2358
        %v2360 = vmul.f32 %v2347, 1.442695
        %v2361 = vpow.pop %v2360
        %v2362 = vmul.f32 %v2348, 1.442695
        %v2363 = vpow.pop %v2362
        %v2364 = vmul.f32 %v2349, 1.442695
        %v2365 = vpow.pop %v2364
        %2367 = vset.pattern.permute.xlu0 0
        %2368 = vperm.xlu0 %2367, %v2334
        %v2369 = vpop.permute.xlu0 %2368
        %v2371 = vmul.f32 %v2369, %v2351
        %v2372 = vmul.f32 %v2369, %v2353
        %v2373 = vmul.f32 %v2369, %v2355
        %v2374 = vmul.f32 %v2369, %v2357
        %v2375 = vmul.f32 %v2369, %v2359
        %v2376 = vmul.f32 %v2369, %v2361
        %v2377 = vmul.f32 %v2369, %v2363
        %v2378 = vmul.f32 %v2369, %v2365
        %v2379 = vadd.f32 %v2371, 0.0
        %v2380 = vadd.f32 %v2372, 0.0
        %v2381 = vadd.f32 %v2373, 0.0
        %v2382 = vadd.f32 %v2374, 0.0
        %v2383 = vadd.f32 %v2375, 0.0
        %v2384 = vadd.f32 %v2376, 0.0
        %v2385 = vadd.f32 %v2377, 0.0
        %v2386 = vadd.f32 %v2378, 0.0
        %2387 = vset.pattern.permute.xlu0 1
        %2388 = vperm.xlu0 %2387, %v2336
        %v2389 = vpop.permute.xlu0 %2388
        %v2391 = vmul.f32 %v2389, %v2325
        %v2392 = vmul.f32 %v2389, %v2326
        %v2393 = vmul.f32 %v2389, %v2327
        %v2394 = vmul.f32 %v2389, %v2328
        %v2395 = vmul.f32 %v2389, %v2329
        %v2396 = vmul.f32 %v2389, %v2330
        %v2397 = vmul.f32 %v2389, %v2331
        %v2398 = vmul.f32 %v2389, %v2332
        %v2399 = vmul.f32 %v2391, 1.442695
        %v2400 = vpow.pop %v2399
        %v2401 = vmul.f32 %v2392, 1.442695
        %v2402 = vpow.pop %v2401
        %v2403 = vmul.f32 %v2393, 1.442695
        %v2404 = vpow.pop %v2403
        %v2405 = vmul.f32 %v2394, 1.442695
        %v2406 = vpow.pop %v2405
        %v2407 = vmul.f32 %v2395, 1.442695
        %v2408 = vpow.pop %v2407
        %v2409 = vmul.f32 %v2396, 1.442695
        %v2410 = vpow.pop %v2409
        %v2411 = vmul.f32 %v2397, 1.442695
        %v2412 = vpow.pop %v2411
        %v2413 = vmul.f32 %v2398, 1.442695
        %v2414 = vpow.pop %v2413
        %2415 = vset.pattern.permute.xlu0 1
        %2416 = vperm.xlu0 %2415, %v2334
        %v2417 = vpop.permute.xlu0 %2416
        %v2419 = vmul.f32 %v2417, %v2400
        %v2420 = vmul.f32 %v2417, %v2402
        %v2421 = vmul.f32 %v2417, %v2404
        %v2422 = vmul.f32 %v2417, %v2406
        %v2423 = vmul.f32 %v2417, %v2408
        %v2424 = vmul.f32 %v2417, %v2410
        %v2425 = vmul.f32 %v2417, %v2412
        %v2426 = vmul.f32 %v2417, %v2414
        %v2427 = vadd.f32 %v2379, %v2419
        %v2428 = vadd.f32 %v2380, %v2420
        %v2429 = vadd.f32 %v2381, %v2421
        %v2430 = vadd.f32 %v2382, %v2422
        %v2431 = vadd.f32 %v2383, %v2423
        %v2432 = vadd.f32 %v2384, %v2424
        %v2433 = vadd.f32 %v2385, %v2425
        %v2434 = vadd.f32 %v2386, %v2426
        %2435 = vset.pattern.permute.xlu0 2
        %2436 = vperm.xlu0 %2435, %v2336
        %v2437 = vpop.permute.xlu0 %2436
        %v2439 = vmul.f32 %v2437, %v2325
        %v2440 = vmul.f32 %v2437, %v2326
        %v2441 = vmul.f32 %v2437, %v2327
        %v2442 = vmul.f32 %v2437, %v2328
        %v2443 = vmul.f32 %v2437, %v2329
        %v2444 = vmul.f32 %v2437, %v2330
        %v2445 = vmul.f32 %v2437, %v2331
        %v2446 = vmul.f32 %v2437, %v2332
        %v2447 = vmul.f32 %v2439, 1.442695
        %v2448 = vpow.pop %v2447
        %v2449 = vmul.f32 %v2440, 1.442695
        %v2450 = vpow.pop %v2449
        %v2451 = vmul.f32 %v2441, 1.442695
        %v2452 = vpow.pop %v2451
        %v2453 = vmul.f32 %v2442, 1.442695
        %v2454 = vpow.pop %v2453
        %v2455 = vmul.f32 %v2443, 1.442695
        %v2456 = vpow.pop %v2455
        %v2457 = vmul.f32 %v2444, 1.442695
        %v2458 = vpow.pop %v2457
        %v2459 = vmul.f32 %v2445, 1.442695
        %v2460 = vpow.pop %v2459
        %v2461 = vmul.f32 %v2446, 1.442695
        %v2462 = vpow.pop %v2461
        %2463 = vset.pattern.permute.xlu0 2
        %2464 = vperm.xlu0 %2463, %v2334
        %v2465 = vpop.permute.xlu0 %2464
        %v2467 = vmul.f32 %v2465, %v2448
        %v2468 = vmul.f32 %v2465, %v2450
        %v2469 = vmul.f32 %v2465, %v2452
        %v2470 = vmul.f32 %v2465, %v2454
        %v2471 = vmul.f32 %v2465, %v2456
        %v2472 = vmul.f32 %v2465, %v2458
        %v2473 = vmul.f32 %v2465, %v2460
        %v2474 = vmul.f32 %v2465, %v2462
        %v2475 = vadd.f32 %v2427, %v2467
        %v2476 = vadd.f32 %v2428, %v2468
        %v2477 = vadd.f32 %v2429, %v2469
        %v2478 = vadd.f32 %v2430, %v2470
        %v2479 = vadd.f32 %v2431, %v2471
        %v2480 = vadd.f32 %v2432, %v2472
        %v2481 = vadd.f32 %v2433, %v2473
        %v2482 = vadd.f32 %v2434, %v2474
        %2483 = vset.pattern.permute.xlu0 3
        %2484 = vperm.xlu0 %2483, %v2336
        %v2485 = vpop.permute.xlu0 %2484
        %v2487 = vmul.f32 %v2485, %v2325
        %v2488 = vmul.f32 %v2485, %v2326
        %v2489 = vmul.f32 %v2485, %v2327
        %v2490 = vmul.f32 %v2485, %v2328
        %v2491 = vmul.f32 %v2485, %v2329
        %v2492 = vmul.f32 %v2485, %v2330
        %v2493 = vmul.f32 %v2485, %v2331
        %v2494 = vmul.f32 %v2485, %v2332
        %v2495 = vmul.f32 %v2487, 1.442695
        %v2496 = vpow.pop %v2495
        %v2497 = vmul.f32 %v2488, 1.442695
        %v2498 = vpow.pop %v2497
        %v2499 = vmul.f32 %v2489, 1.442695
        %v2500 = vpow.pop %v2499
        %v2501 = vmul.f32 %v2490, 1.442695
        %v2502 = vpow.pop %v2501
        %v2503 = vmul.f32 %v2491, 1.442695
        %v2504 = vpow.pop %v2503
        %v2505 = vmul.f32 %v2492, 1.442695
        %v2506 = vpow.pop %v2505
        %v2507 = vmul.f32 %v2493, 1.442695
        %v2508 = vpow.pop %v2507
        %v2509 = vmul.f32 %v2494, 1.442695
        %v2510 = vpow.pop %v2509
        %2511 = vset.pattern.permute.xlu0 3
        %2512 = vperm.xlu0 %2511, %v2334
        %v2513 = vpop.permute.xlu0 %2512
        %v2515 = vmul.f32 %v2513, %v2496
        %v2516 = vmul.f32 %v2513, %v2498
        %v2517 = vmul.f32 %v2513, %v2500
        %v2518 = vmul.f32 %v2513, %v2502
        %v2519 = vmul.f32 %v2513, %v2504
        %v2520 = vmul.f32 %v2513, %v2506
        %v2521 = vmul.f32 %v2513, %v2508
        %v2522 = vmul.f32 %v2513, %v2510
        %v2523 = vadd.f32 %v2475, %v2515
        %v2524 = vadd.f32 %v2476, %v2516
        %v2525 = vadd.f32 %v2477, %v2517
        %v2526 = vadd.f32 %v2478, %v2518
        %v2527 = vadd.f32 %v2479, %v2519
        %v2528 = vadd.f32 %v2480, %v2520
        %v2529 = vadd.f32 %v2481, %v2521
        %v2530 = vadd.f32 %v2482, %v2522
        %2531 = vset.pattern.permute.xlu0 4
        %2532 = vperm.xlu0 %2531, %v2336
        %v2533 = vpop.permute.xlu0 %2532
        %v2535 = vmul.f32 %v2533, %v2325
        %v2536 = vmul.f32 %v2533, %v2326
        %v2537 = vmul.f32 %v2533, %v2327
        %v2538 = vmul.f32 %v2533, %v2328
        %v2539 = vmul.f32 %v2533, %v2329
        %v2540 = vmul.f32 %v2533, %v2330
        %v2541 = vmul.f32 %v2533, %v2331
        %v2542 = vmul.f32 %v2533, %v2332
        %v2543 = vmul.f32 %v2535, 1.442695
        %v2544 = vpow.pop %v2543
        %v2545 = vmul.f32 %v2536, 1.442695
        %v2546 = vpow.pop %v2545
        %v2547 = vmul.f32 %v2537, 1.442695
        %v2548 = vpow.pop %v2547
        %v2549 = vmul.f32 %v2538, 1.442695
        %v2550 = vpow.pop %v2549
        %v2551 = vmul.f32 %v2539, 1.442695
        %v2552 = vpow.pop %v2551
        %v2553 = vmul.f32 %v2540, 1.442695
        %v2554 = vpow.pop %v2553
        %v2555 = vmul.f32 %v2541, 1.442695
        %v2556 = vpow.pop %v2555
        %v2557 = vmul.f32 %v2542, 1.442695
        %v2558 = vpow.pop %v2557
        %2559 = vset.pattern.permute.xlu0 4
        %2560 = vperm.xlu0 %2559, %v2334
        %v2561 = vpop.permute.xlu0 %2560
        %v2563 = vmul.f32 %v2561, %v2544
        %v2564 = vmul.f32 %v2561, %v2546
        %v2565 = vmul.f32 %v2561, %v2548
        %v2566 = vmul.f32 %v2561, %v2550
        %v2567 = vmul.f32 %v2561, %v2552
        %v2568 = vmul.f32 %v2561, %v2554
        %v2569 = vmul.f32 %v2561, %v2556
        %v2570 = vmul.f32 %v2561, %v2558
        %v2571 = vadd.f32 %v2523, %v2563
        %v2572 = vadd.f32 %v2524, %v2564
        %v2573 = vadd.f32 %v2525, %v2565
        %v2574 = vadd.f32 %v2526, %v2566
        %v2575 = vadd.f32 %v2527, %v2567
        %v2576 = vadd.f32 %v2528, %v2568
        %v2577 = vadd.f32 %v2529, %v2569
        %v2578 = vadd.f32 %v2530, %v2570
        %2579 = vset.pattern.permute.xlu0 5
        %2580 = vperm.xlu0 %2579, %v2336
        %v2581 = vpop.permute.xlu0 %2580
        %v2583 = vmul.f32 %v2581, %v2325
        %v2584 = vmul.f32 %v2581, %v2326
        %v2585 = vmul.f32 %v2581, %v2327
        %v2586 = vmul.f32 %v2581, %v2328
        %v2587 = vmul.f32 %v2581, %v2329
        %v2588 = vmul.f32 %v2581, %v2330
        %v2589 = vmul.f32 %v2581, %v2331
        %v2590 = vmul.f32 %v2581, %v2332
        %v2591 = vmul.f32 %v2583, 1.442695
        %v2592 = vpow.pop %v2591
        %v2593 = vmul.f32 %v2584, 1.442695
        %v2594 = vpow.pop %v2593
        %v2595 = vmul.f32 %v2585, 1.442695
        %v2596 = vpow.pop %v2595
        %v2597 = vmul.f32 %v2586, 1.442695
        %v2598 = vpow.pop %v2597
        %v2599 = vmul.f32 %v2587, 1.442695
        %v2600 = vpow.pop %v2599
        %v2601 = vmul.f32 %v2588, 1.442695
        %v2602 = vpow.pop %v2601
        %v2603 = vmul.f32 %v2589, 1.442695
        %v2604 = vpow.pop %v2603
        %v2605 = vmul.f32 %v2590, 1.442695
        %v2606 = vpow.pop %v2605
        %2607 = vset.pattern.permute.xlu0 5
        %2608 = vperm.xlu0 %2607, %v2334
        %v2609 = vpop.permute.xlu0 %2608
        %v2611 = vmul.f32 %v2609, %v2592
        %v2612 = vmul.f32 %v2609, %v2594
        %v2613 = vmul.f32 %v2609, %v2596
        %v2614 = vmul.f32 %v2609, %v2598
        %v2615 = vmul.f32 %v2609, %v2600
        %v2616 = vmul.f32 %v2609, %v2602
        %v2617 = vmul.f32 %v2609, %v2604
        %v2618 = vmul.f32 %v2609, %v2606
        %v2619 = vadd.f32 %v2571, %v2611
        %v2620 = vadd.f32 %v2572, %v2612
        %v2621 = vadd.f32 %v2573, %v2613
        %v2622 = vadd.f32 %v2574, %v2614
        %v2623 = vadd.f32 %v2575, %v2615
        %v2624 = vadd.f32 %v2576, %v2616
        %v2625 = vadd.f32 %v2577, %v2617
        %v2626 = vadd.f32 %v2578, %v2618
        %v2627 = vld [vmem:[#allocation2] sm:$0xff]
        %v2628 = vld [vmem:[#allocation2 + $0x8] sm:$0xff]
        %v2629 = vld [vmem:[#allocation2 + $0x10] sm:$0xff]
        %v2630 = vld [vmem:[#allocation2 + $0x18] sm:$0xff]
        %v2631 = vld [vmem:[#allocation2 + $0x20] sm:$0xff]
        %v2632 = vld [vmem:[#allocation2 + $0x28] sm:$0xff]
        %v2633 = vld [vmem:[#allocation2 + $0x30] sm:$0xff]
        %v2634 = vld [vmem:[#allocation2 + $0x38] sm:$0xff]
        %v2635 = vadd.f32 %v2627, %v2619
        %v2636 = vadd.f32 %v2628, %v2620
        %v2637 = vadd.f32 %v2629, %v2621
        %v2638 = vadd.f32 %v2630, %v2622
        %v2639 = vadd.f32 %v2631, %v2623
        %v2640 = vadd.f32 %v2632, %v2624
        %v2641 = vadd.f32 %v2633, %v2625
        %v2642 = vadd.f32 %v2634, %v2626
        %2643 = vst [vmem:[#allocation2] sm:$0xff] %v2635
        %2644 = vst [vmem:[#allocation2 + $0x8] sm:$0xff] %v2636
        %2645 = vst [vmem:[#allocation2 + $0x10] sm:$0xff] %v2637
        %2646 = vst [vmem:[#allocation2 + $0x18] sm:$0xff] %v2638
        %2647 = vst [vmem:[#allocation2 + $0x20] sm:$0xff] %v2639
        %2648 = vst [vmem:[#allocation2 + $0x28] sm:$0xff] %v2640
        %2649 = vst [vmem:[#allocation2 + $0x30] sm:$0xff] %v2641
        %2650 = vst [vmem:[#allocation2 + $0x38] sm:$0xff] %v2642
        %s2651 = sadd.s32 0, 8
        %s2652 = smul.u32 1, 8
        %s2653 = smul.addr %s2652, 8
        %s2654 = scalar_lea.vmem [#allocation3], %s2653
        %v2655 = vld [vmem:[%s2654] sm:$0xff]
        %v2656 = vld [vmem:[%s2654 + $0x8] sm:$0xff]
        %v2657 = vld [vmem:[%s2654 + $0x10] sm:$0xff]
        %v2658 = vld [vmem:[%s2654 + $0x18] sm:$0xff]
        %v2659 = vld [vmem:[%s2654 + $0x20] sm:$0xff]
        %v2660 = vld [vmem:[%s2654 + $0x28] sm:$0xff]
        %v2661 = vld [vmem:[%s2654 + $0x30] sm:$0xff]
        %v2662 = vld [vmem:[%s2654 + $0x38] sm:$0xff]
        %v2663 = vmax.f32 %v2655, 0.0
        %v2664 = vmax.f32 %v2656, 0.0
        %v2665 = vmax.f32 %v2657, 0.0
        %v2666 = vmax.f32 %v2658, 0.0
        %v2667 = vmax.f32 %v2659, 0.0
        %v2668 = vmax.f32 %v2660, 0.0
        %v2669 = vmax.f32 %v2661, 0.0
        %v2670 = vmax.f32 %v2662, 0.0
        %s2671 = scalar_lea.vmem %s1, %s2651
        %v2672 = vld [vmem:[%s2671] sm:$0xff]
        %s2673 = scalar_lea.vmem %s2, %s2651
        %v2674 = vld [vmem:[%s2673] sm:$0xff]
        %2676 = vset.pattern.permute.xlu0 0
        %2677 = vperm.xlu0 %2676, %v2674
        %v2678 = vpop.permute.xlu0 %2677
        %v2680 = vmul.f32 %v2678, %v2663
        %v2681 = vmul.f32 %v2678, %v2664
        %v2682 = vmul.f32 %v2678, %v2665
        %v2683 = vmul.f32 %v2678, %v2666
        %v2684 = vmul.f32 %v2678, %v2667
        %v2685 = vmul.f32 %v2678, %v2668
        %v2686 = vmul.f32 %v2678, %v2669
        %v2687 = vmul.f32 %v2678, %v2670
        %v2688 = vmul.f32 %v2680, 1.442695
        %v2689 = vpow.pop %v2688
        %v2690 = vmul.f32 %v2681, 1.442695
        %v2691 = vpow.pop %v2690
        %v2692 = vmul.f32 %v2682, 1.442695
        %v2693 = vpow.pop %v2692
        %v2694 = vmul.f32 %v2683, 1.442695
        %v2695 = vpow.pop %v2694
        %v2696 = vmul.f32 %v2684, 1.442695
        %v2697 = vpow.pop %v2696
        %v2698 = vmul.f32 %v2685, 1.442695
        %v2699 = vpow.pop %v2698
        %v2700 = vmul.f32 %v2686, 1.442695
        %v2701 = vpow.pop %v2700
        %v2702 = vmul.f32 %v2687, 1.442695
        %v2703 = vpow.pop %v2702
        %2705 = vset.pattern.permute.xlu0 0
        %2706 = vperm.xlu0 %2705, %v2672
        %v2707 = vpop.permute.xlu0 %2706
        %v2709 = vmul.f32 %v2707, %v2689
        %v2710 = vmul.f32 %v2707, %v2691
        %v2711 = vmul.f32 %v2707, %v2693
        %v2712 = vmul.f32 %v2707, %v2695
        %v2713 = vmul.f32 %v2707, %v2697
        %v2714 = vmul.f32 %v2707, %v2699
        %v2715 = vmul.f32 %v2707, %v2701
        %v2716 = vmul.f32 %v2707, %v2703
        %v2717 = vadd.f32 %v2709, 0.0
        %v2718 = vadd.f32 %v2710, 0.0
        %v2719 = vadd.f32 %v2711, 0.0
        %v2720 = vadd.f32 %v2712, 0.0
        %v2721 = vadd.f32 %v2713, 0.0
        %v2722 = vadd.f32 %v2714, 0.0
        %v2723 = vadd.f32 %v2715, 0.0
        %v2724 = vadd.f32 %v2716, 0.0
        %2725 = vset.pattern.permute.xlu0 1
        %2726 = vperm.xlu0 %2725, %v2674
        %v2727 = vpop.permute.xlu0 %2726
        %v2729 = vmul.f32 %v2727, %v2663
        %v2730 = vmul.f32 %v2727, %v2664
        %v2731 = vmul.f32 %v2727, %v2665
        %v2732 = vmul.f32 %v2727, %v2666
        %v2733 = vmul.f32 %v2727, %v2667
        %v2734 = vmul.f32 %v2727, %v2668
        %v2735 = vmul.f32 %v2727, %v2669
        %v2736 = vmul.f32 %v2727, %v2670
        %v2737 = vmul.f32 %v2729, 1.442695
        %v2738 = vpow.pop %v2737
        %v2739 = vmul.f32 %v2730, 1.442695
        %v2740 = vpow.pop %v2739
        %v2741 = vmul.f32 %v2731, 1.442695
        %v2742 = vpow.pop %v2741
        %v2743 = vmul.f32 %v2732, 1.442695
        %v2744 = vpow.pop %v2743
        %v2745 = vmul.f32 %v2733, 1.442695
        %v2746 = vpow.pop %v2745
        %v2747 = vmul.f32 %v2734, 1.442695
        %v2748 = vpow.pop %v2747
        %v2749 = vmul.f32 %v2735, 1.442695
        %v2750 = vpow.pop %v2749
        %v2751 = vmul.f32 %v2736, 1.442695
        %v2752 = vpow.pop %v2751
        %2753 = vset.pattern.permute.xlu0 1
        %2754 = vperm.xlu0 %2753, %v2672
        %v2755 = vpop.permute.xlu0 %2754
        %v2757 = vmul.f32 %v2755, %v2738
        %v2758 = vmul.f32 %v2755, %v2740
        %v2759 = vmul.f32 %v2755, %v2742
        %v2760 = vmul.f32 %v2755, %v2744
        %v2761 = vmul.f32 %v2755, %v2746
        %v2762 = vmul.f32 %v2755, %v2748
        %v2763 = vmul.f32 %v2755, %v2750
        %v2764 = vmul.f32 %v2755, %v2752
        %v2765 = vadd.f32 %v2717, %v2757
        %v2766 = vadd.f32 %v2718, %v2758
        %v2767 = vadd.f32 %v2719, %v2759
        %v2768 = vadd.f32 %v2720, %v2760
        %v2769 = vadd.f32 %v2721, %v2761
        %v2770 = vadd.f32 %v2722, %v2762
        %v2771 = vadd.f32 %v2723, %v2763
        %v2772 = vadd.f32 %v2724, %v2764
        %2773 = vset.pattern.permute.xlu0 2
        %2774 = vperm.xlu0 %2773, %v2674
        %v2775 = vpop.permute.xlu0 %2774
        %v2777 = vmul.f32 %v2775, %v2663
        %v2778 = vmul.f32 %v2775, %v2664
        %v2779 = vmul.f32 %v2775, %v2665
        %v2780 = vmul.f32 %v2775, %v2666
        %v2781 = vmul.f32 %v2775, %v2667
        %v2782 = vmul.f32 %v2775, %v2668
        %v2783 = vmul.f32 %v2775, %v2669
        %v2784 = vmul.f32 %v2775, %v2670
        %v2785 = vmul.f32 %v2777, 1.442695
        %v2786 = vpow.pop %v2785
        %v2787 = vmul.f32 %v2778, 1.442695
        %v2788 = vpow.pop %v2787
        %v2789 = vmul.f32 %v2779, 1.442695
        %v2790 = vpow.pop %v2789
        %v2791 = vmul.f32 %v2780, 1.442695
        %v2792 = vpow.pop %v2791
        %v2793 = vmul.f32 %v2781, 1.442695
        %v2794 = vpow.pop %v2793
        %v2795 = vmul.f32 %v2782, 1.442695
        %v2796 = vpow.pop %v2795
        %v2797 = vmul.f32 %v2783, 1.442695
        %v2798 = vpow.pop %v2797
        %v2799 = vmul.f32 %v2784, 1.442695
        %v2800 = vpow.pop %v2799
        %2801 = vset.pattern.permute.xlu0 2
        %2802 = vperm.xlu0 %2801, %v2672
        %v2803 = vpop.permute.xlu0 %2802
        %v2805 = vmul.f32 %v2803, %v2786
        %v2806 = vmul.f32 %v2803, %v2788
        %v2807 = vmul.f32 %v2803, %v2790
        %v2808 = vmul.f32 %v2803, %v2792
        %v2809 = vmul.f32 %v2803, %v2794
        %v2810 = vmul.f32 %v2803, %v2796
        %v2811 = vmul.f32 %v2803, %v2798
        %v2812 = vmul.f32 %v2803, %v2800
        %v2813 = vadd.f32 %v2765, %v2805
        %v2814 = vadd.f32 %v2766, %v2806
        %v2815 = vadd.f32 %v2767, %v2807
        %v2816 = vadd.f32 %v2768, %v2808
        %v2817 = vadd.f32 %v2769, %v2809
        %v2818 = vadd.f32 %v2770, %v2810
        %v2819 = vadd.f32 %v2771, %v2811
        %v2820 = vadd.f32 %v2772, %v2812
        %2821 = vset.pattern.permute.xlu0 3
        %2822 = vperm.xlu0 %2821, %v2674
        %v2823 = vpop.permute.xlu0 %2822
        %v2825 = vmul.f32 %v2823, %v2663
        %v2826 = vmul.f32 %v2823, %v2664
        %v2827 = vmul.f32 %v2823, %v2665
        %v2828 = vmul.f32 %v2823, %v2666
        %v2829 = vmul.f32 %v2823, %v2667
        %v2830 = vmul.f32 %v2823, %v2668
        %v2831 = vmul.f32 %v2823, %v2669
        %v2832 = vmul.f32 %v2823, %v2670
        %v2833 = vmul.f32 %v2825, 1.442695
        %v2834 = vpow.pop %v2833
        %v2835 = vmul.f32 %v2826, 1.442695
        %v2836 = vpow.pop %v2835
        %v2837 = vmul.f32 %v2827, 1.442695
        %v2838 = vpow.pop %v2837
        %v2839 = vmul.f32 %v2828, 1.442695
        %v2840 = vpow.pop %v2839
        %v2841 = vmul.f32 %v2829, 1.442695
        %v2842 = vpow.pop %v2841
        %v2843 = vmul.f32 %v2830, 1.442695
        %v2844 = vpow.pop %v2843
        %v2845 = vmul.f32 %v2831, 1.442695
        %v2846 = vpow.pop %v2845
        %v2847 = vmul.f32 %v2832, 1.442695
        %v2848 = vpow.pop %v2847
        %2849 = vset.pattern.permute.xlu0 3
        %2850 = vperm.xlu0 %2849, %v2672
        %v2851 = vpop.permute.xlu0 %2850
        %v2853 = vmul.f32 %v2851, %v2834
        %v2854 = vmul.f32 %v2851, %v2836
        %v2855 = vmul.f32 %v2851, %v2838
        %v2856 = vmul.f32 %v2851, %v2840
        %v2857 = vmul.f32 %v2851, %v2842
        %v2858 = vmul.f32 %v2851, %v2844
        %v2859 = vmul.f32 %v2851, %v2846
        %v2860 = vmul.f32 %v2851, %v2848
        %v2861 = vadd.f32 %v2813, %v2853
        %v2862 = vadd.f32 %v2814, %v2854
        %v2863 = vadd.f32 %v2815, %v2855
        %v2864 = vadd.f32 %v2816, %v2856
        %v2865 = vadd.f32 %v2817, %v2857
        %v2866 = vadd.f32 %v2818, %v2858
        %v2867 = vadd.f32 %v2819, %v2859
        %v2868 = vadd.f32 %v2820, %v2860
        %2869 = vset.pattern.permute.xlu0 4
        %2870 = vperm.xlu0 %2869, %v2674
        %v2871 = vpop.permute.xlu0 %2870
        %v2873 = vmul.f32 %v2871, %v2663
        %v2874 = vmul.f32 %v2871, %v2664
        %v2875 = vmul.f32 %v2871, %v2665
        %v2876 = vmul.f32 %v2871, %v2666
        %v2877 = vmul.f32 %v2871, %v2667
        %v2878 = vmul.f32 %v2871, %v2668
        %v2879 = vmul.f32 %v2871, %v2669
        %v2880 = vmul.f32 %v2871, %v2670
        %v2881 = vmul.f32 %v2873, 1.442695
        %v2882 = vpow.pop %v2881
        %v2883 = vmul.f32 %v2874, 1.442695
        %v2884 = vpow.pop %v2883
        %v2885 = vmul.f32 %v2875, 1.442695
        %v2886 = vpow.pop %v2885
        %v2887 = vmul.f32 %v2876, 1.442695
        %v2888 = vpow.pop %v2887
        %v2889 = vmul.f32 %v2877, 1.442695
        %v2890 = vpow.pop %v2889
        %v2891 = vmul.f32 %v2878, 1.442695
        %v2892 = vpow.pop %v2891
        %v2893 = vmul.f32 %v2879, 1.442695
        %v2894 = vpow.pop %v2893
        %v2895 = vmul.f32 %v2880, 1.442695
        %v2896 = vpow.pop %v2895
        %2897 = vset.pattern.permute.xlu0 4
        %2898 = vperm.xlu0 %2897, %v2672
        %v2899 = vpop.permute.xlu0 %2898
        %v2901 = vmul.f32 %v2899, %v2882
        %v2902 = vmul.f32 %v2899, %v2884
        %v2903 = vmul.f32 %v2899, %v2886
        %v2904 = vmul.f32 %v2899, %v2888
        %v2905 = vmul.f32 %v2899, %v2890
        %v2906 = vmul.f32 %v2899, %v2892
        %v2907 = vmul.f32 %v2899, %v2894
        %v2908 = vmul.f32 %v2899, %v2896
        %v2909 = vadd.f32 %v2861, %v2901
        %v2910 = vadd.f32 %v2862, %v2902
        %v2911 = vadd.f32 %v2863, %v2903
        %v2912 = vadd.f32 %v2864, %v2904
        %v2913 = vadd.f32 %v2865, %v2905
        %v2914 = vadd.f32 %v2866, %v2906
        %v2915 = vadd.f32 %v2867, %v2907
        %v2916 = vadd.f32 %v2868, %v2908
        %2917 = vset.pattern.permute.xlu0 5
        %2918 = vperm.xlu0 %2917, %v2674
        %v2919 = vpop.permute.xlu0 %2918
        %v2921 = vmul.f32 %v2919, %v2663
        %v2922 = vmul.f32 %v2919, %v2664
        %v2923 = vmul.f32 %v2919, %v2665
        %v2924 = vmul.f32 %v2919, %v2666
        %v2925 = vmul.f32 %v2919, %v2667
        %v2926 = vmul.f32 %v2919, %v2668
        %v2927 = vmul.f32 %v2919, %v2669
        %v2928 = vmul.f32 %v2919, %v2670
        %v2929 = vmul.f32 %v2921, 1.442695
        %v2930 = vpow.pop %v2929
        %v2931 = vmul.f32 %v2922, 1.442695
        %v2932 = vpow.pop %v2931
        %v2933 = vmul.f32 %v2923, 1.442695
        %v2934 = vpow.pop %v2933
        %v2935 = vmul.f32 %v2924, 1.442695
        %v2936 = vpow.pop %v2935
        %v2937 = vmul.f32 %v2925, 1.442695
        %v2938 = vpow.pop %v2937
        %v2939 = vmul.f32 %v2926, 1.442695
        %v2940 = vpow.pop %v2939
        %v2941 = vmul.f32 %v2927, 1.442695
        %v2942 = vpow.pop %v2941
        %v2943 = vmul.f32 %v2928, 1.442695
        %v2944 = vpow.pop %v2943
        %2945 = vset.pattern.permute.xlu0 5
        %2946 = vperm.xlu0 %2945, %v2672
        %v2947 = vpop.permute.xlu0 %2946
        %v2949 = vmul.f32 %v2947, %v2930
        %v2950 = vmul.f32 %v2947, %v2932
        %v2951 = vmul.f32 %v2947, %v2934
        %v2952 = vmul.f32 %v2947, %v2936
        %v2953 = vmul.f32 %v2947, %v2938
        %v2954 = vmul.f32 %v2947, %v2940
        %v2955 = vmul.f32 %v2947, %v2942
        %v2956 = vmul.f32 %v2947, %v2944
        %v2957 = vadd.f32 %v2909, %v2949
        %v2958 = vadd.f32 %v2910, %v2950
        %v2959 = vadd.f32 %v2911, %v2951
        %v2960 = vadd.f32 %v2912, %v2952
        %v2961 = vadd.f32 %v2913, %v2953
        %v2962 = vadd.f32 %v2914, %v2954
        %v2963 = vadd.f32 %v2915, %v2955
        %v2964 = vadd.f32 %v2916, %v2956
        %v2965 = vld [vmem:[#allocation2] sm:$0xff]
        %v2966 = vld [vmem:[#allocation2 + $0x8] sm:$0xff]
        %v2967 = vld [vmem:[#allocation2 + $0x10] sm:$0xff]
        %v2968 = vld [vmem:[#allocation2 + $0x18] sm:$0xff]
        %v2969 = vld [vmem:[#allocation2 + $0x20] sm:$0xff]
        %v2970 = vld [vmem:[#allocation2 + $0x28] sm:$0xff]
        %v2971 = vld [vmem:[#allocation2 + $0x30] sm:$0xff]
        %v2972 = vld [vmem:[#allocation2 + $0x38] sm:$0xff]
        %v2973 = vadd.f32 %v2965, %v2957
        %v2974 = vadd.f32 %v2966, %v2958
        %v2975 = vadd.f32 %v2967, %v2959
        %v2976 = vadd.f32 %v2968, %v2960
        %v2977 = vadd.f32 %v2969, %v2961
        %v2978 = vadd.f32 %v2970, %v2962
        %v2979 = vadd.f32 %v2971, %v2963
        %v2980 = vadd.f32 %v2972, %v2964
        %2981 = vst [vmem:[#allocation2] sm:$0xff] %v2973
        %2982 = vst [vmem:[#allocation2 + $0x8] sm:$0xff] %v2974
        %2983 = vst [vmem:[#allocation2 + $0x10] sm:$0xff] %v2975
        %2984 = vst [vmem:[#allocation2 + $0x18] sm:$0xff] %v2976
        %2985 = vst [vmem:[#allocation2 + $0x20] sm:$0xff] %v2977
        %2986 = vst [vmem:[#allocation2 + $0x28] sm:$0xff] %v2978
        %2987 = vst [vmem:[#allocation2 + $0x30] sm:$0xff] %v2979
        %2988 = vst [vmem:[#allocation2 + $0x38] sm:$0xff] %v2980
        %v2989 = vld [vmem:[#allocation2] sm:$0xff]
        %v2990 = vld [vmem:[#allocation2 + $0x8] sm:$0xff]
        %v2991 = vld [vmem:[#allocation2 + $0x10] sm:$0xff]
        %v2992 = vld [vmem:[#allocation2 + $0x18] sm:$0xff]
        %v2993 = vld [vmem:[#allocation2 + $0x20] sm:$0xff]
        %v2994 = vld [vmem:[#allocation2 + $0x28] sm:$0xff]
        %v2995 = vld [vmem:[#allocation2 + $0x30] sm:$0xff]
        %v2996 = vld [vmem:[#allocation2 + $0x38] sm:$0xff]
        %v2997 = vrot.slane %v2989, 4
        %v2998 = vadd.f32 %v2989, %v2997
        %v2999 = vrot.slane %v2998, 2
        %v3000 = vadd.f32 %v2998, %v2999
        %v3001 = vrot.slane %v3000, 1
        %v3002 = vadd.f32 %v3000, %v3001
        %v3003 = vrot.slane %v2990, 4
        %v3004 = vadd.f32 %v2990, %v3003
        %v3005 = vrot.slane %v3004, 2
        %v3006 = vadd.f32 %v3004, %v3005
        %v3007 = vrot.slane %v3006, 1
        %v3008 = vadd.f32 %v3006, %v3007
        %v3009 = vrot.slane %v2991, 4
        %v3010 = vadd.f32 %v2991, %v3009
        %v3011 = vrot.slane %v3010, 2
        %v3012 = vadd.f32 %v3010, %v3011
        %v3013 = vrot.slane %v3012, 1
        %v3014 = vadd.f32 %v3012, %v3013
        %v3015 = vrot.slane %v2992, 4
        %v3016 = vadd.f32 %v2992, %v3015
        %v3017 = vrot.slane %v3016, 2
        %v3018 = vadd.f32 %v3016, %v3017
        %v3019 = vrot.slane %v3018, 1
        %v3020 = vadd.f32 %v3018, %v3019
        %v3021 = vrot.slane %v2993, 4
        %v3022 = vadd.f32 %v2993, %v3021
        %v3023 = vrot.slane %v3022, 2
        %v3024 = vadd.f32 %v3022, %v3023
        %v3025 = vrot.slane %v3024, 1
        %v3026 = vadd.f32 %v3024, %v3025
        %v3027 = vrot.slane %v2994, 4
        %v3028 = vadd.f32 %v2994, %v3027
        %v3029 = vrot.slane %v3028, 2
        %v3030 = vadd.f32 %v3028, %v3029
        %v3031 = vrot.slane %v3030, 1
        %v3032 = vadd.f32 %v3030, %v3031
        %v3033 = vrot.slane %v2995, 4
        %v3034 = vadd.f32 %v2995, %v3033
        %v3035 = vrot.slane %v3034, 2
        %v3036 = vadd.f32 %v3034, %v3035
        %v3037 = vrot.slane %v3036, 1
        %v3038 = vadd.f32 %v3036, %v3037
        %v3039 = vrot.slane %v2996, 4
        %v3040 = vadd.f32 %v2996, %v3039
        %v3041 = vrot.slane %v3040, 2
        %v3042 = vadd.f32 %v3040, %v3041
        %v3043 = vrot.slane %v3042, 1
        %v3044 = vadd.f32 %v3042, %v3043
        %v3053 = vcombine.low %v3002, %v3008
        %v3054 = vcombine.low %v3014, %v3020
        %v3055 = vcombine.low %v3026, %v3032
        %v3056 = vcombine.low %v3038, %v3044
        %v3058 = vunpack.c.l.s4 1966171168
        %v3059 = vunpack.c.0.s8 %v3058
        %v3060 = vlaneseq
        %v3061 = vshrl.u32 %v3060, 7
        %v3062 = vsub.s32 %v3059, %v3061
        %v3063 = vrot.slane %v3053, %v3062
        %v3065 = vunpack.c.l.s4 1966171168
        %v3066 = vunpack.c.0.s8 %v3065
        %v3067 = vlaneseq
        %v3068 = vshrl.u32 %v3067, 7
        %v3069 = vsub.s32 %v3066, %v3068
        %v3070 = vrot.slane %v3054, %v3069
        %v3072 = vunpack.c.l.s4 1966171168
        %v3073 = vunpack.c.0.s8 %v3072
        %v3074 = vlaneseq
        %v3075 = vshrl.u32 %v3074, 7
        %v3076 = vsub.s32 %v3073, %v3075
        %v3077 = vrot.slane %v3055, %v3076
        %v3079 = vunpack.c.l.s4 1966171168
        %v3080 = vunpack.c.0.s8 %v3079
        %v3081 = vlaneseq
        %v3082 = vshrl.u32 %v3081, 7
        %v3083 = vsub.s32 %v3080, %v3082
        %v3084 = vrot.slane %v3056, %v3083
        %v3085 = vcombine.low %v3063, %v3070
        %v3086 = vcombine.low %v3077, %v3084
        %v3088 = vunpack.c.l.s4 1966171168
        %v3089 = vunpack.c.0.s8 %v3088
        %v3090 = vlaneseq
        %v3091 = vshrl.u32 %v3090, 7
        %v3092 = vsub.s32 %v3089, %v3091
        %v3093 = vrot.slane %v3085, %v3092
        %v3095 = vunpack.c.l.s4 1966171168
        %v3096 = vunpack.c.0.s8 %v3095
        %v3097 = vlaneseq
        %v3098 = vshrl.u32 %v3097, 7
        %v3099 = vsub.s32 %v3096, %v3098
        %v3100 = vrot.slane %v3086, %v3099
        %v3101 = vcombine.low %v3093, %v3100
        %3103 = vst [vmem:[%s213] sm:$0xff] %v3101
        %s3104 = sand.u32 %s118, 1
        %s3105 = scalar_lea.sflag [#allocation6], %s3104
        %s3106 = sand.u32 %s118, 1
        %s3107 = smul.addr %s3106, 8
        %s3108 = scalar_lea.vmem [#allocation7], %s3107
        // Predicated region
        $region41: #{tpu_custom_call.1} parent=35 // pred_check
          %p3109 = pneg %p128
        $region42: #{tpu_custom_call.1} parent=35 // pred_check_branch
          %3111 = sbr.rel (%p3109) target = $region44
        $region43: #{tpu_custom_call.1} parent=35 // pred_region
          %s3112 = smul.u32 8, %s21
          %s3114 = ssub.s32 128, 128
          %3115 = vsyncadd %s3105, %s3114
          %s3116 = smul.addr %s3112, 16
          %s3117 = scalar_lea.hbm %s4, %s3116
          %s3119 = sshll.u32 %s3108, 4
          %s3120 = int_to_ptr.vmem [resolvable:$true] %s3119
          %3122 = dma.vmem_to_hbm [thread:$0]  %s3120, 128, %s3117, %s3105
        $region44: #{tpu_custom_call.1} parent=35 // pred_fallthru
          _
      $region36: #{tpu_custom_call.1} parent=5 // pred_fallthru
        _
      %p3123 = scmp.le.s32.totalorder 2, %s16
      // Predicated region
      $region45: #{tpu_custom_call.1} parent=5 // pred_check
        %p3124 = pneg %p3123
      $region46: #{tpu_custom_call.1} parent=5 // pred_check_branch
        %3126 = sbr.rel (%p3124) target = $region48
      $region47: #{tpu_custom_call.1} parent=5 // pred_region
        %s3127 = ssub.s32 %s16, 2
        // Predicated region
        $region49: #{tpu_custom_call.1} parent=47 // pred_check
          %p3128 = pneg %p134
        $region50: #{tpu_custom_call.1} parent=47 // pred_check_branch
          %3130 = sbr.rel (%p3128) target = $region52
        $region51: #{tpu_custom_call.1} parent=47 // pred_region
          %s3131 = sand.u32 %s119, 1
          %s3132 = scalar_lea.sflag [#allocation6], %s3131
          %s3133 = sand.u32 %s119, 1
          %s3134 = smul.addr %s3133, 8
          %s3135 = scalar_lea.vmem [#allocation7], %s3134
          %3136 = dma.done %s3132, 128
        $region52: #{tpu_custom_call.1} parent=47 // pred_fallthru
          _
      $region48: #{tpu_custom_call.1} parent=5 // pred_fallthru
        _
    $region6: #{tpu_custom_call.1} parent=1 // loop_footer
      %s20 = sadd.s32 1, %s16
    $region7: #{tpu_custom_call.1} parent=1 // loop_footer_branch
      %15 = sbr.rel target = $region3
    $region8: #{tpu_custom_call.1} parent=1 // loop_exit
      _
    %3137 = vsyncpa [#allocation5], 1
    %s3138 = scalar_lea.sflag [#allocation5], 1
    %3139 = vsyncpa %s3138, 1
    %3140 = vsyncpa [#allocation6], 1
    %s3141 = scalar_lea.sflag [#allocation6], 1
    %3142 = vsyncpa %s3141, 1

</llo_original>
